<compile_context>
chip_gen: v5e
topology: v5e:2x2
jax: 0.10.0
libtpu: 0.0.40
codegen_flags: <defaults>
</compile_context>

<pallas_src>
import functools

import jax
import jax.numpy as jnp
from jax.experimental import pallas as pl
from jax.experimental.pallas import tpu as pltpu

# Model dims (from the PyTorch __init__)
INPUT_SIZE = 24     # LSTM input_size
HIDDEN = 256        # LSTM hidden_size
DENSE_IN = 384      # first Linear in_features (declared)
H1 = 32
H2 = 16
OUT = 2
NEG_SLOPE = 0.01    # nn.LeakyReLU default


def _leaky_relu(v):
    return jnp.where(v > 0, v, NEG_SLOPE * v)


def bts_kernel(x2d_ref, xtemp_ref, wih_ref, whh_ref, b_ref,
               w1h_ref, w1x_ref, b1_ref, w2_ref, b2_ref, w3_ref, b3_ref,
               out_ref, *, seq_len, batch_pad):
    T = seq_len
    Bp = batch_pad
    H = HIDDEN

    whh = whh_ref[...]                                           # (H, 4H)

    # Hoist the input projection out of the recurrence: one well-shaped
    # (T*Bp, F) @ (F, 4H) matmul with the combined bias folded in, instead of
    # T tiny matmuls sitting on the serial h dependency chain.
    xw = (jnp.dot(x2d_ref[...], wih_ref[...],
                  preferred_element_type=jnp.float32)
          + b_ref[...])                                          # (T*Bp, 4H)

    h = jnp.zeros((Bp, H), jnp.float32)
    c = jnp.zeros((Bp, H), jnp.float32)

    # T is static and small -> full unroll for LLO scheduling visibility.
    for t in range(T):
        gates = xw[t * Bp:(t + 1) * Bp] + jnp.dot(
            h, whh, preferred_element_type=jnp.float32)          # (Bp, 4H) i,f,g,o
        i_g = jax.nn.sigmoid(gates[:, 0 * H:1 * H])
        f_g = jax.nn.sigmoid(gates[:, 1 * H:2 * H])
        g_g = jnp.tanh(gates[:, 2 * H:3 * H])
        o_g = jax.nn.sigmoid(gates[:, 3 * H:4 * H])
        c = f_g * c + i_g * g_g
        h = o_g * jnp.tanh(c)

    # Dense head on the final hidden state + leaky_relu(x[:, 4, 0, :]).
    # Linear(384,32) acting on concat([h(256), x_temp(24), zeros(104)]) is
    # implemented as a split matmul (the zero pad contributes nothing).
    x_temp = _leaky_relu(xtemp_ref[...])                         # (Bp, F)
    z1 = (jnp.dot(h, w1h_ref[...], preferred_element_type=jnp.float32)
          + jnp.dot(x_temp, w1x_ref[...], preferred_element_type=jnp.float32)
          + b1_ref[...])
    a1 = _leaky_relu(z1)                                         # (Bp, 32)
    z2 = jnp.dot(a1, w2_ref[...], preferred_element_type=jnp.float32) + b2_ref[...]
    a2 = _leaky_relu(z2)                                         # (Bp, 16)
    out = jnp.dot(a2, w3_ref[...], preferred_element_type=jnp.float32) + b3_ref[...]
    out_ref[...] = out                                           # (Bp, 2)


def bts_forward(x, params):
    B, G, T, F = x.shape
    assert F == INPUT_SIZE and G >= 5

    Bp = max(8, -(-B // 8) * 8)    # pad batch to a sublane multiple

    # Only the last group's sequence reaches the head: slice it here so the
    # kernel never DMAs (or computes on) the other G-1 groups.
    x_last = jnp.transpose(x[:, G - 1].astype(jnp.float32), (1, 0, 2))   # (T, B, F)
    x_last = jnp.pad(x_last, ((0, 0), (0, Bp - B), (0, 0)))              # (T, Bp, F)
    x2d = x_last.reshape(T * Bp, F)                                      # (T*Bp, F)

    x_temp = jnp.pad(x[:, 4, 0, :].astype(jnp.float32),
                     ((0, Bp - B), (0, 0)))                              # (Bp, F)

    # Weights pre-transposed to (in, out); LSTM biases combined; fc1 pre-split.
    wih_t = params["lstm_w_ih"].T                                        # (F, 4H)
    whh_t = params["lstm_w_hh"].T                                        # (H, 4H)
    b = (params["lstm_b_ih"] + params["lstm_b_hh"])[None, :]             # (1, 4H)
    w1_t = params["fc1_w"].T                                             # (384, 32)
    w1_h = w1_t[:HIDDEN]                                                 # (256, 32)
    w1_x = w1_t[HIDDEN:HIDDEN + INPUT_SIZE]                              # (24, 32)
    b1 = params["fc1_b"][None, :]
    w2_t = params["fc2_w"].T                                             # (32, 16)
    b2 = params["fc2_b"][None, :]
    w3_t = params["fc3_w"].T                                             # (16, 2)
    b3 = params["fc3_b"][None, :]

    args = (x2d, x_temp, wih_t, whh_t, b, w1_h, w1_x, b1, w2_t, b2, w3_t, b3)

    # Single invocation (no grid); every operand lives whole in VMEM.
    vmem = pl.BlockSpec(memory_space=pltpu.MemorySpace.VMEM)

    kernel = functools.partial(bts_kernel, seq_len=T, batch_pad=Bp)
    out = pl.pallas_call(
        kernel,
        out_shape=jax.ShapeDtypeStruct((Bp, OUT), jnp.float32),
        in_specs=[vmem] * len(args),
        out_specs=vmem,
        compiler_params=pltpu.CompilerParams(vmem_limit_bytes=32 << 20),
    )(*args)
    return out[:B]


def bts_forward_ref(x, params):
    """Pure-JAX reference mirroring the PyTorch forward."""
    B, G, T, F = x.shape
    wih, whh = params["lstm_w_ih"], params["lstm_w_hh"]
    b = params["lstm_b_ih"] + params["lstm_b_hh"]
    h = jnp.zeros((B, HIDDEN), jnp.float32)
    c = jnp.zeros((B, HIDDEN), jnp.float32)
    seq = x[:, G - 1].astype(jnp.float32)          # only the last group matters
    for t in range(T):
        g = seq[:, t, :] @ wih.T + h @ whh.T + b
        i = jax.nn.sigmoid(g[:, :HIDDEN])
        f = jax.nn.sigmoid(g[:, HIDDEN:2 * HIDDEN])
        gg = jnp.tanh(g[:, 2 * HIDDEN:3 * HIDDEN])
        o = jax.nn.sigmoid(g[:, 3 * HIDDEN:])
        c = f * c + i * gg
        h = o * jnp.tanh(c)
    x_temp = _leaky_relu(x[:, 4, 0, :].astype(jnp.float32))
    pad = jnp.zeros((B, DENSE_IN - HIDDEN - F), jnp.float32)
    z = jnp.concatenate([h, x_temp, pad], axis=1)
    a1 = _leaky_relu(z @ params["fc1_w"].T + params["fc1_b"])
    a2 = _leaky_relu(a1 @ params["fc2_w"].T + params["fc2_b"])
    return a2 @ params["fc3_w"].T + params["fc3_b"]


def init_params(key):
    ks = jax.random.split(key, 10)
    s = 0.05
    return {
        "lstm_w_ih": s * jax.random.normal(ks[0], (4 * HIDDEN, INPUT_SIZE), jnp.float32),
        "lstm_w_hh": s * jax.random.normal(ks[1], (4 * HIDDEN, HIDDEN), jnp.float32),
        "lstm_b_ih": s * jax.random.normal(ks[2], (4 * HIDDEN,), jnp.float32),
        "lstm_b_hh": s * jax.random.normal(ks[3], (4 * HIDDEN,), jnp.float32),
        "fc1_w": s * jax.random.normal(ks[4], (H1, DENSE_IN), jnp.float32),
        "fc1_b": s * jax.random.normal(ks[5], (H1,), jnp.float32),
        "fc2_w": s * jax.random.normal(ks[6], (H2, H1), jnp.float32),
        "fc2_b": s * jax.random.normal(ks[7], (H2,), jnp.float32),
        "fc3_w": s * jax.random.normal(ks[8], (OUT, H2), jnp.float32),
        "fc3_b": s * jax.random.normal(ks[9], (OUT,), jnp.float32),
    }


if __name__ == "__main__":
    key = jax.random.PRNGKey(0)
    pkey, xkey = jax.random.split(key)
    params = init_params(pkey)

    B, G, T = 2, 5, 8                       # small shapes consistent with the forward
    x = jax.random.normal(xkey, (B, G, T, INPUT_SIZE), jnp.float32)

    out = jax.block_until_ready(bts_forward(x, params))
    ref = jax.block_until_ready(bts_forward_ref(x, params))
    assert out.shape == (B, OUT)
    assert jnp.allclose(out, ref, atol=5e-3, rtol=5e-3), (out, ref)
    print("KERNEL_OK")
</pallas_src>

<mosaic_0001>
module attributes {stable_mosaic.version = 11 : i64} {
  func.func @bts_kernel(%arg0: memref<64x24xf32, #tpu.memory_space<vmem>>, %arg1: memref<8x24xf32, #tpu.memory_space<vmem>>, %arg2: memref<24x1024xf32, #tpu.memory_space<vmem>>, %arg3: memref<256x1024xf32, #tpu.memory_space<vmem>>, %arg4: memref<1x1024xf32, #tpu.memory_space<vmem>>, %arg5: memref<256x32xf32, #tpu.memory_space<vmem>>, %arg6: memref<24x32xf32, #tpu.memory_space<vmem>>, %arg7: memref<1x32xf32, #tpu.memory_space<vmem>>, %arg8: memref<32x16xf32, #tpu.memory_space<vmem>>, %arg9: memref<1x16xf32, #tpu.memory_space<vmem>>, %arg10: memref<16x2xf32, #tpu.memory_space<vmem>>, %arg11: memref<1x2xf32, #tpu.memory_space<vmem>>, %arg12: memref<8x2xf32, #tpu.memory_space<vmem>>) attributes {dimension_semantics = [], scalar_prefetch = 0 : i64, scratch_operands = 0 : i64, tpu.core_type = #tpu.core_type<tc>} {
    %c0 = arith.constant 0 : index
    %c0_0 = arith.constant 0 : index
    %0 = vector.load %arg3[%c0, %c0_0] : memref<256x1024xf32, #tpu.memory_space<vmem>>, vector<256x1024xf32>
    %c0_1 = arith.constant 0 : index
    %c0_2 = arith.constant 0 : index
    %1 = vector.load %arg0[%c0_1, %c0_2] : memref<64x24xf32, #tpu.memory_space<vmem>>, vector<64x24xf32>
    %c0_3 = arith.constant 0 : index
    %c0_4 = arith.constant 0 : index
    %2 = vector.load %arg2[%c0_3, %c0_4] : memref<24x1024xf32, #tpu.memory_space<vmem>>, vector<24x1024xf32>
    %cst = arith.constant dense<0.000000e+00> : vector<64x1024xf32>
    %3 = tpu.matmul %1, %2, %cst {dimension_numbers = #tpu.dot_dimension_numbers<[1], [0], [0], [1], [0, 0, 1, 1], [], []>} : vector<64x24xf32>, vector<24x1024xf32>, vector<64x1024xf32> -> vector<64x1024xf32>
    %c0_5 = arith.constant 0 : index
    %c0_6 = arith.constant 0 : index
    %4 = vector.load %arg4[%c0_5, %c0_6] : memref<1x1024xf32, #tpu.memory_space<vmem>>, vector<1x1024xf32>
    %5 = vector.broadcast %4 : vector<1x1024xf32> to vector<64x1024xf32>
    %6 = arith.addf %3, %5 : vector<64x1024xf32>
    %cst_7 = arith.constant 0.000000e+00 : f32
    %7 = vector.broadcast %cst_7 : f32 to vector<8x256xf32>
    %cst_8 = arith.constant 0.000000e+00 : f32
    %8 = vector.broadcast %cst_8 : f32 to vector<8x256xf32>
    %9 = vector.extract_strided_slice %6 {offsets = [0, 0], sizes = [8, 1024], strides = [1, 1]} : vector<64x1024xf32> to vector<8x1024xf32>
    %cst_9 = arith.constant dense<0.000000e+00> : vector<8x1024xf32>
    %10 = tpu.matmul %7, %0, %cst_9 {dimension_numbers = #tpu.dot_dimension_numbers<[1], [0], [0], [1], [0, 0, 1, 1], [], []>} : vector<8x256xf32>, vector<256x1024xf32>, vector<8x1024xf32> -> vector<8x1024xf32>
    %11 = arith.addf %9, %10 : vector<8x1024xf32>
    %12 = vector.extract_strided_slice %11 {offsets = [0, 0], sizes = [8, 256], strides = [1, 1]} : vector<8x1024xf32> to vector<8x256xf32>
    %13 = arith.negf %12 : vector<8x256xf32>
    %14 = math.exp %13 : vector<8x256xf32>
    %cst_10 = arith.constant 1.000000e+00 : f32
    %15 = vector.broadcast %cst_10 : f32 to vector<8x256xf32>
    %16 = arith.addf %15, %14 : vector<8x256xf32>
    %17 = arith.divf %15, %16 : vector<8x256xf32>
    %18 = vector.extract_strided_slice %11 {offsets = [0, 256], sizes = [8, 256], strides = [1, 1]} : vector<8x1024xf32> to vector<8x256xf32>
    %19 = arith.negf %18 : vector<8x256xf32>
    %20 = math.exp %19 : vector<8x256xf32>
    %cst_11 = arith.constant 1.000000e+00 : f32
    %21 = vector.broadcast %cst_11 : f32 to vector<8x256xf32>
    %22 = arith.addf %21, %20 : vector<8x256xf32>
    %23 = arith.divf %21, %22 : vector<8x256xf32>
    %24 = vector.extract_strided_slice %11 {offsets = [0, 512], sizes = [8, 256], strides = [1, 1]} : vector<8x1024xf32> to vector<8x256xf32>
    %25 = math.tanh %24 : vector<8x256xf32>
    %26 = vector.extract_strided_slice %11 {offsets = [0, 768], sizes = [8, 256], strides = [1, 1]} : vector<8x1024xf32> to vector<8x256xf32>
    %27 = arith.negf %26 : vector<8x256xf32>
    %28 = math.exp %27 : vector<8x256xf32>
    %cst_12 = arith.constant 1.000000e+00 : f32
    %29 = vector.broadcast %cst_12 : f32 to vector<8x256xf32>
    %30 = arith.addf %29, %28 : vector<8x256xf32>
    %31 = arith.divf %29, %30 : vector<8x256xf32>
    %32 = arith.mulf %23, %8 : vector<8x256xf32>
    %33 = arith.mulf %17, %25 : vector<8x256xf32>
    %34 = arith.addf %32, %33 : vector<8x256xf32>
    %35 = math.tanh %34 : vector<8x256xf32>
    %36 = arith.mulf %31, %35 : vector<8x256xf32>
    %37 = vector.extract_strided_slice %6 {offsets = [8, 0], sizes = [8, 1024], strides = [1, 1]} : vector<64x1024xf32> to vector<8x1024xf32>
    %cst_13 = arith.constant dense<0.000000e+00> : vector<8x1024xf32>
    %38 = tpu.matmul %36, %0, %cst_13 {dimension_numbers = #tpu.dot_dimension_numbers<[1], [0], [0], [1], [0, 0, 1, 1], [], []>} : vector<8x256xf32>, vector<256x1024xf32>, vector<8x1024xf32> -> vector<8x1024xf32>
    %39 = arith.addf %37, %38 : vector<8x1024xf32>
    %40 = vector.extract_strided_slice %39 {offsets = [0, 0], sizes = [8, 256], strides = [1, 1]} : vector<8x1024xf32> to vector<8x256xf32>
    %41 = arith.negf %40 : vector<8x256xf32>
    %42 = math.exp %41 : vector<8x256xf32>
    %cst_14 = arith.constant 1.000000e+00 : f32
    %43 = vector.broadcast %cst_14 : f32 to vector<8x256xf32>
    %44 = arith.addf %43, %42 : vector<8x256xf32>
    %45 = arith.divf %43, %44 : vector<8x256xf32>
    %46 = vector.extract_strided_slice %39 {offsets = [0, 256], sizes = [8, 256], strides = [1, 1]} : vector<8x1024xf32> to vector<8x256xf32>
    %47 = arith.negf %46 : vector<8x256xf32>
    %48 = math.exp %47 : vector<8x256xf32>
    %cst_15 = arith.constant 1.000000e+00 : f32
    %49 = vector.broadcast %cst_15 : f32 to vector<8x256xf32>
    %50 = arith.addf %49, %48 : vector<8x256xf32>
    %51 = arith.divf %49, %50 : vector<8x256xf32>
    %52 = vector.extract_strided_slice %39 {offsets = [0, 512], sizes = [8, 256], strides = [1, 1]} : vector<8x1024xf32> to vector<8x256xf32>
    %53 = math.tanh %52 : vector<8x256xf32>
    %54 = vector.extract_strided_slice %39 {offsets = [0, 768], sizes = [8, 256], strides = [1, 1]} : vector<8x1024xf32> to vector<8x256xf32>
    %55 = arith.negf %54 : vector<8x256xf32>
    %56 = math.exp %55 : vector<8x256xf32>
    %cst_16 = arith.constant 1.000000e+00 : f32
    %57 = vector.broadcast %cst_16 : f32 to vector<8x256xf32>
    %58 = arith.addf %57, %56 : vector<8x256xf32>
    %59 = arith.divf %57, %58 : vector<8x256xf32>
    %60 = arith.mulf %51, %34 : vector<8x256xf32>
    %61 = arith.mulf %45, %53 : vector<8x256xf32>
    %62 = arith.addf %60, %61 : vector<8x256xf32>
    %63 = math.tanh %62 : vector<8x256xf32>
    %64 = arith.mulf %59, %63 : vector<8x256xf32>
    %65 = vector.extract_strided_slice %6 {offsets = [16, 0], sizes = [8, 1024], strides = [1, 1]} : vector<64x1024xf32> to vector<8x1024xf32>
    %cst_17 = arith.constant dense<0.000000e+00> : vector<8x1024xf32>
    %66 = tpu.matmul %64, %0, %cst_17 {dimension_numbers = #tpu.dot_dimension_numbers<[1], [0], [0], [1], [0, 0, 1, 1], [], []>} : vector<8x256xf32>, vector<256x1024xf32>, vector<8x1024xf32> -> vector<8x1024xf32>
    %67 = arith.addf %65, %66 : vector<8x1024xf32>
    %68 = vector.extract_strided_slice %67 {offsets = [0, 0], sizes = [8, 256], strides = [1, 1]} : vector<8x1024xf32> to vector<8x256xf32>
    %69 = arith.negf %68 : vector<8x256xf32>
    %70 = math.exp %69 : vector<8x256xf32>
    %cst_18 = arith.constant 1.000000e+00 : f32
    %71 = vector.broadcast %cst_18 : f32 to vector<8x256xf32>
    %72 = arith.addf %71, %70 : vector<8x256xf32>
    %73 = arith.divf %71, %72 : vector<8x256xf32>
    %74 = vector.extract_strided_slice %67 {offsets = [0, 256], sizes = [8, 256], strides = [1, 1]} : vector<8x1024xf32> to vector<8x256xf32>
    %75 = arith.negf %74 : vector<8x256xf32>
    %76 = math.exp %75 : vector<8x256xf32>
    %cst_19 = arith.constant 1.000000e+00 : f32
    %77 = vector.broadcast %cst_19 : f32 to vector<8x256xf32>
    %78 = arith.addf %77, %76 : vector<8x256xf32>
    %79 = arith.divf %77, %78 : vector<8x256xf32>
    %80 = vector.extract_strided_slice %67 {offsets = [0, 512], sizes = [8, 256], strides = [1, 1]} : vector<8x1024xf32> to vector<8x256xf32>
    %81 = math.tanh %80 : vector<8x256xf32>
    %82 = vector.extract_strided_slice %67 {offsets = [0, 768], sizes = [8, 256], strides = [1, 1]} : vector<8x1024xf32> to vector<8x256xf32>
    %83 = arith.negf %82 : vector<8x256xf32>
    %84 = math.exp %83 : vector<8x256xf32>
    %cst_20 = arith.constant 1.000000e+00 : f32
    %85 = vector.broadcast %cst_20 : f32 to vector<8x256xf32>
    %86 = arith.addf %85, %84 : vector<8x256xf32>
    %87 = arith.divf %85, %86 : vector<8x256xf32>
    %88 = arith.mulf %79, %62 : vector<8x256xf32>
    %89 = arith.mulf %73, %81 : vector<8x256xf32>
    %90 = arith.addf %88, %89 : vector<8x256xf32>
    %91 = math.tanh %90 : vector<8x256xf32>
    %92 = arith.mulf %87, %91 : vector<8x256xf32>
    %93 = vector.extract_strided_slice %6 {offsets = [24, 0], sizes = [8, 1024], strides = [1, 1]} : vector<64x1024xf32> to vector<8x1024xf32>
    %cst_21 = arith.constant dense<0.000000e+00> : vector<8x1024xf32>
    %94 = tpu.matmul %92, %0, %cst_21 {dimension_numbers = #tpu.dot_dimension_numbers<[1], [0], [0], [1], [0, 0, 1, 1], [], []>} : vector<8x256xf32>, vector<256x1024xf32>, vector<8x1024xf32> -> vector<8x1024xf32>
    %95 = arith.addf %93, %94 : vector<8x1024xf32>
    %96 = vector.extract_strided_slice %95 {offsets = [0, 0], sizes = [8, 256], strides = [1, 1]} : vector<8x1024xf32> to vector<8x256xf32>
    %97 = arith.negf %96 : vector<8x256xf32>
    %98 = math.exp %97 : vector<8x256xf32>
    %cst_22 = arith.constant 1.000000e+00 : f32
    %99 = vector.broadcast %cst_22 : f32 to vector<8x256xf32>
    %100 = arith.addf %99, %98 : vector<8x256xf32>
    %101 = arith.divf %99, %100 : vector<8x256xf32>
    %102 = vector.extract_strided_slice %95 {offsets = [0, 256], sizes = [8, 256], strides = [1, 1]} : vector<8x1024xf32> to vector<8x256xf32>
    %103 = arith.negf %102 : vector<8x256xf32>
    %104 = math.exp %103 : vector<8x256xf32>
    %cst_23 = arith.constant 1.000000e+00 : f32
    %105 = vector.broadcast %cst_23 : f32 to vector<8x256xf32>
    %106 = arith.addf %105, %104 : vector<8x256xf32>
    %107 = arith.divf %105, %106 : vector<8x256xf32>
    %108 = vector.extract_strided_slice %95 {offsets = [0, 512], sizes = [8, 256], strides = [1, 1]} : vector<8x1024xf32> to vector<8x256xf32>
    %109 = math.tanh %108 : vector<8x256xf32>
    %110 = vector.extract_strided_slice %95 {offsets = [0, 768], sizes = [8, 256], strides = [1, 1]} : vector<8x1024xf32> to vector<8x256xf32>
    %111 = arith.negf %110 : vector<8x256xf32>
    %112 = math.exp %111 : vector<8x256xf32>
    %cst_24 = arith.constant 1.000000e+00 : f32
    %113 = vector.broadcast %cst_24 : f32 to vector<8x256xf32>
    %114 = arith.addf %113, %112 : vector<8x256xf32>
    %115 = arith.divf %113, %114 : vector<8x256xf32>
    %116 = arith.mulf %107, %90 : vector<8x256xf32>
    %117 = arith.mulf %101, %109 : vector<8x256xf32>
    %118 = arith.addf %116, %117 : vector<8x256xf32>
    %119 = math.tanh %118 : vector<8x256xf32>
    %120 = arith.mulf %115, %119 : vector<8x256xf32>
    %121 = vector.extract_strided_slice %6 {offsets = [32, 0], sizes = [8, 1024], strides = [1, 1]} : vector<64x1024xf32> to vector<8x1024xf32>
    %cst_25 = arith.constant dense<0.000000e+00> : vector<8x1024xf32>
    %122 = tpu.matmul %120, %0, %cst_25 {dimension_numbers = #tpu.dot_dimension_numbers<[1], [0], [0], [1], [0, 0, 1, 1], [], []>} : vector<8x256xf32>, vector<256x1024xf32>, vector<8x1024xf32> -> vector<8x1024xf32>
    %123 = arith.addf %121, %122 : vector<8x1024xf32>
    %124 = vector.extract_strided_slice %123 {offsets = [0, 0], sizes = [8, 256], strides = [1, 1]} : vector<8x1024xf32> to vector<8x256xf32>
    %125 = arith.negf %124 : vector<8x256xf32>
    %126 = math.exp %125 : vector<8x256xf32>
    %cst_26 = arith.constant 1.000000e+00 : f32
    %127 = vector.broadcast %cst_26 : f32 to vector<8x256xf32>
    %128 = arith.addf %127, %126 : vector<8x256xf32>
    %129 = arith.divf %127, %128 : vector<8x256xf32>
    %130 = vector.extract_strided_slice %123 {offsets = [0, 256], sizes = [8, 256], strides = [1, 1]} : vector<8x1024xf32> to vector<8x256xf32>
    %131 = arith.negf %130 : vector<8x256xf32>
    %132 = math.exp %131 : vector<8x256xf32>
    %cst_27 = arith.constant 1.000000e+00 : f32
    %133 = vector.broadcast %cst_27 : f32 to vector<8x256xf32>
    %134 = arith.addf %133, %132 : vector<8x256xf32>
    %135 = arith.divf %133, %134 : vector<8x256xf32>
    %136 = vector.extract_strided_slice %123 {offsets = [0, 512], sizes = [8, 256], strides = [1, 1]} : vector<8x1024xf32> to vector<8x256xf32>
    %137 = math.tanh %136 : vector<8x256xf32>
    %138 = vector.extract_strided_slice %123 {offsets = [0, 768], sizes = [8, 256], strides = [1, 1]} : vector<8x1024xf32> to vector<8x256xf32>
    %139 = arith.negf %138 : vector<8x256xf32>
    %140 = math.exp %139 : vector<8x256xf32>
    %cst_28 = arith.constant 1.000000e+00 : f32
    %141 = vector.broadcast %cst_28 : f32 to vector<8x256xf32>
    %142 = arith.addf %141, %140 : vector<8x256xf32>
    %143 = arith.divf %141, %142 : vector<8x256xf32>
    %144 = arith.mulf %135, %118 : vector<8x256xf32>
    %145 = arith.mulf %129, %137 : vector<8x256xf32>
    %146 = arith.addf %144, %145 : vector<8x256xf32>
    %147 = math.tanh %146 : vector<8x256xf32>
    %148 = arith.mulf %143, %147 : vector<8x256xf32>
    %149 = vector.extract_strided_slice %6 {offsets = [40, 0], sizes = [8, 1024], strides = [1, 1]} : vector<64x1024xf32> to vector<8x1024xf32>
    %cst_29 = arith.constant dense<0.000000e+00> : vector<8x1024xf32>
    %150 = tpu.matmul %148, %0, %cst_29 {dimension_numbers = #tpu.dot_dimension_numbers<[1], [0], [0], [1], [0, 0, 1, 1], [], []>} : vector<8x256xf32>, vector<256x1024xf32>, vector<8x1024xf32> -> vector<8x1024xf32>
    %151 = arith.addf %149, %150 : vector<8x1024xf32>
    %152 = vector.extract_strided_slice %151 {offsets = [0, 0], sizes = [8, 256], strides = [1, 1]} : vector<8x1024xf32> to vector<8x256xf32>
    %153 = arith.negf %152 : vector<8x256xf32>
    %154 = math.exp %153 : vector<8x256xf32>
    %cst_30 = arith.constant 1.000000e+00 : f32
    %155 = vector.broadcast %cst_30 : f32 to vector<8x256xf32>
    %156 = arith.addf %155, %154 : vector<8x256xf32>
    %157 = arith.divf %155, %156 : vector<8x256xf32>
    %158 = vector.extract_strided_slice %151 {offsets = [0, 256], sizes = [8, 256], strides = [1, 1]} : vector<8x1024xf32> to vector<8x256xf32>
    %159 = arith.negf %158 : vector<8x256xf32>
    %160 = math.exp %159 : vector<8x256xf32>
    %cst_31 = arith.constant 1.000000e+00 : f32
    %161 = vector.broadcast %cst_31 : f32 to vector<8x256xf32>
    %162 = arith.addf %161, %160 : vector<8x256xf32>
    %163 = arith.divf %161, %162 : vector<8x256xf32>
    %164 = vector.extract_strided_slice %151 {offsets = [0, 512], sizes = [8, 256], strides = [1, 1]} : vector<8x1024xf32> to vector<8x256xf32>
    %165 = math.tanh %164 : vector<8x256xf32>
    %166 = vector.extract_strided_slice %151 {offsets = [0, 768], sizes = [8, 256], strides = [1, 1]} : vector<8x1024xf32> to vector<8x256xf32>
    %167 = arith.negf %166 : vector<8x256xf32>
    %168 = math.exp %167 : vector<8x256xf32>
    %cst_32 = arith.constant 1.000000e+00 : f32
    %169 = vector.broadcast %cst_32 : f32 to vector<8x256xf32>
    %170 = arith.addf %169, %168 : vector<8x256xf32>
    %171 = arith.divf %169, %170 : vector<8x256xf32>
    %172 = arith.mulf %163, %146 : vector<8x256xf32>
    %173 = arith.mulf %157, %165 : vector<8x256xf32>
    %174 = arith.addf %172, %173 : vector<8x256xf32>
    %175 = math.tanh %174 : vector<8x256xf32>
    %176 = arith.mulf %171, %175 : vector<8x256xf32>
    %177 = vector.extract_strided_slice %6 {offsets = [48, 0], sizes = [8, 1024], strides = [1, 1]} : vector<64x1024xf32> to vector<8x1024xf32>
    %cst_33 = arith.constant dense<0.000000e+00> : vector<8x1024xf32>
    %178 = tpu.matmul %176, %0, %cst_33 {dimension_numbers = #tpu.dot_dimension_numbers<[1], [0], [0], [1], [0, 0, 1, 1], [], []>} : vector<8x256xf32>, vector<256x1024xf32>, vector<8x1024xf32> -> vector<8x1024xf32>
    %179 = arith.addf %177, %178 : vector<8x1024xf32>
    %180 = vector.extract_strided_slice %179 {offsets = [0, 0], sizes = [8, 256], strides = [1, 1]} : vector<8x1024xf32> to vector<8x256xf32>
    %181 = arith.negf %180 : vector<8x256xf32>
    %182 = math.exp %181 : vector<8x256xf32>
    %cst_34 = arith.constant 1.000000e+00 : f32
    %183 = vector.broadcast %cst_34 : f32 to vector<8x256xf32>
    %184 = arith.addf %183, %182 : vector<8x256xf32>
    %185 = arith.divf %183, %184 : vector<8x256xf32>
    %186 = vector.extract_strided_slice %179 {offsets = [0, 256], sizes = [8, 256], strides = [1, 1]} : vector<8x1024xf32> to vector<8x256xf32>
    %187 = arith.negf %186 : vector<8x256xf32>
    %188 = math.exp %187 : vector<8x256xf32>
    %cst_35 = arith.constant 1.000000e+00 : f32
    %189 = vector.broadcast %cst_35 : f32 to vector<8x256xf32>
    %190 = arith.addf %189, %188 : vector<8x256xf32>
    %191 = arith.divf %189, %190 : vector<8x256xf32>
    %192 = vector.extract_strided_slice %179 {offsets = [0, 512], sizes = [8, 256], strides = [1, 1]} : vector<8x1024xf32> to vector<8x256xf32>
    %193 = math.tanh %192 : vector<8x256xf32>
    %194 = vector.extract_strided_slice %179 {offsets = [0, 768], sizes = [8, 256], strides = [1, 1]} : vector<8x1024xf32> to vector<8x256xf32>
    %195 = arith.negf %194 : vector<8x256xf32>
    %196 = math.exp %195 : vector<8x256xf32>
    %cst_36 = arith.constant 1.000000e+00 : f32
    %197 = vector.broadcast %cst_36 : f32 to vector<8x256xf32>
    %198 = arith.addf %197, %196 : vector<8x256xf32>
    %199 = arith.divf %197, %198 : vector<8x256xf32>
    %200 = arith.mulf %191, %174 : vector<8x256xf32>
    %201 = arith.mulf %185, %193 : vector<8x256xf32>
    %202 = arith.addf %200, %201 : vector<8x256xf32>
    %203 = math.tanh %202 : vector<8x256xf32>
    %204 = arith.mulf %199, %203 : vector<8x256xf32>
    %205 = vector.extract_strided_slice %6 {offsets = [56, 0], sizes = [8, 1024], strides = [1, 1]} : vector<64x1024xf32> to vector<8x1024xf32>
    %cst_37 = arith.constant dense<0.000000e+00> : vector<8x1024xf32>
    %206 = tpu.matmul %204, %0, %cst_37 {dimension_numbers = #tpu.dot_dimension_numbers<[1], [0], [0], [1], [0, 0, 1, 1], [], []>} : vector<8x256xf32>, vector<256x1024xf32>, vector<8x1024xf32> -> vector<8x1024xf32>
    %207 = arith.addf %205, %206 : vector<8x1024xf32>
    %208 = vector.extract_strided_slice %207 {offsets = [0, 0], sizes = [8, 256], strides = [1, 1]} : vector<8x1024xf32> to vector<8x256xf32>
    %209 = arith.negf %208 : vector<8x256xf32>
    %210 = math.exp %209 : vector<8x256xf32>
    %cst_38 = arith.constant 1.000000e+00 : f32
    %211 = vector.broadcast %cst_38 : f32 to vector<8x256xf32>
    %212 = arith.addf %211, %210 : vector<8x256xf32>
    %213 = arith.divf %211, %212 : vector<8x256xf32>
    %214 = vector.extract_strided_slice %207 {offsets = [0, 256], sizes = [8, 256], strides = [1, 1]} : vector<8x1024xf32> to vector<8x256xf32>
    %215 = arith.negf %214 : vector<8x256xf32>
    %216 = math.exp %215 : vector<8x256xf32>
    %cst_39 = arith.constant 1.000000e+00 : f32
    %217 = vector.broadcast %cst_39 : f32 to vector<8x256xf32>
    %218 = arith.addf %217, %216 : vector<8x256xf32>
    %219 = arith.divf %217, %218 : vector<8x256xf32>
    %220 = vector.extract_strided_slice %207 {offsets = [0, 512], sizes = [8, 256], strides = [1, 1]} : vector<8x1024xf32> to vector<8x256xf32>
    %221 = math.tanh %220 : vector<8x256xf32>
    %222 = vector.extract_strided_slice %207 {offsets = [0, 768], sizes = [8, 256], strides = [1, 1]} : vector<8x1024xf32> to vector<8x256xf32>
    %223 = arith.negf %222 : vector<8x256xf32>
    %224 = math.exp %223 : vector<8x256xf32>
    %cst_40 = arith.constant 1.000000e+00 : f32
    %225 = vector.broadcast %cst_40 : f32 to vector<8x256xf32>
    %226 = arith.addf %225, %224 : vector<8x256xf32>
    %227 = arith.divf %225, %226 : vector<8x256xf32>
    %228 = arith.mulf %219, %202 : vector<8x256xf32>
    %229 = arith.mulf %213, %221 : vector<8x256xf32>
    %230 = arith.addf %228, %229 : vector<8x256xf32>
    %231 = math.tanh %230 : vector<8x256xf32>
    %232 = arith.mulf %227, %231 : vector<8x256xf32>
    %c0_41 = arith.constant 0 : index
    %c0_42 = arith.constant 0 : index
    %233 = vector.load %arg1[%c0_41, %c0_42] : memref<8x24xf32, #tpu.memory_space<vmem>>, vector<8x24xf32>
    %cst_43 = arith.constant 0.000000e+00 : f32
    %234 = vector.broadcast %cst_43 : f32 to vector<8x24xf32>
    %235 = arith.cmpf ogt, %233, %234 : vector<8x24xf32>
    %cst_44 = arith.constant 0.00999999977 : f32
    %236 = vector.broadcast %cst_44 : f32 to vector<8x24xf32>
    %237 = arith.mulf %236, %233 : vector<8x24xf32>
    %238 = arith.select %235, %233, %237 : vector<8x24xi1>, vector<8x24xf32>
    %c0_45 = arith.constant 0 : index
    %c0_46 = arith.constant 0 : index
    %239 = vector.load %arg5[%c0_45, %c0_46] : memref<256x32xf32, #tpu.memory_space<vmem>>, vector<256x32xf32>
    %cst_47 = arith.constant dense<0.000000e+00> : vector<8x32xf32>
    %240 = tpu.matmul %232, %239, %cst_47 {dimension_numbers = #tpu.dot_dimension_numbers<[1], [0], [0], [1], [0, 0, 1, 1], [], []>} : vector<8x256xf32>, vector<256x32xf32>, vector<8x32xf32> -> vector<8x32xf32>
    %c0_48 = arith.constant 0 : index
    %c0_49 = arith.constant 0 : index
    %241 = vector.load %arg6[%c0_48, %c0_49] : memref<24x32xf32, #tpu.memory_space<vmem>>, vector<24x32xf32>
    %cst_50 = arith.constant dense<0.000000e+00> : vector<8x32xf32>
    %242 = tpu.matmul %238, %241, %cst_50 {dimension_numbers = #tpu.dot_dimension_numbers<[1], [0], [0], [1], [0, 0, 1, 1], [], []>} : vector<8x24xf32>, vector<24x32xf32>, vector<8x32xf32> -> vector<8x32xf32>
    %243 = arith.addf %240, %242 : vector<8x32xf32>
    %c0_51 = arith.constant 0 : index
    %c0_52 = arith.constant 0 : index
    %244 = vector.load %arg7[%c0_51, %c0_52] : memref<1x32xf32, #tpu.memory_space<vmem>>, vector<1x32xf32>
    %245 = vector.broadcast %244 : vector<1x32xf32> to vector<8x32xf32>
    %246 = arith.addf %243, %245 : vector<8x32xf32>
    %cst_53 = arith.constant 0.000000e+00 : f32
    %247 = vector.broadcast %cst_53 : f32 to vector<8x32xf32>
    %248 = arith.cmpf ogt, %246, %247 : vector<8x32xf32>
    %cst_54 = arith.constant 0.00999999977 : f32
    %249 = vector.broadcast %cst_54 : f32 to vector<8x32xf32>
    %250 = arith.mulf %249, %246 : vector<8x32xf32>
    %251 = arith.select %248, %246, %250 : vector<8x32xi1>, vector<8x32xf32>
    %c0_55 = arith.constant 0 : index
    %c0_56 = arith.constant 0 : index
    %252 = vector.load %arg8[%c0_55, %c0_56] : memref<32x16xf32, #tpu.memory_space<vmem>>, vector<32x16xf32>
    %cst_57 = arith.constant dense<0.000000e+00> : vector<8x16xf32>
    %253 = tpu.matmul %251, %252, %cst_57 {dimension_numbers = #tpu.dot_dimension_numbers<[1], [0], [0], [1], [0, 0, 1, 1], [], []>} : vector<8x32xf32>, vector<32x16xf32>, vector<8x16xf32> -> vector<8x16xf32>
    %c0_58 = arith.constant 0 : index
    %c0_59 = arith.constant 0 : index
    %254 = vector.load %arg9[%c0_58, %c0_59] : memref<1x16xf32, #tpu.memory_space<vmem>>, vector<1x16xf32>
    %255 = vector.broadcast %254 : vector<1x16xf32> to vector<8x16xf32>
    %256 = arith.addf %253, %255 : vector<8x16xf32>
    %cst_60 = arith.constant 0.000000e+00 : f32
    %257 = vector.broadcast %cst_60 : f32 to vector<8x16xf32>
    %258 = arith.cmpf ogt, %256, %257 : vector<8x16xf32>
    %cst_61 = arith.constant 0.00999999977 : f32
    %259 = vector.broadcast %cst_61 : f32 to vector<8x16xf32>
    %260 = arith.mulf %259, %256 : vector<8x16xf32>
    %261 = arith.select %258, %256, %260 : vector<8x16xi1>, vector<8x16xf32>
    %c0_62 = arith.constant 0 : index
    %c0_63 = arith.constant 0 : index
    %262 = vector.load %arg10[%c0_62, %c0_63] : memref<16x2xf32, #tpu.memory_space<vmem>>, vector<16x2xf32>
    %cst_64 = arith.constant dense<0.000000e+00> : vector<8x2xf32>
    %263 = tpu.matmul %261, %262, %cst_64 {dimension_numbers = #tpu.dot_dimension_numbers<[1], [0], [0], [1], [0, 0, 1, 1], [], []>} : vector<8x16xf32>, vector<16x2xf32>, vector<8x2xf32> -> vector<8x2xf32>
    %c0_65 = arith.constant 0 : index
    %c0_66 = arith.constant 0 : index
    %264 = vector.load %arg11[%c0_65, %c0_66] : memref<1x2xf32, #tpu.memory_space<vmem>>, vector<1x2xf32>
    %265 = vector.broadcast %264 : vector<1x2xf32> to vector<8x2xf32>
    %266 = arith.addf %263, %265 : vector<8x2xf32>
    %c0_67 = arith.constant 0 : index
    %c0_68 = arith.constant 0 : index
    %267 = vector.load %arg12[%c0_67, %c0_68] : memref<8x2xf32, #tpu.memory_space<vmem>>, vector<8x2xf32>
    tpu.vector_store %arg12[%c0_67, %c0_68], %266 {strides = array<i32>} : memref<8x2xf32, #tpu.memory_space<vmem>>, vector<8x2xf32>,
    return
  }
}

</mosaic_0001>

<llo_original>
// kernel: tpu_custom_call.1
$region0: #{tpu_custom_call.1}
  #allocation0 [shape = 'u32[]', space=smem, size = 0x4, offset = 0x4, fixed_abs, tag = 'smem constant byte address 0x4 - core index']
  #allocation1 [shape = 'u32[72,128]{1,0:T(1,128)}', space=vmem, size = 0x9000, scoped, tag = 'internal scratch']
  %s0 = inlined_call_operand.vmem [shape: f32[64,24], index: 0, kind: input, shape index: {}]
  %s1 = inlined_call_operand.vmem [shape: f32[8,24], index: 1, kind: input, shape index: {}]
  %s2 = inlined_call_operand.vmem [shape: f32[24,1024], index: 2, kind: input, shape index: {}]
  %s3 = inlined_call_operand.hbm [shape: f32[256,1024], index: 3, kind: input, shape index: {}]
  %s4 = inlined_call_operand.vmem [shape: f32[1,1024], index: 4, kind: input, shape index: {}]
  %s5 = inlined_call_operand.vmem [shape: f32[256,32], index: 5, kind: input, shape index: {}]
  %s6 = inlined_call_operand.vmem [shape: f32[24,32], index: 6, kind: input, shape index: {}]
  %s7 = inlined_call_operand.vmem [shape: f32[1,32], index: 7, kind: input, shape index: {}]
  %s8 = inlined_call_operand.vmem [shape: f32[32,16], index: 8, kind: input, shape index: {}]
  %s9 = inlined_call_operand.vmem [shape: f32[1,16], index: 9, kind: input, shape index: {}]
  %s10 = inlined_call_operand.vmem [shape: f32[16,2], index: 10, kind: input, shape index: {}]
  %s11 = inlined_call_operand.vmem [shape: f32[1,2], index: 11, kind: input, shape index: {}]
  %s12 = inlined_call_operand.vmem [shape: f32[8,2], index: 12, kind: output, shape index: {}]
  %s13 = sld [smem:[#allocation0]]
  $region62: #{tpu_custom_call.1} parent=0
    _
  %s15 = ssub.s32 1, %s13
  %s16 = scalar_select 0, %s15, %s13
  $region1: #{tpu_custom_call.1} parent=0
    #allocation2 [shape = 'u8[1048576]{0}', space=vmem, size = 0x100000, scoped, tag = 'input window, operand 3, single buffered']
    #allocation3 [shape = 's32[1]{0}', space=sflag, size = 0x4, scoped, tag = 'scoped memory for tpu_custom_call.1']
    %17 = vsyncpa [#allocation3], 0
    // Predicated region
    $region2: #{tpu_custom_call.1} parent=1 // pred_check
      _
    $region3: #{tpu_custom_call.1} parent=1 // pred_check_branch
      %19 = sbr.rel (0) target = $region5
    $region4: #{tpu_custom_call.1} parent=1 // pred_region
      _
    $region5: #{tpu_custom_call.1} parent=1 // pred_fallthru
      _
    // Predicated region
    $region6: #{tpu_custom_call.1} parent=1 // pred_check
      _
    $region7: #{tpu_custom_call.1} parent=1 // pred_check_branch
      %21 = sbr.rel (0) target = $region9
    $region8: #{tpu_custom_call.1} parent=1 // pred_region
      _
    $region9: #{tpu_custom_call.1} parent=1 // pred_fallthru
      _
    // Predicated region
    $region10: #{tpu_custom_call.1} parent=1 // pred_check
      _
    $region11: #{tpu_custom_call.1} parent=1 // pred_check_branch
      %23 = sbr.rel (0) target = $region13
    $region12: #{tpu_custom_call.1} parent=1 // pred_region
      _
    $region13: #{tpu_custom_call.1} parent=1 // pred_fallthru
      _
    // Predicated region
    $region14: #{tpu_custom_call.1} parent=1 // pred_check
      _
    $region15: #{tpu_custom_call.1} parent=1 // pred_check_branch
      %25 = sbr.rel (0) target = $region17
    $region16: #{tpu_custom_call.1} parent=1 // pred_region
      %27 = vsyncadd [#allocation3], 0
      %s28 = sshll.u32 %s3, 4
      %s29 = int_to_ptr.hbm [resolvable:$true] %s28
      %s30 = sshll.u32 [#allocation2], 4
      %s31 = int_to_ptr.vmem [resolvable:$true] %s30
      %36 = dma.hbm_to_vmem [thread:$0]  %s29, 32768, %s31, [#allocation3], 1024, 1024, 64
    $region17: #{tpu_custom_call.1} parent=1 // pred_fallthru
      _
    // Predicated region
    $region18: #{tpu_custom_call.1} parent=1 // pred_check
      _
    $region19: #{tpu_custom_call.1} parent=1 // pred_check_branch
      %38 = sbr.rel (0) target = $region21
    $region20: #{tpu_custom_call.1} parent=1 // pred_region
      _
    $region21: #{tpu_custom_call.1} parent=1 // pred_fallthru
      _
    // Predicated region
    $region22: #{tpu_custom_call.1} parent=1 // pred_check
      _
    $region23: #{tpu_custom_call.1} parent=1 // pred_check_branch
      %40 = sbr.rel (0) target = $region25
    $region24: #{tpu_custom_call.1} parent=1 // pred_region
      _
    $region25: #{tpu_custom_call.1} parent=1 // pred_fallthru
      _
    // Predicated region
    $region26: #{tpu_custom_call.1} parent=1 // pred_check
      _
    $region27: #{tpu_custom_call.1} parent=1 // pred_check_branch
      %42 = sbr.rel (0) target = $region29
    $region28: #{tpu_custom_call.1} parent=1 // pred_region
      _
    $region29: #{tpu_custom_call.1} parent=1 // pred_fallthru
      _
    // Predicated region
    $region30: #{tpu_custom_call.1} parent=1 // pred_check
      _
    $region31: #{tpu_custom_call.1} parent=1 // pred_check_branch
      %44 = sbr.rel (0) target = $region33
    $region32: #{tpu_custom_call.1} parent=1 // pred_region
      _
    $region33: #{tpu_custom_call.1} parent=1 // pred_fallthru
      _
    // Predicated region
    $region34: #{tpu_custom_call.1} parent=1 // pred_check
      _
    $region35: #{tpu_custom_call.1} parent=1 // pred_check_branch
      %46 = sbr.rel (0) target = $region37
    $region36: #{tpu_custom_call.1} parent=1 // pred_region
      _
    $region37: #{tpu_custom_call.1} parent=1 // pred_fallthru
      _
    // Predicated region
    $region38: #{tpu_custom_call.1} parent=1 // pred_check
      _
    $region39: #{tpu_custom_call.1} parent=1 // pred_check_branch
      %48 = sbr.rel (0) target = $region41
    $region40: #{tpu_custom_call.1} parent=1 // pred_region
      _
    $region41: #{tpu_custom_call.1} parent=1 // pred_fallthru
      _
    // Predicated region
    $region42: #{tpu_custom_call.1} parent=1 // pred_check
      _
    $region43: #{tpu_custom_call.1} parent=1 // pred_check_branch
      %50 = sbr.rel (0) target = $region45
    $region44: #{tpu_custom_call.1} parent=1 // pred_region
      _
    $region45: #{tpu_custom_call.1} parent=1 // pred_fallthru
      _
    // Predicated region
    $region46: #{tpu_custom_call.1} parent=1 // pred_check
      _
    $region47: #{tpu_custom_call.1} parent=1 // pred_check_branch
      %52 = sbr.rel (0) target = $region49
    $region48: #{tpu_custom_call.1} parent=1 // pred_region
      _
    $region49: #{tpu_custom_call.1} parent=1 // pred_fallthru
      _
    // Predicated region
    $region50: #{tpu_custom_call.1} parent=1 // pred_check
      _
    $region51: #{tpu_custom_call.1} parent=1 // pred_check_branch
      %54 = sbr.rel (0) target = $region53
    $region52: #{tpu_custom_call.1} parent=1 // pred_region
      %56 = dma.done [#allocation3], 32768
    $region53: #{tpu_custom_call.1} parent=1 // pred_fallthru
      _
    %v57 = vld [vmem:[#allocation2] sm:$0xff]
    %v58 = vld [vmem:[#allocation2 + $0x8] sm:$0xff]
    %v59 = vld [vmem:[#allocation2 + $0x10] sm:$0xff]
    %v60 = vld [vmem:[#allocation2 + $0x18] sm:$0xff]
    %v61 = vld [vmem:[#allocation2 + $0x20] sm:$0xff]
    %v62 = vld [vmem:[#allocation2 + $0x28] sm:$0xff]
    %v63 = vld [vmem:[#allocation2 + $0x30] sm:$0xff]
    %v64 = vld [vmem:[#allocation2 + $0x38] sm:$0xff]
    %v65 = vld [vmem:[#allocation2 + $0x40] sm:$0xff]
    %v66 = vld [vmem:[#allocation2 + $0x48] sm:$0xff]
    %v67 = vld [vmem:[#allocation2 + $0x50] sm:$0xff]
    %v68 = vld [vmem:[#allocation2 + $0x58] sm:$0xff]
    %v69 = vld [vmem:[#allocation2 + $0x60] sm:$0xff]
    %v70 = vld [vmem:[#allocation2 + $0x68] sm:$0xff]
    %v71 = vld [vmem:[#allocation2 + $0x70] sm:$0xff]
    %v72 = vld [vmem:[#allocation2 + $0x78] sm:$0xff]
    %v73 = vld [vmem:[#allocation2 + $0x80] sm:$0xff]
    %v74 = vld [vmem:[#allocation2 + $0x88] sm:$0xff]
    %v75 = vld [vmem:[#allocation2 + $0x90] sm:$0xff]
    %v76 = vld [vmem:[#allocation2 + $0x98] sm:$0xff]
    %v77 = vld [vmem:[#allocation2 + $0xa0] sm:$0xff]
    %v78 = vld [vmem:[#allocation2 + $0xa8] sm:$0xff]
    %v79 = vld [vmem:[#allocation2 + $0xb0] sm:$0xff]
    %v80 = vld [vmem:[#allocation2 + $0xb8] sm:$0xff]
    %v81 = vld [vmem:[#allocation2 + $0xc0] sm:$0xff]
    %v82 = vld [vmem:[#allocation2 + $0xc8] sm:$0xff]
    %v83 = vld [vmem:[#allocation2 + $0xd0] sm:$0xff]
    %v84 = vld [vmem:[#allocation2 + $0xd8] sm:$0xff]
    %v85 = vld [vmem:[#allocation2 + $0xe0] sm:$0xff]
    %v86 = vld [vmem:[#allocation2 + $0xe8] sm:$0xff]
    %v87 = vld [vmem:[#allocation2 + $0xf0] sm:$0xff]
    %v88 = vld [vmem:[#allocation2 + $0xf8] sm:$0xff]
    %v89 = vld [vmem:[#allocation2 + $0x100] sm:$0xff]
    %v90 = vld [vmem:[#allocation2 + $0x108] sm:$0xff]
    %v91 = vld [vmem:[#allocation2 + $0x110] sm:$0xff]
    %v92 = vld [vmem:[#allocation2 + $0x118] sm:$0xff]
    %v93 = vld [vmem:[#allocation2 + $0x120] sm:$0xff]
    %v94 = vld [vmem:[#allocation2 + $0x128] sm:$0xff]
    %v95 = vld [vmem:[#allocation2 + $0x130] sm:$0xff]
    %v96 = vld [vmem:[#allocation2 + $0x138] sm:$0xff]
    %v97 = vld [vmem:[#allocation2 + $0x140] sm:$0xff]
    %v98 = vld [vmem:[#allocation2 + $0x148] sm:$0xff]
    %v99 = vld [vmem:[#allocation2 + $0x150] sm:$0xff]
    %v100 = vld [vmem:[#allocation2 + $0x158] sm:$0xff]
    %v101 = vld [vmem:[#allocation2 + $0x160] sm:$0xff]
    %v102 = vld [vmem:[#allocation2 + $0x168] sm:$0xff]
    %v103 = vld [vmem:[#allocation2 + $0x170] sm:$0xff]
    %v104 = vld [vmem:[#allocation2 + $0x178] sm:$0xff]
    %v105 = vld [vmem:[#allocation2 + $0x180] sm:$0xff]
    %v106 = vld [vmem:[#allocation2 + $0x188] sm:$0xff]
    %v107 = vld [vmem:[#allocation2 + $0x190] sm:$0xff]
    %v108 = vld [vmem:[#allocation2 + $0x198] sm:$0xff]
    %v109 = vld [vmem:[#allocation2 + $0x1a0] sm:$0xff]
    %v110 = vld [vmem:[#allocation2 + $0x1a8] sm:$0xff]
    %v111 = vld [vmem:[#allocation2 + $0x1b0] sm:$0xff]
    %v112 = vld [vmem:[#allocation2 + $0x1b8] sm:$0xff]
    %v113 = vld [vmem:[#allocation2 + $0x1c0] sm:$0xff]
    %v114 = vld [vmem:[#allocation2 + $0x1c8] sm:$0xff]
    %v115 = vld [vmem:[#allocation2 + $0x1d0] sm:$0xff]
    %v116 = vld [vmem:[#allocation2 + $0x1d8] sm:$0xff]
    %v117 = vld [vmem:[#allocation2 + $0x1e0] sm:$0xff]
    %v118 = vld [vmem:[#allocation2 + $0x1e8] sm:$0xff]
    %v119 = vld [vmem:[#allocation2 + $0x1f0] sm:$0xff]
    %v120 = vld [vmem:[#allocation2 + $0x1f8] sm:$0xff]
    %v121 = vld [vmem:[#allocation2 + $0x200] sm:$0xff]
    %v122 = vld [vmem:[#allocation2 + $0x208] sm:$0xff]
    %v123 = vld [vmem:[#allocation2 + $0x210] sm:$0xff]
    %v124 = vld [vmem:[#allocation2 + $0x218] sm:$0xff]
    %v125 = vld [vmem:[#allocation2 + $0x220] sm:$0xff]
    %v126 = vld [vmem:[#allocation2 + $0x228] sm:$0xff]
    %v127 = vld [vmem:[#allocation2 + $0x230] sm:$0xff]
    %v128 = vld [vmem:[#allocation2 + $0x238] sm:$0xff]
    %v129 = vld [vmem:[#allocation2 + $0x240] sm:$0xff]
    %v130 = vld [vmem:[#allocation2 + $0x248] sm:$0xff]
    %v131 = vld [vmem:[#allocation2 + $0x250] sm:$0xff]
    %v132 = vld [vmem:[#allocation2 + $0x258] sm:$0xff]
    %v133 = vld [vmem:[#allocation2 + $0x260] sm:$0xff]
    %v134 = vld [vmem:[#allocation2 + $0x268] sm:$0xff]
    %v135 = vld [vmem:[#allocation2 + $0x270] sm:$0xff]
    %v136 = vld [vmem:[#allocation2 + $0x278] sm:$0xff]
    %v137 = vld [vmem:[#allocation2 + $0x280] sm:$0xff]
    %v138 = vld [vmem:[#allocation2 + $0x288] sm:$0xff]
    %v139 = vld [vmem:[#allocation2 + $0x290] sm:$0xff]
    %v140 = vld [vmem:[#allocation2 + $0x298] sm:$0xff]
    %v141 = vld [vmem:[#allocation2 + $0x2a0] sm:$0xff]
    %v142 = vld [vmem:[#allocation2 + $0x2a8] sm:$0xff]
    %v143 = vld [vmem:[#allocation2 + $0x2b0] sm:$0xff]
    %v144 = vld [vmem:[#allocation2 + $0x2b8] sm:$0xff]
    %v145 = vld [vmem:[#allocation2 + $0x2c0] sm:$0xff]
    %v146 = vld [vmem:[#allocation2 + $0x2c8] sm:$0xff]
    %v147 = vld [vmem:[#allocation2 + $0x2d0] sm:$0xff]
    %v148 = vld [vmem:[#allocation2 + $0x2d8] sm:$0xff]
    %v149 = vld [vmem:[#allocation2 + $0x2e0] sm:$0xff]
    %v150 = vld [vmem:[#allocation2 + $0x2e8] sm:$0xff]
    %v151 = vld [vmem:[#allocation2 + $0x2f0] sm:$0xff]
    %v152 = vld [vmem:[#allocation2 + $0x2f8] sm:$0xff]
    %v153 = vld [vmem:[#allocation2 + $0x300] sm:$0xff]
    %v154 = vld [vmem:[#allocation2 + $0x308] sm:$0xff]
    %v155 = vld [vmem:[#allocation2 + $0x310] sm:$0xff]
    %v156 = vld [vmem:[#allocation2 + $0x318] sm:$0xff]
    %v157 = vld [vmem:[#allocation2 + $0x320] sm:$0xff]
    %v158 = vld [vmem:[#allocation2 + $0x328] sm:$0xff]
    %v159 = vld [vmem:[#allocation2 + $0x330] sm:$0xff]
    %v160 = vld [vmem:[#allocation2 + $0x338] sm:$0xff]
    %v161 = vld [vmem:[#allocation2 + $0x340] sm:$0xff]
    %v162 = vld [vmem:[#allocation2 + $0x348] sm:$0xff]
    %v163 = vld [vmem:[#allocation2 + $0x350] sm:$0xff]
    %v164 = vld [vmem:[#allocation2 + $0x358] sm:$0xff]
    %v165 = vld [vmem:[#allocation2 + $0x360] sm:$0xff]
    %v166 = vld [vmem:[#allocation2 + $0x368] sm:$0xff]
    %v167 = vld [vmem:[#allocation2 + $0x370] sm:$0xff]
    %v168 = vld [vmem:[#allocation2 + $0x378] sm:$0xff]
    %v169 = vld [vmem:[#allocation2 + $0x380] sm:$0xff]
    %v170 = vld [vmem:[#allocation2 + $0x388] sm:$0xff]
    %v171 = vld [vmem:[#allocation2 + $0x390] sm:$0xff]
    %v172 = vld [vmem:[#allocation2 + $0x398] sm:$0xff]
    %v173 = vld [vmem:[#allocation2 + $0x3a0] sm:$0xff]
    %v174 = vld [vmem:[#allocation2 + $0x3a8] sm:$0xff]
    %v175 = vld [vmem:[#allocation2 + $0x3b0] sm:$0xff]
    %v176 = vld [vmem:[#allocation2 + $0x3b8] sm:$0xff]
    %v177 = vld [vmem:[#allocation2 + $0x3c0] sm:$0xff]
    %v178 = vld [vmem:[#allocation2 + $0x3c8] sm:$0xff]
    %v179 = vld [vmem:[#allocation2 + $0x3d0] sm:$0xff]
    %v180 = vld [vmem:[#allocation2 + $0x3d8] sm:$0xff]
    %v181 = vld [vmem:[#allocation2 + $0x3e0] sm:$0xff]
    %v182 = vld [vmem:[#allocation2 + $0x3e8] sm:$0xff]
    %v183 = vld [vmem:[#allocation2 + $0x3f0] sm:$0xff]
    %v184 = vld [vmem:[#allocation2 + $0x3f8] sm:$0xff]
    %v185 = vld [vmem:[#allocation2 + $0x400] sm:$0xff]
    %v186 = vld [vmem:[#allocation2 + $0x408] sm:$0xff]
    %v187 = vld [vmem:[#allocation2 + $0x410] sm:$0xff]
    %v188 = vld [vmem:[#allocation2 + $0x418] sm:$0xff]
    %v189 = vld [vmem:[#allocation2 + $0x420] sm:$0xff]
    %v190 = vld [vmem:[#allocation2 + $0x428] sm:$0xff]
    %v191 = vld [vmem:[#allocation2 + $0x430] sm:$0xff]
    %v192 = vld [vmem:[#allocation2 + $0x438] sm:$0xff]
    %v193 = vld [vmem:[#allocation2 + $0x440] sm:$0xff]
    %v194 = vld [vmem:[#allocation2 + $0x448] sm:$0xff]
    %v195 = vld [vmem:[#allocation2 + $0x450] sm:$0xff]
    %v196 = vld [vmem:[#allocation2 + $0x458] sm:$0xff]
    %v197 = vld [vmem:[#allocation2 + $0x460] sm:$0xff]
    %v198 = vld [vmem:[#allocation2 + $0x468] sm:$0xff]
    %v199 = vld [vmem:[#allocation2 + $0x470] sm:$0xff]
    %v200 = vld [vmem:[#allocation2 + $0x478] sm:$0xff]
    %v201 = vld [vmem:[#allocation2 + $0x480] sm:$0xff]
    %v202 = vld [vmem:[#allocation2 + $0x488] sm:$0xff]
    %v203 = vld [vmem:[#allocation2 + $0x490] sm:$0xff]
    %v204 = vld [vmem:[#allocation2 + $0x498] sm:$0xff]
    %v205 = vld [vmem:[#allocation2 + $0x4a0] sm:$0xff]
    %v206 = vld [vmem:[#allocation2 + $0x4a8] sm:$0xff]
    %v207 = vld [vmem:[#allocation2 + $0x4b0] sm:$0xff]
    %v208 = vld [vmem:[#allocation2 + $0x4b8] sm:$0xff]
    %v209 = vld [vmem:[#allocation2 + $0x4c0] sm:$0xff]
    %v210 = vld [vmem:[#allocation2 + $0x4c8] sm:$0xff]
    %v211 = vld [vmem:[#allocation2 + $0x4d0] sm:$0xff]
    %v212 = vld [vmem:[#allocation2 + $0x4d8] sm:$0xff]
    %v213 = vld [vmem:[#allocation2 + $0x4e0] sm:$0xff]
    %v214 = vld [vmem:[#allocation2 + $0x4e8] sm:$0xff]
    %v215 = vld [vmem:[#allocation2 + $0x4f0] sm:$0xff]
    %v216 = vld [vmem:[#allocation2 + $0x4f8] sm:$0xff]
    %v217 = vld [vmem:[#allocation2 + $0x500] sm:$0xff]
    %v218 = vld [vmem:[#allocation2 + $0x508] sm:$0xff]
    %v219 = vld [vmem:[#allocation2 + $0x510] sm:$0xff]
    %v220 = vld [vmem:[#allocation2 + $0x518] sm:$0xff]
    %v221 = vld [vmem:[#allocation2 + $0x520] sm:$0xff]
    %v222 = vld [vmem:[#allocation2 + $0x528] sm:$0xff]
    %v223 = vld [vmem:[#allocation2 + $0x530] sm:$0xff]
    %v224 = vld [vmem:[#allocation2 + $0x538] sm:$0xff]
    %v225 = vld [vmem:[#allocation2 + $0x540] sm:$0xff]
    %v226 = vld [vmem:[#allocation2 + $0x548] sm:$0xff]
    %v227 = vld [vmem:[#allocation2 + $0x550] sm:$0xff]
    %v228 = vld [vmem:[#allocation2 + $0x558] sm:$0xff]
    %v229 = vld [vmem:[#allocation2 + $0x560] sm:$0xff]
    %v230 = vld [vmem:[#allocation2 + $0x568] sm:$0xff]
    %v231 = vld [vmem:[#allocation2 + $0x570] sm:$0xff]
    %v232 = vld [vmem:[#allocation2 + $0x578] sm:$0xff]
    %v233 = vld [vmem:[#allocation2 + $0x580] sm:$0xff]
    %v234 = vld [vmem:[#allocation2 + $0x588] sm:$0xff]
    %v235 = vld [vmem:[#allocation2 + $0x590] sm:$0xff]
    %v236 = vld [vmem:[#allocation2 + $0x598] sm:$0xff]
    %v237 = vld [vmem:[#allocation2 + $0x5a0] sm:$0xff]
    %v238 = vld [vmem:[#allocation2 + $0x5a8] sm:$0xff]
    %v239 = vld [vmem:[#allocation2 + $0x5b0] sm:$0xff]
    %v240 = vld [vmem:[#allocation2 + $0x5b8] sm:$0xff]
    %v241 = vld [vmem:[#allocation2 + $0x5c0] sm:$0xff]
    %v242 = vld [vmem:[#allocation2 + $0x5c8] sm:$0xff]
    %v243 = vld [vmem:[#allocation2 + $0x5d0] sm:$0xff]
    %v244 = vld [vmem:[#allocation2 + $0x5d8] sm:$0xff]
    %v245 = vld [vmem:[#allocation2 + $0x5e0] sm:$0xff]
    %v246 = vld [vmem:[#allocation2 + $0x5e8] sm:$0xff]
    %v247 = vld [vmem:[#allocation2 + $0x5f0] sm:$0xff]
    %v248 = vld [vmem:[#allocation2 + $0x5f8] sm:$0xff]
    %v249 = vld [vmem:[#allocation2 + $0x600] sm:$0xff]
    %v250 = vld [vmem:[#allocation2 + $0x608] sm:$0xff]
    %v251 = vld [vmem:[#allocation2 + $0x610] sm:$0xff]
    %v252 = vld [vmem:[#allocation2 + $0x618] sm:$0xff]
    %v253 = vld [vmem:[#allocation2 + $0x620] sm:$0xff]
    %v254 = vld [vmem:[#allocation2 + $0x628] sm:$0xff]
    %v255 = vld [vmem:[#allocation2 + $0x630] sm:$0xff]
    %v256 = vld [vmem:[#allocation2 + $0x638] sm:$0xff]
    %v257 = vld [vmem:[#allocation2 + $0x640] sm:$0xff]
    %v258 = vld [vmem:[#allocation2 + $0x648] sm:$0xff]
    %v259 = vld [vmem:[#allocation2 + $0x650] sm:$0xff]
    %v260 = vld [vmem:[#allocation2 + $0x658] sm:$0xff]
    %v261 = vld [vmem:[#allocation2 + $0x660] sm:$0xff]
    %v262 = vld [vmem:[#allocation2 + $0x668] sm:$0xff]
    %v263 = vld [vmem:[#allocation2 + $0x670] sm:$0xff]
    %v264 = vld [vmem:[#allocation2 + $0x678] sm:$0xff]
    %v265 = vld [vmem:[#allocation2 + $0x680] sm:$0xff]
    %v266 = vld [vmem:[#allocation2 + $0x688] sm:$0xff]
    %v267 = vld [vmem:[#allocation2 + $0x690] sm:$0xff]
    %v268 = vld [vmem:[#allocation2 + $0x698] sm:$0xff]
    %v269 = vld [vmem:[#allocation2 + $0x6a0] sm:$0xff]
    %v270 = vld [vmem:[#allocation2 + $0x6a8] sm:$0xff]
    %v271 = vld [vmem:[#allocation2 + $0x6b0] sm:$0xff]
    %v272 = vld [vmem:[#allocation2 + $0x6b8] sm:$0xff]
    %v273 = vld [vmem:[#allocation2 + $0x6c0] sm:$0xff]
    %v274 = vld [vmem:[#allocation2 + $0x6c8] sm:$0xff]
    %v275 = vld [vmem:[#allocation2 + $0x6d0] sm:$0xff]
    %v276 = vld [vmem:[#allocation2 + $0x6d8] sm:$0xff]
    %v277 = vld [vmem:[#allocation2 + $0x6e0] sm:$0xff]
    %v278 = vld [vmem:[#allocation2 + $0x6e8] sm:$0xff]
    %v279 = vld [vmem:[#allocation2 + $0x6f0] sm:$0xff]
    %v280 = vld [vmem:[#allocation2 + $0x6f8] sm:$0xff]
    %v281 = vld [vmem:[#allocation2 + $0x700] sm:$0xff]
    %v282 = vld [vmem:[#allocation2 + $0x708] sm:$0xff]
    %v283 = vld [vmem:[#allocation2 + $0x710] sm:$0xff]
    %v284 = vld [vmem:[#allocation2 + $0x718] sm:$0xff]
    %v285 = vld [vmem:[#allocation2 + $0x720] sm:$0xff]
    %v286 = vld [vmem:[#allocation2 + $0x728] sm:$0xff]
    %v287 = vld [vmem:[#allocation2 + $0x730] sm:$0xff]
    %v288 = vld [vmem:[#allocation2 + $0x738] sm:$0xff]
    %v289 = vld [vmem:[#allocation2 + $0x740] sm:$0xff]
    %v290 = vld [vmem:[#allocation2 + $0x748] sm:$0xff]
    %v291 = vld [vmem:[#allocation2 + $0x750] sm:$0xff]
    %v292 = vld [vmem:[#allocation2 + $0x758] sm:$0xff]
    %v293 = vld [vmem:[#allocation2 + $0x760] sm:$0xff]
    %v294 = vld [vmem:[#allocation2 + $0x768] sm:$0xff]
    %v295 = vld [vmem:[#allocation2 + $0x770] sm:$0xff]
    %v296 = vld [vmem:[#allocation2 + $0x778] sm:$0xff]
    %v297 = vld [vmem:[#allocation2 + $0x780] sm:$0xff]
    %v298 = vld [vmem:[#allocation2 + $0x788] sm:$0xff]
    %v299 = vld [vmem:[#allocation2 + $0x790] sm:$0xff]
    %v300 = vld [vmem:[#allocation2 + $0x798] sm:$0xff]
    %v301 = vld [vmem:[#allocation2 + $0x7a0] sm:$0xff]
    %v302 = vld [vmem:[#allocation2 + $0x7a8] sm:$0xff]
    %v303 = vld [vmem:[#allocation2 + $0x7b0] sm:$0xff]
    %v304 = vld [vmem:[#allocation2 + $0x7b8] sm:$0xff]
    %v305 = vld [vmem:[#allocation2 + $0x7c0] sm:$0xff]
    %v306 = vld [vmem:[#allocation2 + $0x7c8] sm:$0xff]
    %v307 = vld [vmem:[#allocation2 + $0x7d0] sm:$0xff]
    %v308 = vld [vmem:[#allocation2 + $0x7d8] sm:$0xff]
    %v309 = vld [vmem:[#allocation2 + $0x7e0] sm:$0xff]
    %v310 = vld [vmem:[#allocation2 + $0x7e8] sm:$0xff]
    %v311 = vld [vmem:[#allocation2 + $0x7f0] sm:$0xff]
    %v312 = vld [vmem:[#allocation2 + $0x7f8] sm:$0xff]
    %v313 = vld [vmem:[%s0] sm:$0xff]
    %v314 = vld [vmem:[%s0 + $0x8] sm:$0xff]
    %v315 = vld [vmem:[%s0 + $0x10] sm:$0xff]
    %v316 = vld [vmem:[%s0 + $0x18] sm:$0xff]
    %v317 = vld [vmem:[%s0 + $0x20] sm:$0xff]
    %v318 = vld [vmem:[%s0 + $0x28] sm:$0xff]
    %v319 = vld [vmem:[%s0 + $0x30] sm:$0xff]
    %v320 = vld [vmem:[%s0 + $0x38] sm:$0xff]
    %v321 = vld [vmem:[%s2] sm:$0xff]
    %v322 = vld [vmem:[%s2 + $0x8] sm:$0xff]
    %v323 = vld [vmem:[%s2 + $0x10] sm:$0xff]
    %v324 = vld [vmem:[%s2 + $0x18] sm:$0xff]
    %v325 = vld [vmem:[%s2 + $0x20] sm:$0xff]
    %v326 = vld [vmem:[%s2 + $0x28] sm:$0xff]
    %v327 = vld [vmem:[%s2 + $0x30] sm:$0xff]
    %v328 = vld [vmem:[%s2 + $0x38] sm:$0xff]
    %v329 = vld [vmem:[%s2 + $0x40] sm:$0xff]
    %v330 = vld [vmem:[%s2 + $0x48] sm:$0xff]
    %v331 = vld [vmem:[%s2 + $0x50] sm:$0xff]
    %v332 = vld [vmem:[%s2 + $0x58] sm:$0xff]
    %v333 = vld [vmem:[%s2 + $0x60] sm:$0xff]
    %v334 = vld [vmem:[%s2 + $0x68] sm:$0xff]
    %v335 = vld [vmem:[%s2 + $0x70] sm:$0xff]
    %v336 = vld [vmem:[%s2 + $0x78] sm:$0xff]
    %v337 = vld [vmem:[%s2 + $0x80] sm:$0xff]
    %v338 = vld [vmem:[%s2 + $0x88] sm:$0xff]
    %v339 = vld [vmem:[%s2 + $0x90] sm:$0xff]
    %v340 = vld [vmem:[%s2 + $0x98] sm:$0xff]
    %v341 = vld [vmem:[%s2 + $0xa0] sm:$0xff]
    %v342 = vld [vmem:[%s2 + $0xa8] sm:$0xff]
    %v343 = vld [vmem:[%s2 + $0xb0] sm:$0xff]
    %v344 = vld [vmem:[%s2 + $0xb8] sm:$0xff]
    %v345 = vld [vmem:[%s4] sm:$0xff]
    %v347 = vperm.slane %v345, 0
    %v348 = vperm.slane %v345, 1
    %v349 = vperm.slane %v345, 2
    %v350 = vperm.slane %v345, 3
    %v351 = vperm.slane %v345, 4
    %v352 = vperm.slane %v345, 5
    %v353 = vperm.slane %v345, 6
    %v354 = vperm.slane %v345, 7
    %vm363 = vcmask 195584
    %v365 = vsel %vm363, %v313, 0
    %v368 = vsel %vm363, %v314, 0
    %v371 = vsel %vm363, %v315, 0
    %v374 = vsel %vm363, %v316, 0
    %v377 = vsel %vm363, %v317, 0
    %v380 = vsel %vm363, %v318, 0
    %v383 = vsel %vm363, %v319, 0
    %v386 = vsel %vm363, %v320, 0
    %388 = vmatpush.msra.mxu0 0.0
    %389 = vmatpush.msra.mxu0 0.0
    %390 = vmatpush.msra.mxu0 0.0
    %391 = vmatpush.msra.mxu0 0.0
    %392 = vmatpush.msra.mxu0 0.0
    %393 = vmatpush.msra.mxu0 0.0
    %394 = vmatpush.msra.mxu0 0.0
    %395 = vmatpush.msra.mxu0 0.0
    %396 = vmatpush.msra.mxu0 0.0
    %397 = vmatpush.msra.mxu0 0.0
    %398 = vmatpush.msra.mxu0 0.0
    %399 = vmatpush.msra.mxu0 0.0
    %400 = vmatpush.msra.mxu0 0.0
    %401 = vmatpush.msra.mxu0 %v337
    %402 = vmatpush.msra.mxu0 %v329
    %403 = vmatpush.msra.mxu0 %v321
    %404 = vmatmul.f32.gmra.mxu0 %v365
    %v405 = vpop.f32.mrf.mxu0
    %v406 = vadd.f32 %v347, %v405
    %407 = vmatmul.f32.gmra.mxu0 %v368
    %v408 = vpop.f32.mrf.mxu0
    %v409 = vadd.f32 %v347, %v408
    %410 = vmatmul.f32.gmra.mxu0 %v371
    %v411 = vpop.f32.mrf.mxu0
    %v412 = vadd.f32 %v347, %v411
    %413 = vmatmul.f32.gmra.mxu0 %v374
    %v414 = vpop.f32.mrf.mxu0
    %v415 = vadd.f32 %v347, %v414
    %416 = vmatmul.f32.gmra.mxu0 %v377
    %v417 = vpop.f32.mrf.mxu0
    %v418 = vadd.f32 %v347, %v417
    %419 = vmatmul.f32.gmra.mxu0 %v380
    %v420 = vpop.f32.mrf.mxu0
    %v421 = vadd.f32 %v347, %v420
    %422 = vmatmul.f32.gmra.mxu0 %v383
    %v423 = vpop.f32.mrf.mxu0
    %v424 = vadd.f32 %v347, %v423
    %425 = vmatmul.f32.gmra.mxu0 %v386
    %v426 = vpop.f32.mrf.mxu0
    %v427 = vadd.f32 %v347, %v426
    %428 = vdwg.mxu0
    %429 = vmatpush.msra.mxu0 0.0
    %430 = vmatpush.msra.mxu0 0.0
    %431 = vmatpush.msra.mxu0 0.0
    %432 = vmatpush.msra.mxu0 0.0
    %433 = vmatpush.msra.mxu0 0.0
    %434 = vmatpush.msra.mxu0 0.0
    %435 = vmatpush.msra.mxu0 0.0
    %436 = vmatpush.msra.mxu0 0.0
    %437 = vmatpush.msra.mxu0 0.0
    %438 = vmatpush.msra.mxu0 0.0
    %439 = vmatpush.msra.mxu0 0.0
    %440 = vmatpush.msra.mxu0 0.0
    %441 = vmatpush.msra.mxu0 0.0
    %442 = vmatpush.msra.mxu0 %v338
    %443 = vmatpush.msra.mxu0 %v330
    %444 = vmatpush.msra.mxu0 %v322
    %445 = vmatmul.f32.gmra.mxu0 %v365
    %v446 = vpop.f32.mrf.mxu0
    %v447 = vadd.f32 %v348, %v446
    %448 = vmatmul.f32.gmra.mxu0 %v368
    %v449 = vpop.f32.mrf.mxu0
    %v450 = vadd.f32 %v348, %v449
    %451 = vmatmul.f32.gmra.mxu0 %v371
    %v452 = vpop.f32.mrf.mxu0
    %v453 = vadd.f32 %v348, %v452
    %454 = vmatmul.f32.gmra.mxu0 %v374
    %v455 = vpop.f32.mrf.mxu0
    %v456 = vadd.f32 %v348, %v455
    %457 = vmatmul.f32.gmra.mxu0 %v377
    %v458 = vpop.f32.mrf.mxu0
    %v459 = vadd.f32 %v348, %v458
    %460 = vmatmul.f32.gmra.mxu0 %v380
    %v461 = vpop.f32.mrf.mxu0
    %v462 = vadd.f32 %v348, %v461
    %463 = vmatmul.f32.gmra.mxu0 %v383
    %v464 = vpop.f32.mrf.mxu0
    %v465 = vadd.f32 %v348, %v464
    %466 = vmatmul.f32.gmra.mxu0 %v386
    %v467 = vpop.f32.mrf.mxu0
    %v468 = vadd.f32 %v348, %v467
    %469 = vdwg.mxu0
    %470 = vmatpush.msra.mxu0 0.0
    %471 = vmatpush.msra.mxu0 0.0
    %472 = vmatpush.msra.mxu0 0.0
    %473 = vmatpush.msra.mxu0 0.0
    %474 = vmatpush.msra.mxu0 0.0
    %475 = vmatpush.msra.mxu0 0.0
    %476 = vmatpush.msra.mxu0 0.0
    %477 = vmatpush.msra.mxu0 0.0
    %478 = vmatpush.msra.mxu0 0.0
    %479 = vmatpush.msra.mxu0 0.0
    %480 = vmatpush.msra.mxu0 0.0
    %481 = vmatpush.msra.mxu0 0.0
    %482 = vmatpush.msra.mxu0 0.0
    %483 = vmatpush.msra.mxu0 %v339
    %484 = vmatpush.msra.mxu0 %v331
    %485 = vmatpush.msra.mxu0 %v323
    %486 = vmatmul.f32.gmra.mxu0 %v365
    %v487 = vpop.f32.mrf.mxu0
    %v488 = vadd.f32 %v349, %v487
    %489 = vmatmul.f32.gmra.mxu0 %v368
    %v490 = vpop.f32.mrf.mxu0
    %v491 = vadd.f32 %v349, %v490
    %492 = vmatmul.f32.gmra.mxu0 %v371
    %v493 = vpop.f32.mrf.mxu0
    %v494 = vadd.f32 %v349, %v493
    %495 = vmatmul.f32.gmra.mxu0 %v374
    %v496 = vpop.f32.mrf.mxu0
    %v497 = vadd.f32 %v349, %v496
    %498 = vmatmul.f32.gmra.mxu0 %v377
    %v499 = vpop.f32.mrf.mxu0
    %v500 = vadd.f32 %v349, %v499
    %501 = vmatmul.f32.gmra.mxu0 %v380
    %v502 = vpop.f32.mrf.mxu0
    %v503 = vadd.f32 %v349, %v502
    %504 = vmatmul.f32.gmra.mxu0 %v383
    %v505 = vpop.f32.mrf.mxu0
    %v506 = vadd.f32 %v349, %v505
    %507 = vmatmul.f32.gmra.mxu0 %v386
    %v508 = vpop.f32.mrf.mxu0
    %v509 = vadd.f32 %v349, %v508
    %510 = vdwg.mxu0
    %511 = vmatpush.msra.mxu0 0.0
    %512 = vmatpush.msra.mxu0 0.0
    %513 = vmatpush.msra.mxu0 0.0
    %514 = vmatpush.msra.mxu0 0.0
    %515 = vmatpush.msra.mxu0 0.0
    %516 = vmatpush.msra.mxu0 0.0
    %517 = vmatpush.msra.mxu0 0.0
    %518 = vmatpush.msra.mxu0 0.0
    %519 = vmatpush.msra.mxu0 0.0
    %520 = vmatpush.msra.mxu0 0.0
    %521 = vmatpush.msra.mxu0 0.0
    %522 = vmatpush.msra.mxu0 0.0
    %523 = vmatpush.msra.mxu0 0.0
    %524 = vmatpush.msra.mxu0 %v340
    %525 = vmatpush.msra.mxu0 %v332
    %526 = vmatpush.msra.mxu0 %v324
    %527 = vmatmul.f32.gmra.mxu0 %v365
    %v528 = vpop.f32.mrf.mxu0
    %v529 = vadd.f32 %v350, %v528
    %530 = vmatmul.f32.gmra.mxu0 %v368
    %v531 = vpop.f32.mrf.mxu0
    %v532 = vadd.f32 %v350, %v531
    %533 = vmatmul.f32.gmra.mxu0 %v371
    %v534 = vpop.f32.mrf.mxu0
    %v535 = vadd.f32 %v350, %v534
    %536 = vmatmul.f32.gmra.mxu0 %v374
    %v537 = vpop.f32.mrf.mxu0
    %v538 = vadd.f32 %v350, %v537
    %539 = vmatmul.f32.gmra.mxu0 %v377
    %v540 = vpop.f32.mrf.mxu0
    %v541 = vadd.f32 %v350, %v540
    %542 = vmatmul.f32.gmra.mxu0 %v380
    %v543 = vpop.f32.mrf.mxu0
    %v544 = vadd.f32 %v350, %v543
    %545 = vmatmul.f32.gmra.mxu0 %v383
    %v546 = vpop.f32.mrf.mxu0
    %v547 = vadd.f32 %v350, %v546
    %548 = vmatmul.f32.gmra.mxu0 %v386
    %v549 = vpop.f32.mrf.mxu0
    %v550 = vadd.f32 %v350, %v549
    %551 = vdwg.mxu0
    %552 = vmatpush.msra.mxu0 0.0
    %553 = vmatpush.msra.mxu0 0.0
    %554 = vmatpush.msra.mxu0 0.0
    %555 = vmatpush.msra.mxu0 0.0
    %556 = vmatpush.msra.mxu0 0.0
    %557 = vmatpush.msra.mxu0 0.0
    %558 = vmatpush.msra.mxu0 0.0
    %559 = vmatpush.msra.mxu0 0.0
    %560 = vmatpush.msra.mxu0 0.0
    %561 = vmatpush.msra.mxu0 0.0
    %562 = vmatpush.msra.mxu0 0.0
    %563 = vmatpush.msra.mxu0 0.0
    %564 = vmatpush.msra.mxu0 0.0
    %565 = vmatpush.msra.mxu0 %v341
    %566 = vmatpush.msra.mxu0 %v333
    %567 = vmatpush.msra.mxu0 %v325
    %568 = vmatmul.f32.gmra.mxu0 %v365
    %v569 = vpop.f32.mrf.mxu0
    %v570 = vadd.f32 %v351, %v569
    %571 = vmatmul.f32.gmra.mxu0 %v368
    %v572 = vpop.f32.mrf.mxu0
    %v573 = vadd.f32 %v351, %v572
    %574 = vmatmul.f32.gmra.mxu0 %v371
    %v575 = vpop.f32.mrf.mxu0
    %v576 = vadd.f32 %v351, %v575
    %577 = vmatmul.f32.gmra.mxu0 %v374
    %v578 = vpop.f32.mrf.mxu0
    %v579 = vadd.f32 %v351, %v578
    %580 = vmatmul.f32.gmra.mxu0 %v377
    %v581 = vpop.f32.mrf.mxu0
    %v582 = vadd.f32 %v351, %v581
    %583 = vmatmul.f32.gmra.mxu0 %v380
    %v584 = vpop.f32.mrf.mxu0
    %v585 = vadd.f32 %v351, %v584
    %586 = vmatmul.f32.gmra.mxu0 %v383
    %v587 = vpop.f32.mrf.mxu0
    %v588 = vadd.f32 %v351, %v587
    %589 = vmatmul.f32.gmra.mxu0 %v386
    %v590 = vpop.f32.mrf.mxu0
    %v591 = vadd.f32 %v351, %v590
    %592 = vdwg.mxu0
    %593 = vmatpush.msra.mxu0 0.0
    %594 = vmatpush.msra.mxu0 0.0
    %595 = vmatpush.msra.mxu0 0.0
    %596 = vmatpush.msra.mxu0 0.0
    %597 = vmatpush.msra.mxu0 0.0
    %598 = vmatpush.msra.mxu0 0.0
    %599 = vmatpush.msra.mxu0 0.0
    %600 = vmatpush.msra.mxu0 0.0
    %601 = vmatpush.msra.mxu0 0.0
    %602 = vmatpush.msra.mxu0 0.0
    %603 = vmatpush.msra.mxu0 0.0
    %604 = vmatpush.msra.mxu0 0.0
    %605 = vmatpush.msra.mxu0 0.0
    %606 = vmatpush.msra.mxu0 %v342
    %607 = vmatpush.msra.mxu0 %v334
    %608 = vmatpush.msra.mxu0 %v326
    %609 = vmatmul.f32.gmra.mxu0 %v365
    %v610 = vpop.f32.mrf.mxu0
    %v611 = vadd.f32 %v352, %v610
    %612 = vmatmul.f32.gmra.mxu0 %v368
    %v613 = vpop.f32.mrf.mxu0
    %v614 = vadd.f32 %v352, %v613
    %615 = vmatmul.f32.gmra.mxu0 %v371
    %v616 = vpop.f32.mrf.mxu0
    %v617 = vadd.f32 %v352, %v616
    %618 = vmatmul.f32.gmra.mxu0 %v374
    %v619 = vpop.f32.mrf.mxu0
    %v620 = vadd.f32 %v352, %v619
    %621 = vmatmul.f32.gmra.mxu0 %v377
    %v622 = vpop.f32.mrf.mxu0
    %v623 = vadd.f32 %v352, %v622
    %624 = vmatmul.f32.gmra.mxu0 %v380
    %v625 = vpop.f32.mrf.mxu0
    %v626 = vadd.f32 %v352, %v625
    %627 = vmatmul.f32.gmra.mxu0 %v383
    %v628 = vpop.f32.mrf.mxu0
    %v629 = vadd.f32 %v352, %v628
    %630 = vmatmul.f32.gmra.mxu0 %v386
    %v631 = vpop.f32.mrf.mxu0
    %v632 = vadd.f32 %v352, %v631
    %633 = vdwg.mxu0
    %634 = vmatpush.msra.mxu0 0.0
    %635 = vmatpush.msra.mxu0 0.0
    %636 = vmatpush.msra.mxu0 0.0
    %637 = vmatpush.msra.mxu0 0.0
    %638 = vmatpush.msra.mxu0 0.0
    %639 = vmatpush.msra.mxu0 0.0
    %640 = vmatpush.msra.mxu0 0.0
    %641 = vmatpush.msra.mxu0 0.0
    %642 = vmatpush.msra.mxu0 0.0
    %643 = vmatpush.msra.mxu0 0.0
    %644 = vmatpush.msra.mxu0 0.0
    %645 = vmatpush.msra.mxu0 0.0
    %646 = vmatpush.msra.mxu0 0.0
    %647 = vmatpush.msra.mxu0 %v343
    %648 = vmatpush.msra.mxu0 %v335
    %649 = vmatpush.msra.mxu0 %v327
    %650 = vmatmul.f32.gmra.mxu0 %v365
    %v651 = vpop.f32.mrf.mxu0
    %v652 = vadd.f32 %v353, %v651
    %653 = vmatmul.f32.gmra.mxu0 %v368
    %v654 = vpop.f32.mrf.mxu0
    %v655 = vadd.f32 %v353, %v654
    %656 = vmatmul.f32.gmra.mxu0 %v371
    %v657 = vpop.f32.mrf.mxu0
    %v658 = vadd.f32 %v353, %v657
    %659 = vmatmul.f32.gmra.mxu0 %v374
    %v660 = vpop.f32.mrf.mxu0
    %v661 = vadd.f32 %v353, %v660
    %662 = vmatmul.f32.gmra.mxu0 %v377
    %v663 = vpop.f32.mrf.mxu0
    %v664 = vadd.f32 %v353, %v663
    %665 = vmatmul.f32.gmra.mxu0 %v380
    %v666 = vpop.f32.mrf.mxu0
    %v667 = vadd.f32 %v353, %v666
    %668 = vmatmul.f32.gmra.mxu0 %v383
    %v669 = vpop.f32.mrf.mxu0
    %v670 = vadd.f32 %v353, %v669
    %671 = vmatmul.f32.gmra.mxu0 %v386
    %v672 = vpop.f32.mrf.mxu0
    %v673 = vadd.f32 %v353, %v672
    %674 = vdwg.mxu0
    %675 = vmatpush.msra.mxu0 0.0
    %676 = vmatpush.msra.mxu0 0.0
    %677 = vmatpush.msra.mxu0 0.0
    %678 = vmatpush.msra.mxu0 0.0
    %679 = vmatpush.msra.mxu0 0.0
    %680 = vmatpush.msra.mxu0 0.0
    %681 = vmatpush.msra.mxu0 0.0
    %682 = vmatpush.msra.mxu0 0.0
    %683 = vmatpush.msra.mxu0 0.0
    %684 = vmatpush.msra.mxu0 0.0
    %685 = vmatpush.msra.mxu0 0.0
    %686 = vmatpush.msra.mxu0 0.0
    %687 = vmatpush.msra.mxu0 0.0
    %688 = vmatpush.msra.mxu0 %v344
    %689 = vmatpush.msra.mxu0 %v336
    %690 = vmatpush.msra.mxu0 %v328
    %691 = vmatmul.f32.gmra.mxu0 %v365
    %v692 = vpop.f32.mrf.mxu0
    %v693 = vadd.f32 %v354, %v692
    %694 = vmatmul.f32.gmra.mxu0 %v368
    %v695 = vpop.f32.mrf.mxu0
    %v696 = vadd.f32 %v354, %v695
    %697 = vmatmul.f32.gmra.mxu0 %v371
    %v698 = vpop.f32.mrf.mxu0
    %v699 = vadd.f32 %v354, %v698
    %700 = vmatmul.f32.gmra.mxu0 %v374
    %v701 = vpop.f32.mrf.mxu0
    %v702 = vadd.f32 %v354, %v701
    %703 = vmatmul.f32.gmra.mxu0 %v377
    %v704 = vpop.f32.mrf.mxu0
    %v705 = vadd.f32 %v354, %v704
    %706 = vmatmul.f32.gmra.mxu0 %v380
    %v707 = vpop.f32.mrf.mxu0
    %v708 = vadd.f32 %v354, %v707
    %709 = vmatmul.f32.gmra.mxu0 %v383
    %v710 = vpop.f32.mrf.mxu0
    %v711 = vadd.f32 %v354, %v710
    %712 = vmatmul.f32.gmra.mxu0 %v386
    %v713 = vpop.f32.mrf.mxu0
    %v714 = vadd.f32 %v354, %v713
    %715 = vdwg.mxu0
    %716 = vmatpush.msra.mxu0 %v177
    %717 = vmatpush.msra.mxu0 %v169
    %718 = vmatpush.msra.mxu0 %v161
    %719 = vmatpush.msra.mxu0 %v153
    %720 = vmatpush.msra.mxu0 %v145
    %721 = vmatpush.msra.mxu0 %v137
    %722 = vmatpush.msra.mxu0 %v129
    %723 = vmatpush.msra.mxu0 %v121
    %724 = vmatpush.msra.mxu0 %v113
    %725 = vmatpush.msra.mxu0 %v105
    %726 = vmatpush.msra.mxu0 %v97
    %727 = vmatpush.msra.mxu0 %v89
    %728 = vmatpush.msra.mxu0 %v81
    %729 = vmatpush.msra.mxu0 %v73
    %730 = vmatpush.msra.mxu0 %v65
    %731 = vmatpush.msra.mxu0 %v57
    %732 = vmatmul.f32.gmra.mxu0 0.0
    %v733 = vpop.f32.mrf.mxu0
    %v734 = vadd.f32 0.0, %v733
    %735 = vdwg.mxu0
    %736 = vmatpush.msra.mxu0 %v305
    %737 = vmatpush.msra.mxu0 %v297
    %738 = vmatpush.msra.mxu0 %v289
    %739 = vmatpush.msra.mxu0 %v281
    %740 = vmatpush.msra.mxu0 %v273
    %741 = vmatpush.msra.mxu0 %v265
    %742 = vmatpush.msra.mxu0 %v257
    %743 = vmatpush.msra.mxu0 %v249
    %744 = vmatpush.msra.mxu0 %v241
    %745 = vmatpush.msra.mxu0 %v233
    %746 = vmatpush.msra.mxu0 %v225
    %747 = vmatpush.msra.mxu0 %v217
    %748 = vmatpush.msra.mxu0 %v209
    %749 = vmatpush.msra.mxu0 %v201
    %750 = vmatpush.msra.mxu0 %v193
    %751 = vmatpush.msra.mxu0 %v185
    %752 = vmatmul.f32.gmra.mxu0 0.0
    %v753 = vpop.f32.mrf.mxu0
    %v754 = vadd.f32 %v734, %v753
    %755 = vdwg.mxu0
    %756 = vmatpush.msra.mxu0 %v178
    %757 = vmatpush.msra.mxu0 %v170
    %758 = vmatpush.msra.mxu0 %v162
    %759 = vmatpush.msra.mxu0 %v154
    %760 = vmatpush.msra.mxu0 %v146
    %761 = vmatpush.msra.mxu0 %v138
    %762 = vmatpush.msra.mxu0 %v130
    %763 = vmatpush.msra.mxu0 %v122
    %764 = vmatpush.msra.mxu0 %v114
    %765 = vmatpush.msra.mxu0 %v106
    %766 = vmatpush.msra.mxu0 %v98
    %767 = vmatpush.msra.mxu0 %v90
    %768 = vmatpush.msra.mxu0 %v82
    %769 = vmatpush.msra.mxu0 %v74
    %770 = vmatpush.msra.mxu0 %v66
    %771 = vmatpush.msra.mxu0 %v58
    %772 = vmatmul.f32.gmra.mxu0 0.0
    %v773 = vpop.f32.mrf.mxu0
    %v774 = vadd.f32 0.0, %v773
    %775 = vdwg.mxu0
    %776 = vmatpush.msra.mxu0 %v306
    %777 = vmatpush.msra.mxu0 %v298
    %778 = vmatpush.msra.mxu0 %v290
    %779 = vmatpush.msra.mxu0 %v282
    %780 = vmatpush.msra.mxu0 %v274
    %781 = vmatpush.msra.mxu0 %v266
    %782 = vmatpush.msra.mxu0 %v258
    %783 = vmatpush.msra.mxu0 %v250
    %784 = vmatpush.msra.mxu0 %v242
    %785 = vmatpush.msra.mxu0 %v234
    %786 = vmatpush.msra.mxu0 %v226
    %787 = vmatpush.msra.mxu0 %v218
    %788 = vmatpush.msra.mxu0 %v210
    %789 = vmatpush.msra.mxu0 %v202
    %790 = vmatpush.msra.mxu0 %v194
    %791 = vmatpush.msra.mxu0 %v186
    %792 = vmatmul.f32.gmra.mxu0 0.0
    %v793 = vpop.f32.mrf.mxu0
    %v794 = vadd.f32 %v774, %v793
    %795 = vdwg.mxu0
    %796 = vmatpush.msra.mxu0 %v179
    %797 = vmatpush.msra.mxu0 %v171
    %798 = vmatpush.msra.mxu0 %v163
    %799 = vmatpush.msra.mxu0 %v155
    %800 = vmatpush.msra.mxu0 %v147
    %801 = vmatpush.msra.mxu0 %v139
    %802 = vmatpush.msra.mxu0 %v131
    %803 = vmatpush.msra.mxu0 %v123
    %804 = vmatpush.msra.mxu0 %v115
    %805 = vmatpush.msra.mxu0 %v107
    %806 = vmatpush.msra.mxu0 %v99
    %807 = vmatpush.msra.mxu0 %v91
    %808 = vmatpush.msra.mxu0 %v83
    %809 = vmatpush.msra.mxu0 %v75
    %810 = vmatpush.msra.mxu0 %v67
    %811 = vmatpush.msra.mxu0 %v59
    %812 = vmatmul.f32.gmra.mxu0 0.0
    %v813 = vpop.f32.mrf.mxu0
    %v814 = vadd.f32 0.0, %v813
    %815 = vdwg.mxu0
    %816 = vmatpush.msra.mxu0 %v307
    %817 = vmatpush.msra.mxu0 %v299
    %818 = vmatpush.msra.mxu0 %v291
    %819 = vmatpush.msra.mxu0 %v283
    %820 = vmatpush.msra.mxu0 %v275
    %821 = vmatpush.msra.mxu0 %v267
    %822 = vmatpush.msra.mxu0 %v259
    %823 = vmatpush.msra.mxu0 %v251
    %824 = vmatpush.msra.mxu0 %v243
    %825 = vmatpush.msra.mxu0 %v235
    %826 = vmatpush.msra.mxu0 %v227
    %827 = vmatpush.msra.mxu0 %v219
    %828 = vmatpush.msra.mxu0 %v211
    %829 = vmatpush.msra.mxu0 %v203
    %830 = vmatpush.msra.mxu0 %v195
    %831 = vmatpush.msra.mxu0 %v187
    %832 = vmatmul.f32.gmra.mxu0 0.0
    %v833 = vpop.f32.mrf.mxu0
    %v834 = vadd.f32 %v814, %v833
    %835 = vdwg.mxu0
    %836 = vmatpush.msra.mxu0 %v180
    %837 = vmatpush.msra.mxu0 %v172
    %838 = vmatpush.msra.mxu0 %v164
    %839 = vmatpush.msra.mxu0 %v156
    %840 = vmatpush.msra.mxu0 %v148
    %841 = vmatpush.msra.mxu0 %v140
    %842 = vmatpush.msra.mxu0 %v132
    %843 = vmatpush.msra.mxu0 %v124
    %844 = vmatpush.msra.mxu0 %v116
    %845 = vmatpush.msra.mxu0 %v108
    %846 = vmatpush.msra.mxu0 %v100
    %847 = vmatpush.msra.mxu0 %v92
    %848 = vmatpush.msra.mxu0 %v84
    %849 = vmatpush.msra.mxu0 %v76
    %850 = vmatpush.msra.mxu0 %v68
    %851 = vmatpush.msra.mxu0 %v60
    %852 = vmatmul.f32.gmra.mxu0 0.0
    %v853 = vpop.f32.mrf.mxu0
    %v854 = vadd.f32 0.0, %v853
    %855 = vdwg.mxu0
    %856 = vmatpush.msra.mxu0 %v308
    %857 = vmatpush.msra.mxu0 %v300
    %858 = vmatpush.msra.mxu0 %v292
    %859 = vmatpush.msra.mxu0 %v284
    %860 = vmatpush.msra.mxu0 %v276
    %861 = vmatpush.msra.mxu0 %v268
    %862 = vmatpush.msra.mxu0 %v260
    %863 = vmatpush.msra.mxu0 %v252
    %864 = vmatpush.msra.mxu0 %v244
    %865 = vmatpush.msra.mxu0 %v236
    %866 = vmatpush.msra.mxu0 %v228
    %867 = vmatpush.msra.mxu0 %v220
    %868 = vmatpush.msra.mxu0 %v212
    %869 = vmatpush.msra.mxu0 %v204
    %870 = vmatpush.msra.mxu0 %v196
    %871 = vmatpush.msra.mxu0 %v188
    %872 = vmatmul.f32.gmra.mxu0 0.0
    %v873 = vpop.f32.mrf.mxu0
    %v874 = vadd.f32 %v854, %v873
    %875 = vdwg.mxu0
    %876 = vmatpush.msra.mxu0 %v181
    %877 = vmatpush.msra.mxu0 %v173
    %878 = vmatpush.msra.mxu0 %v165
    %879 = vmatpush.msra.mxu0 %v157
    %880 = vmatpush.msra.mxu0 %v149
    %881 = vmatpush.msra.mxu0 %v141
    %882 = vmatpush.msra.mxu0 %v133
    %883 = vmatpush.msra.mxu0 %v125
    %884 = vmatpush.msra.mxu0 %v117
    %885 = vmatpush.msra.mxu0 %v109
    %886 = vmatpush.msra.mxu0 %v101
    %887 = vmatpush.msra.mxu0 %v93
    %888 = vmatpush.msra.mxu0 %v85
    %889 = vmatpush.msra.mxu0 %v77
    %890 = vmatpush.msra.mxu0 %v69
    %891 = vmatpush.msra.mxu0 %v61
    %892 = vmatmul.f32.gmra.mxu0 0.0
    %v893 = vpop.f32.mrf.mxu0
    %v894 = vadd.f32 0.0, %v893
    %895 = vdwg.mxu0
    %896 = vmatpush.msra.mxu0 %v309
    %897 = vmatpush.msra.mxu0 %v301
    %898 = vmatpush.msra.mxu0 %v293
    %899 = vmatpush.msra.mxu0 %v285
    %900 = vmatpush.msra.mxu0 %v277
    %901 = vmatpush.msra.mxu0 %v269
    %902 = vmatpush.msra.mxu0 %v261
    %903 = vmatpush.msra.mxu0 %v253
    %904 = vmatpush.msra.mxu0 %v245
    %905 = vmatpush.msra.mxu0 %v237
    %906 = vmatpush.msra.mxu0 %v229
    %907 = vmatpush.msra.mxu0 %v221
    %908 = vmatpush.msra.mxu0 %v213
    %909 = vmatpush.msra.mxu0 %v205
    %910 = vmatpush.msra.mxu0 %v197
    %911 = vmatpush.msra.mxu0 %v189
    %912 = vmatmul.f32.gmra.mxu0 0.0
    %v913 = vpop.f32.mrf.mxu0
    %v914 = vadd.f32 %v894, %v913
    %915 = vdwg.mxu0
    %916 = vmatpush.msra.mxu0 %v182
    %917 = vmatpush.msra.mxu0 %v174
    %918 = vmatpush.msra.mxu0 %v166
    %919 = vmatpush.msra.mxu0 %v158
    %920 = vmatpush.msra.mxu0 %v150
    %921 = vmatpush.msra.mxu0 %v142
    %922 = vmatpush.msra.mxu0 %v134
    %923 = vmatpush.msra.mxu0 %v126
    %924 = vmatpush.msra.mxu0 %v118
    %925 = vmatpush.msra.mxu0 %v110
    %926 = vmatpush.msra.mxu0 %v102
    %927 = vmatpush.msra.mxu0 %v94
    %928 = vmatpush.msra.mxu0 %v86
    %929 = vmatpush.msra.mxu0 %v78
    %930 = vmatpush.msra.mxu0 %v70
    %931 = vmatpush.msra.mxu0 %v62
    %932 = vmatmul.f32.gmra.mxu0 0.0
    %v933 = vpop.f32.mrf.mxu0
    %v934 = vadd.f32 0.0, %v933
    %935 = vdwg.mxu0
    %936 = vmatpush.msra.mxu0 %v310
    %937 = vmatpush.msra.mxu0 %v302
    %938 = vmatpush.msra.mxu0 %v294
    %939 = vmatpush.msra.mxu0 %v286
    %940 = vmatpush.msra.mxu0 %v278
    %941 = vmatpush.msra.mxu0 %v270
    %942 = vmatpush.msra.mxu0 %v262
    %943 = vmatpush.msra.mxu0 %v254
    %944 = vmatpush.msra.mxu0 %v246
    %945 = vmatpush.msra.mxu0 %v238
    %946 = vmatpush.msra.mxu0 %v230
    %947 = vmatpush.msra.mxu0 %v222
    %948 = vmatpush.msra.mxu0 %v214
    %949 = vmatpush.msra.mxu0 %v206
    %950 = vmatpush.msra.mxu0 %v198
    %951 = vmatpush.msra.mxu0 %v190
    %952 = vmatmul.f32.gmra.mxu0 0.0
    %v953 = vpop.f32.mrf.mxu0
    %v954 = vadd.f32 %v934, %v953
    %955 = vdwg.mxu0
    %956 = vmatpush.msra.mxu0 %v183
    %957 = vmatpush.msra.mxu0 %v175
    %958 = vmatpush.msra.mxu0 %v167
    %959 = vmatpush.msra.mxu0 %v159
    %960 = vmatpush.msra.mxu0 %v151
    %961 = vmatpush.msra.mxu0 %v143
    %962 = vmatpush.msra.mxu0 %v135
    %963 = vmatpush.msra.mxu0 %v127
    %964 = vmatpush.msra.mxu0 %v119
    %965 = vmatpush.msra.mxu0 %v111
    %966 = vmatpush.msra.mxu0 %v103
    %967 = vmatpush.msra.mxu0 %v95
    %968 = vmatpush.msra.mxu0 %v87
    %969 = vmatpush.msra.mxu0 %v79
    %970 = vmatpush.msra.mxu0 %v71
    %971 = vmatpush.msra.mxu0 %v63
    %972 = vmatmul.f32.gmra.mxu0 0.0
    %v973 = vpop.f32.mrf.mxu0
    %v974 = vadd.f32 0.0, %v973
    %975 = vdwg.mxu0
    %976 = vmatpush.msra.mxu0 %v311
    %977 = vmatpush.msra.mxu0 %v303
    %978 = vmatpush.msra.mxu0 %v295
    %979 = vmatpush.msra.mxu0 %v287
    %980 = vmatpush.msra.mxu0 %v279
    %981 = vmatpush.msra.mxu0 %v271
    %982 = vmatpush.msra.mxu0 %v263
    %983 = vmatpush.msra.mxu0 %v255
    %984 = vmatpush.msra.mxu0 %v247
    %985 = vmatpush.msra.mxu0 %v239
    %986 = vmatpush.msra.mxu0 %v231
    %987 = vmatpush.msra.mxu0 %v223
    %988 = vmatpush.msra.mxu0 %v215
    %989 = vmatpush.msra.mxu0 %v207
    %990 = vmatpush.msra.mxu0 %v199
    %991 = vmatpush.msra.mxu0 %v191
    %992 = vmatmul.f32.gmra.mxu0 0.0
    %v993 = vpop.f32.mrf.mxu0
    %v994 = vadd.f32 %v974, %v993
    %995 = vdwg.mxu0
    %996 = vmatpush.msra.mxu0 %v184
    %997 = vmatpush.msra.mxu0 %v176
    %998 = vmatpush.msra.mxu0 %v168
    %999 = vmatpush.msra.mxu0 %v160
    %1000 = vmatpush.msra.mxu0 %v152
    %1001 = vmatpush.msra.mxu0 %v144
    %1002 = vmatpush.msra.mxu0 %v136
    %1003 = vmatpush.msra.mxu0 %v128
    %1004 = vmatpush.msra.mxu0 %v120
    %1005 = vmatpush.msra.mxu0 %v112
    %1006 = vmatpush.msra.mxu0 %v104
    %1007 = vmatpush.msra.mxu0 %v96
    %1008 = vmatpush.msra.mxu0 %v88
    %1009 = vmatpush.msra.mxu0 %v80
    %1010 = vmatpush.msra.mxu0 %v72
    %1011 = vmatpush.msra.mxu0 %v64
    %1012 = vmatmul.f32.gmra.mxu0 0.0
    %v1013 = vpop.f32.mrf.mxu0
    %v1014 = vadd.f32 0.0, %v1013
    %1015 = vdwg.mxu0
    %1016 = vmatpush.msra.mxu0 %v312
    %1017 = vmatpush.msra.mxu0 %v304
    %1018 = vmatpush.msra.mxu0 %v296
    %1019 = vmatpush.msra.mxu0 %v288
    %1020 = vmatpush.msra.mxu0 %v280
    %1021 = vmatpush.msra.mxu0 %v272
    %1022 = vmatpush.msra.mxu0 %v264
    %1023 = vmatpush.msra.mxu0 %v256
    %1024 = vmatpush.msra.mxu0 %v248
    %1025 = vmatpush.msra.mxu0 %v240
    %1026 = vmatpush.msra.mxu0 %v232
    %1027 = vmatpush.msra.mxu0 %v224
    %1028 = vmatpush.msra.mxu0 %v216
    %1029 = vmatpush.msra.mxu0 %v208
    %1030 = vmatpush.msra.mxu0 %v200
    %1031 = vmatpush.msra.mxu0 %v192
    %1032 = vmatmul.f32.gmra.mxu0 0.0
    %v1033 = vpop.f32.mrf.mxu0
    %v1034 = vadd.f32 %v1014, %v1033
    %1035 = vdwg.mxu0
    %v1036 = vadd.f32 %v406, %v754
    %v1037 = vadd.f32 %v447, %v794
    %v1038 = vadd.f32 %v488, %v834
    %v1039 = vadd.f32 %v529, %v874
    %v1040 = vadd.f32 %v570, %v914
    %v1041 = vadd.f32 %v611, %v954
    %v1042 = vadd.f32 %v652, %v994
    %v1043 = vadd.f32 %v693, %v1034
    %v1044 = vxor.u32 %v1036, 2147483648
    %v1045 = vxor.u32 %v1037, 2147483648
    %v1046 = vmul.f32 %v1044, 1.442695
    %v1047 = vpow.pop %v1046
    %v1048 = vmul.f32 %v1045, 1.442695
    %v1049 = vpow.pop %v1048
    %v1050 = vadd.f32 %v1047, 1.0
    %v1051 = vadd.f32 %v1049, 1.0
    %v1052 = vrcp.pop %v1050
    %v1053 = vmul.f32 %v1050, %v1052
    %v1054 = vsub.f32 1.0, %v1053
    %v1055 = vmul.f32 %v1052, %v1054
    %v1056 = vadd.f32 %v1052, %v1055
    %vm1057 = vweird.f32 %v1050
    %vm1058 = vweird.f32 %v1052
    %vm1059 = vmor %vm1057, %vm1058
    %v1060 = vsel %vm1059, %v1052, %v1056
    %v1061 = vand.u32 2147483647, %v1050
    %vm1062 = vcmp.eq.f32.partialorder %v1061, 8.507059e+37
    %v1063 = vand.u32 %v1050, 2147483648
    %v1064 = vor.u32 1.1754944e-38, %v1063
    %v1065 = vsel %vm1062, %v1064, %v1060
    %v1066 = vmul.f32 1.0, %v1065
    %v1067 = vrcp.pop %v1051
    %v1068 = vmul.f32 %v1051, %v1067
    %v1069 = vsub.f32 1.0, %v1068
    %v1070 = vmul.f32 %v1067, %v1069
    %v1071 = vadd.f32 %v1067, %v1070
    %vm1072 = vweird.f32 %v1051
    %vm1073 = vweird.f32 %v1067
    %vm1074 = vmor %vm1072, %vm1073
    %v1075 = vsel %vm1074, %v1067, %v1071
    %v1076 = vand.u32 2147483647, %v1051
    %vm1077 = vcmp.eq.f32.partialorder %v1076, 8.507059e+37
    %v1078 = vand.u32 %v1051, 2147483648
    %v1079 = vor.u32 1.1754944e-38, %v1078
    %v1080 = vsel %vm1077, %v1079, %v1075
    %v1081 = vmul.f32 1.0, %v1080
    %v1082 = vxor.u32 %v1038, 2147483648
    %v1083 = vxor.u32 %v1039, 2147483648
    %v1084 = vmul.f32 %v1082, 1.442695
    %v1085 = vpow.pop %v1084
    %v1086 = vmul.f32 %v1083, 1.442695
    %v1087 = vpow.pop %v1086
    %v1088 = vadd.f32 %v1085, 1.0
    %v1089 = vadd.f32 %v1087, 1.0
    %v1090 = vrcp.pop %v1088
    %v1091 = vmul.f32 %v1088, %v1090
    %v1092 = vsub.f32 1.0, %v1091
    %v1093 = vmul.f32 %v1090, %v1092
    %v1094 = vadd.f32 %v1090, %v1093
    %vm1095 = vweird.f32 %v1088
    %vm1096 = vweird.f32 %v1090
    %vm1097 = vmor %vm1095, %vm1096
    %v1098 = vsel %vm1097, %v1090, %v1094
    %v1099 = vand.u32 2147483647, %v1088
    %vm1100 = vcmp.eq.f32.partialorder %v1099, 8.507059e+37
    %v1101 = vand.u32 %v1088, 2147483648
    %v1102 = vor.u32 1.1754944e-38, %v1101
    %v1103 = vsel %vm1100, %v1102, %v1098
    %v1104 = vmul.f32 1.0, %v1103
    %v1105 = vrcp.pop %v1089
    %v1106 = vmul.f32 %v1089, %v1105
    %v1107 = vsub.f32 1.0, %v1106
    %v1108 = vmul.f32 %v1105, %v1107
    %v1109 = vadd.f32 %v1105, %v1108
    %vm1110 = vweird.f32 %v1089
    %vm1111 = vweird.f32 %v1105
    %vm1112 = vmor %vm1110, %vm1111
    %v1113 = vsel %vm1112, %v1105, %v1109
    %v1114 = vand.u32 2147483647, %v1089
    %vm1115 = vcmp.eq.f32.partialorder %v1114, 8.507059e+37
    %v1116 = vand.u32 %v1089, 2147483648
    %v1117 = vor.u32 1.1754944e-38, %v1116
    %v1118 = vsel %vm1115, %v1117, %v1113
    %v1119 = vmul.f32 1.0, %v1118
    %v1120 = vtanh.pop %v1040
    %v1121 = vtanh.pop %v1041
    %v1122 = vxor.u32 %v1042, 2147483648
    %v1123 = vxor.u32 %v1043, 2147483648
    %v1124 = vmul.f32 %v1122, 1.442695
    %v1125 = vpow.pop %v1124
    %v1126 = vmul.f32 %v1123, 1.442695
    %v1127 = vpow.pop %v1126
    %v1128 = vadd.f32 %v1125, 1.0
    %v1129 = vadd.f32 %v1127, 1.0
    %v1130 = vrcp.pop %v1128
    %v1131 = vmul.f32 %v1128, %v1130
    %v1132 = vsub.f32 1.0, %v1131
    %v1133 = vmul.f32 %v1130, %v1132
    %v1134 = vadd.f32 %v1130, %v1133
    %vm1135 = vweird.f32 %v1128
    %vm1136 = vweird.f32 %v1130
    %vm1137 = vmor %vm1135, %vm1136
    %v1138 = vsel %vm1137, %v1130, %v1134
    %v1139 = vand.u32 2147483647, %v1128
    %vm1140 = vcmp.eq.f32.partialorder %v1139, 8.507059e+37
    %v1141 = vand.u32 %v1128, 2147483648
    %v1142 = vor.u32 1.1754944e-38, %v1141
    %v1143 = vsel %vm1140, %v1142, %v1138
    %v1144 = vmul.f32 1.0, %v1143
    %v1145 = vrcp.pop %v1129
    %v1146 = vmul.f32 %v1129, %v1145
    %v1147 = vsub.f32 1.0, %v1146
    %v1148 = vmul.f32 %v1145, %v1147
    %v1149 = vadd.f32 %v1145, %v1148
    %vm1150 = vweird.f32 %v1129
    %vm1151 = vweird.f32 %v1145
    %vm1152 = vmor %vm1150, %vm1151
    %v1153 = vsel %vm1152, %v1145, %v1149
    %v1154 = vand.u32 2147483647, %v1129
    %vm1155 = vcmp.eq.f32.partialorder %v1154, 8.507059e+37
    %v1156 = vand.u32 %v1129, 2147483648
    %v1157 = vor.u32 1.1754944e-38, %v1156
    %v1158 = vsel %vm1155, %v1157, %v1153
    %v1159 = vmul.f32 1.0, %v1158
    %v1160 = vmul.f32 %v1104, 0.0
    %v1161 = vmul.f32 %v1119, 0.0
    %v1162 = vmul.f32 %v1066, %v1120
    %v1163 = vmul.f32 %v1081, %v1121
    %v1164 = vadd.f32 %v1160, %v1162
    %v1165 = vadd.f32 %v1161, %v1163
    %v1166 = vtanh.pop %v1164
    %v1167 = vtanh.pop %v1165
    %v1168 = vmul.f32 %v1144, %v1166
    %v1169 = vmul.f32 %v1159, %v1167
    %1170 = vmatpush.msra.mxu0 %v177
    %1171 = vmatpush.msra.mxu0 %v169
    %1172 = vmatpush.msra.mxu0 %v161
    %1173 = vmatpush.msra.mxu0 %v153
    %1174 = vmatpush.msra.mxu0 %v145
    %1175 = vmatpush.msra.mxu0 %v137
    %1176 = vmatpush.msra.mxu0 %v129
    %1177 = vmatpush.msra.mxu0 %v121
    %1178 = vmatpush.msra.mxu0 %v113
    %1179 = vmatpush.msra.mxu0 %v105
    %1180 = vmatpush.msra.mxu0 %v97
    %1181 = vmatpush.msra.mxu0 %v89
    %1182 = vmatpush.msra.mxu0 %v81
    %1183 = vmatpush.msra.mxu0 %v73
    %1184 = vmatpush.msra.mxu0 %v65
    %1185 = vmatpush.msra.mxu0 %v57
    %1186 = vmatmul.f32.gmra.mxu0 %v1168
    %v1187 = vpop.f32.mrf.mxu0
    %v1188 = vadd.f32 0.0, %v1187
    %1189 = vdwg.mxu0
    %1190 = vmatpush.msra.mxu0 %v305
    %1191 = vmatpush.msra.mxu0 %v297
    %1192 = vmatpush.msra.mxu0 %v289
    %1193 = vmatpush.msra.mxu0 %v281
    %1194 = vmatpush.msra.mxu0 %v273
    %1195 = vmatpush.msra.mxu0 %v265
    %1196 = vmatpush.msra.mxu0 %v257
    %1197 = vmatpush.msra.mxu0 %v249
    %1198 = vmatpush.msra.mxu0 %v241
    %1199 = vmatpush.msra.mxu0 %v233
    %1200 = vmatpush.msra.mxu0 %v225
    %1201 = vmatpush.msra.mxu0 %v217
    %1202 = vmatpush.msra.mxu0 %v209
    %1203 = vmatpush.msra.mxu0 %v201
    %1204 = vmatpush.msra.mxu0 %v193
    %1205 = vmatpush.msra.mxu0 %v185
    %1206 = vmatmul.f32.gmra.mxu0 %v1169
    %v1207 = vpop.f32.mrf.mxu0
    %v1208 = vadd.f32 %v1188, %v1207
    %1209 = vdwg.mxu0
    %1210 = vmatpush.msra.mxu0 %v178
    %1211 = vmatpush.msra.mxu0 %v170
    %1212 = vmatpush.msra.mxu0 %v162
    %1213 = vmatpush.msra.mxu0 %v154
    %1214 = vmatpush.msra.mxu0 %v146
    %1215 = vmatpush.msra.mxu0 %v138
    %1216 = vmatpush.msra.mxu0 %v130
    %1217 = vmatpush.msra.mxu0 %v122
    %1218 = vmatpush.msra.mxu0 %v114
    %1219 = vmatpush.msra.mxu0 %v106
    %1220 = vmatpush.msra.mxu0 %v98
    %1221 = vmatpush.msra.mxu0 %v90
    %1222 = vmatpush.msra.mxu0 %v82
    %1223 = vmatpush.msra.mxu0 %v74
    %1224 = vmatpush.msra.mxu0 %v66
    %1225 = vmatpush.msra.mxu0 %v58
    %1226 = vmatmul.f32.gmra.mxu0 %v1168
    %v1227 = vpop.f32.mrf.mxu0
    %v1228 = vadd.f32 0.0, %v1227
    %1229 = vdwg.mxu0
    %1230 = vmatpush.msra.mxu0 %v306
    %1231 = vmatpush.msra.mxu0 %v298
    %1232 = vmatpush.msra.mxu0 %v290
    %1233 = vmatpush.msra.mxu0 %v282
    %1234 = vmatpush.msra.mxu0 %v274
    %1235 = vmatpush.msra.mxu0 %v266
    %1236 = vmatpush.msra.mxu0 %v258
    %1237 = vmatpush.msra.mxu0 %v250
    %1238 = vmatpush.msra.mxu0 %v242
    %1239 = vmatpush.msra.mxu0 %v234
    %1240 = vmatpush.msra.mxu0 %v226
    %1241 = vmatpush.msra.mxu0 %v218
    %1242 = vmatpush.msra.mxu0 %v210
    %1243 = vmatpush.msra.mxu0 %v202
    %1244 = vmatpush.msra.mxu0 %v194
    %1245 = vmatpush.msra.mxu0 %v186
    %1246 = vmatmul.f32.gmra.mxu0 %v1169
    %v1247 = vpop.f32.mrf.mxu0
    %v1248 = vadd.f32 %v1228, %v1247
    %1249 = vdwg.mxu0
    %1250 = vmatpush.msra.mxu0 %v179
    %1251 = vmatpush.msra.mxu0 %v171
    %1252 = vmatpush.msra.mxu0 %v163
    %1253 = vmatpush.msra.mxu0 %v155
    %1254 = vmatpush.msra.mxu0 %v147
    %1255 = vmatpush.msra.mxu0 %v139
    %1256 = vmatpush.msra.mxu0 %v131
    %1257 = vmatpush.msra.mxu0 %v123
    %1258 = vmatpush.msra.mxu0 %v115
    %1259 = vmatpush.msra.mxu0 %v107
    %1260 = vmatpush.msra.mxu0 %v99
    %1261 = vmatpush.msra.mxu0 %v91
    %1262 = vmatpush.msra.mxu0 %v83
    %1263 = vmatpush.msra.mxu0 %v75
    %1264 = vmatpush.msra.mxu0 %v67
    %1265 = vmatpush.msra.mxu0 %v59
    %1266 = vmatmul.f32.gmra.mxu0 %v1168
    %v1267 = vpop.f32.mrf.mxu0
    %v1268 = vadd.f32 0.0, %v1267
    %1269 = vdwg.mxu0
    %1270 = vmatpush.msra.mxu0 %v307
    %1271 = vmatpush.msra.mxu0 %v299
    %1272 = vmatpush.msra.mxu0 %v291
    %1273 = vmatpush.msra.mxu0 %v283
    %1274 = vmatpush.msra.mxu0 %v275
    %1275 = vmatpush.msra.mxu0 %v267
    %1276 = vmatpush.msra.mxu0 %v259
    %1277 = vmatpush.msra.mxu0 %v251
    %1278 = vmatpush.msra.mxu0 %v243
    %1279 = vmatpush.msra.mxu0 %v235
    %1280 = vmatpush.msra.mxu0 %v227
    %1281 = vmatpush.msra.mxu0 %v219
    %1282 = vmatpush.msra.mxu0 %v211
    %1283 = vmatpush.msra.mxu0 %v203
    %1284 = vmatpush.msra.mxu0 %v195
    %1285 = vmatpush.msra.mxu0 %v187
    %1286 = vmatmul.f32.gmra.mxu0 %v1169
    %v1287 = vpop.f32.mrf.mxu0
    %v1288 = vadd.f32 %v1268, %v1287
    %1289 = vdwg.mxu0
    %1290 = vmatpush.msra.mxu0 %v180
    %1291 = vmatpush.msra.mxu0 %v172
    %1292 = vmatpush.msra.mxu0 %v164
    %1293 = vmatpush.msra.mxu0 %v156
    %1294 = vmatpush.msra.mxu0 %v148
    %1295 = vmatpush.msra.mxu0 %v140
    %1296 = vmatpush.msra.mxu0 %v132
    %1297 = vmatpush.msra.mxu0 %v124
    %1298 = vmatpush.msra.mxu0 %v116
    %1299 = vmatpush.msra.mxu0 %v108
    %1300 = vmatpush.msra.mxu0 %v100
    %1301 = vmatpush.msra.mxu0 %v92
    %1302 = vmatpush.msra.mxu0 %v84
    %1303 = vmatpush.msra.mxu0 %v76
    %1304 = vmatpush.msra.mxu0 %v68
    %1305 = vmatpush.msra.mxu0 %v60
    %1306 = vmatmul.f32.gmra.mxu0 %v1168
    %v1307 = vpop.f32.mrf.mxu0
    %v1308 = vadd.f32 0.0, %v1307
    %1309 = vdwg.mxu0
    %1310 = vmatpush.msra.mxu0 %v308
    %1311 = vmatpush.msra.mxu0 %v300
    %1312 = vmatpush.msra.mxu0 %v292
    %1313 = vmatpush.msra.mxu0 %v284
    %1314 = vmatpush.msra.mxu0 %v276
    %1315 = vmatpush.msra.mxu0 %v268
    %1316 = vmatpush.msra.mxu0 %v260
    %1317 = vmatpush.msra.mxu0 %v252
    %1318 = vmatpush.msra.mxu0 %v244
    %1319 = vmatpush.msra.mxu0 %v236
    %1320 = vmatpush.msra.mxu0 %v228
    %1321 = vmatpush.msra.mxu0 %v220
    %1322 = vmatpush.msra.mxu0 %v212
    %1323 = vmatpush.msra.mxu0 %v204
    %1324 = vmatpush.msra.mxu0 %v196
    %1325 = vmatpush.msra.mxu0 %v188
    %1326 = vmatmul.f32.gmra.mxu0 %v1169
    %v1327 = vpop.f32.mrf.mxu0
    %v1328 = vadd.f32 %v1308, %v1327
    %1329 = vdwg.mxu0
    %1330 = vmatpush.msra.mxu0 %v181
    %1331 = vmatpush.msra.mxu0 %v173
    %1332 = vmatpush.msra.mxu0 %v165
    %1333 = vmatpush.msra.mxu0 %v157
    %1334 = vmatpush.msra.mxu0 %v149
    %1335 = vmatpush.msra.mxu0 %v141
    %1336 = vmatpush.msra.mxu0 %v133
    %1337 = vmatpush.msra.mxu0 %v125
    %1338 = vmatpush.msra.mxu0 %v117
    %1339 = vmatpush.msra.mxu0 %v109
    %1340 = vmatpush.msra.mxu0 %v101
    %1341 = vmatpush.msra.mxu0 %v93
    %1342 = vmatpush.msra.mxu0 %v85
    %1343 = vmatpush.msra.mxu0 %v77
    %1344 = vmatpush.msra.mxu0 %v69
    %1345 = vmatpush.msra.mxu0 %v61
    %1346 = vmatmul.f32.gmra.mxu0 %v1168
    %v1347 = vpop.f32.mrf.mxu0
    %v1348 = vadd.f32 0.0, %v1347
    %1349 = vdwg.mxu0
    %1350 = vmatpush.msra.mxu0 %v309
    %1351 = vmatpush.msra.mxu0 %v301
    %1352 = vmatpush.msra.mxu0 %v293
    %1353 = vmatpush.msra.mxu0 %v285
    %1354 = vmatpush.msra.mxu0 %v277
    %1355 = vmatpush.msra.mxu0 %v269
    %1356 = vmatpush.msra.mxu0 %v261
    %1357 = vmatpush.msra.mxu0 %v253
    %1358 = vmatpush.msra.mxu0 %v245
    %1359 = vmatpush.msra.mxu0 %v237
    %1360 = vmatpush.msra.mxu0 %v229
    %1361 = vmatpush.msra.mxu0 %v221
    %1362 = vmatpush.msra.mxu0 %v213
    %1363 = vmatpush.msra.mxu0 %v205
    %1364 = vmatpush.msra.mxu0 %v197
    %1365 = vmatpush.msra.mxu0 %v189
    %1366 = vmatmul.f32.gmra.mxu0 %v1169
    %v1367 = vpop.f32.mrf.mxu0
    %v1368 = vadd.f32 %v1348, %v1367
    %1369 = vdwg.mxu0
    %1370 = vmatpush.msra.mxu0 %v182
    %1371 = vmatpush.msra.mxu0 %v174
    %1372 = vmatpush.msra.mxu0 %v166
    %1373 = vmatpush.msra.mxu0 %v158
    %1374 = vmatpush.msra.mxu0 %v150
    %1375 = vmatpush.msra.mxu0 %v142
    %1376 = vmatpush.msra.mxu0 %v134
    %1377 = vmatpush.msra.mxu0 %v126
    %1378 = vmatpush.msra.mxu0 %v118
    %1379 = vmatpush.msra.mxu0 %v110
    %1380 = vmatpush.msra.mxu0 %v102
    %1381 = vmatpush.msra.mxu0 %v94
    %1382 = vmatpush.msra.mxu0 %v86
    %1383 = vmatpush.msra.mxu0 %v78
    %1384 = vmatpush.msra.mxu0 %v70
    %1385 = vmatpush.msra.mxu0 %v62
    %1386 = vmatmul.f32.gmra.mxu0 %v1168
    %v1387 = vpop.f32.mrf.mxu0
    %v1388 = vadd.f32 0.0, %v1387
    %1389 = vdwg.mxu0
    %1390 = vmatpush.msra.mxu0 %v310
    %1391 = vmatpush.msra.mxu0 %v302
    %1392 = vmatpush.msra.mxu0 %v294
    %1393 = vmatpush.msra.mxu0 %v286
    %1394 = vmatpush.msra.mxu0 %v278
    %1395 = vmatpush.msra.mxu0 %v270
    %1396 = vmatpush.msra.mxu0 %v262
    %1397 = vmatpush.msra.mxu0 %v254
    %1398 = vmatpush.msra.mxu0 %v246
    %1399 = vmatpush.msra.mxu0 %v238
    %1400 = vmatpush.msra.mxu0 %v230
    %1401 = vmatpush.msra.mxu0 %v222
    %1402 = vmatpush.msra.mxu0 %v214
    %1403 = vmatpush.msra.mxu0 %v206
    %1404 = vmatpush.msra.mxu0 %v198
    %1405 = vmatpush.msra.mxu0 %v190
    %1406 = vmatmul.f32.gmra.mxu0 %v1169
    %v1407 = vpop.f32.mrf.mxu0
    %v1408 = vadd.f32 %v1388, %v1407
    %1409 = vdwg.mxu0
    %1410 = vmatpush.msra.mxu0 %v183
    %1411 = vmatpush.msra.mxu0 %v175
    %1412 = vmatpush.msra.mxu0 %v167
    %1413 = vmatpush.msra.mxu0 %v159
    %1414 = vmatpush.msra.mxu0 %v151
    %1415 = vmatpush.msra.mxu0 %v143
    %1416 = vmatpush.msra.mxu0 %v135
    %1417 = vmatpush.msra.mxu0 %v127
    %1418 = vmatpush.msra.mxu0 %v119
    %1419 = vmatpush.msra.mxu0 %v111
    %1420 = vmatpush.msra.mxu0 %v103
    %1421 = vmatpush.msra.mxu0 %v95
    %1422 = vmatpush.msra.mxu0 %v87
    %1423 = vmatpush.msra.mxu0 %v79
    %1424 = vmatpush.msra.mxu0 %v71
    %1425 = vmatpush.msra.mxu0 %v63
    %1426 = vmatmul.f32.gmra.mxu0 %v1168
    %v1427 = vpop.f32.mrf.mxu0
    %v1428 = vadd.f32 0.0, %v1427
    %1429 = vdwg.mxu0
    %1430 = vmatpush.msra.mxu0 %v311
    %1431 = vmatpush.msra.mxu0 %v303
    %1432 = vmatpush.msra.mxu0 %v295
    %1433 = vmatpush.msra.mxu0 %v287
    %1434 = vmatpush.msra.mxu0 %v279
    %1435 = vmatpush.msra.mxu0 %v271
    %1436 = vmatpush.msra.mxu0 %v263
    %1437 = vmatpush.msra.mxu0 %v255
    %1438 = vmatpush.msra.mxu0 %v247
    %1439 = vmatpush.msra.mxu0 %v239
    %1440 = vmatpush.msra.mxu0 %v231
    %1441 = vmatpush.msra.mxu0 %v223
    %1442 = vmatpush.msra.mxu0 %v215
    %1443 = vmatpush.msra.mxu0 %v207
    %1444 = vmatpush.msra.mxu0 %v199
    %1445 = vmatpush.msra.mxu0 %v191
    %1446 = vmatmul.f32.gmra.mxu0 %v1169
    %v1447 = vpop.f32.mrf.mxu0
    %v1448 = vadd.f32 %v1428, %v1447
    %1449 = vdwg.mxu0
    %1450 = vmatpush.msra.mxu0 %v184
    %1451 = vmatpush.msra.mxu0 %v176
    %1452 = vmatpush.msra.mxu0 %v168
    %1453 = vmatpush.msra.mxu0 %v160
    %1454 = vmatpush.msra.mxu0 %v152
    %1455 = vmatpush.msra.mxu0 %v144
    %1456 = vmatpush.msra.mxu0 %v136
    %1457 = vmatpush.msra.mxu0 %v128
    %1458 = vmatpush.msra.mxu0 %v120
    %1459 = vmatpush.msra.mxu0 %v112
    %1460 = vmatpush.msra.mxu0 %v104
    %1461 = vmatpush.msra.mxu0 %v96
    %1462 = vmatpush.msra.mxu0 %v88
    %1463 = vmatpush.msra.mxu0 %v80
    %1464 = vmatpush.msra.mxu0 %v72
    %1465 = vmatpush.msra.mxu0 %v64
    %1466 = vmatmul.f32.gmra.mxu0 %v1168
    %v1467 = vpop.f32.mrf.mxu0
    %v1468 = vadd.f32 0.0, %v1467
    %1469 = vdwg.mxu0
    %1470 = vmatpush.msra.mxu0 %v312
    %1471 = vmatpush.msra.mxu0 %v304
    %1472 = vmatpush.msra.mxu0 %v296
    %1473 = vmatpush.msra.mxu0 %v288
    %1474 = vmatpush.msra.mxu0 %v280
    %1475 = vmatpush.msra.mxu0 %v272
    %1476 = vmatpush.msra.mxu0 %v264
    %1477 = vmatpush.msra.mxu0 %v256
    %1478 = vmatpush.msra.mxu0 %v248
    %1479 = vmatpush.msra.mxu0 %v240
    %1480 = vmatpush.msra.mxu0 %v232
    %1481 = vmatpush.msra.mxu0 %v224
    %1482 = vmatpush.msra.mxu0 %v216
    %1483 = vmatpush.msra.mxu0 %v208
    %1484 = vmatpush.msra.mxu0 %v200
    %1485 = vmatpush.msra.mxu0 %v192
    %1486 = vmatmul.f32.gmra.mxu0 %v1169
    %v1487 = vpop.f32.mrf.mxu0
    %v1488 = vadd.f32 %v1468, %v1487
    %1489 = vdwg.mxu0
    %v1490 = vadd.f32 %v409, %v1208
    %v1491 = vadd.f32 %v450, %v1248
    %v1492 = vadd.f32 %v491, %v1288
    %v1493 = vadd.f32 %v532, %v1328
    %v1494 = vadd.f32 %v573, %v1368
    %v1495 = vadd.f32 %v614, %v1408
    %v1496 = vadd.f32 %v655, %v1448
    %v1497 = vadd.f32 %v696, %v1488
    %v1498 = vxor.u32 %v1490, 2147483648
    %v1499 = vxor.u32 %v1491, 2147483648
    %v1500 = vmul.f32 %v1498, 1.442695
    %v1501 = vpow.pop %v1500
    %v1502 = vmul.f32 %v1499, 1.442695
    %v1503 = vpow.pop %v1502
    %v1504 = vadd.f32 %v1501, 1.0
    %v1505 = vadd.f32 %v1503, 1.0
    %v1506 = vrcp.pop %v1504
    %v1507 = vmul.f32 %v1504, %v1506
    %v1508 = vsub.f32 1.0, %v1507
    %v1509 = vmul.f32 %v1506, %v1508
    %v1510 = vadd.f32 %v1506, %v1509
    %vm1511 = vweird.f32 %v1504
    %vm1512 = vweird.f32 %v1506
    %vm1513 = vmor %vm1511, %vm1512
    %v1514 = vsel %vm1513, %v1506, %v1510
    %v1515 = vand.u32 2147483647, %v1504
    %vm1516 = vcmp.eq.f32.partialorder %v1515, 8.507059e+37
    %v1517 = vand.u32 %v1504, 2147483648
    %v1518 = vor.u32 1.1754944e-38, %v1517
    %v1519 = vsel %vm1516, %v1518, %v1514
    %v1520 = vmul.f32 1.0, %v1519
    %v1521 = vrcp.pop %v1505
    %v1522 = vmul.f32 %v1505, %v1521
    %v1523 = vsub.f32 1.0, %v1522
    %v1524 = vmul.f32 %v1521, %v1523
    %v1525 = vadd.f32 %v1521, %v1524
    %vm1526 = vweird.f32 %v1505
    %vm1527 = vweird.f32 %v1521
    %vm1528 = vmor %vm1526, %vm1527
    %v1529 = vsel %vm1528, %v1521, %v1525
    %v1530 = vand.u32 2147483647, %v1505
    %vm1531 = vcmp.eq.f32.partialorder %v1530, 8.507059e+37
    %v1532 = vand.u32 %v1505, 2147483648
    %v1533 = vor.u32 1.1754944e-38, %v1532
    %v1534 = vsel %vm1531, %v1533, %v1529
    %v1535 = vmul.f32 1.0, %v1534
    %v1536 = vxor.u32 %v1492, 2147483648
    %v1537 = vxor.u32 %v1493, 2147483648
    %v1538 = vmul.f32 %v1536, 1.442695
    %v1539 = vpow.pop %v1538
    %v1540 = vmul.f32 %v1537, 1.442695
    %v1541 = vpow.pop %v1540
    %v1542 = vadd.f32 %v1539, 1.0
    %v1543 = vadd.f32 %v1541, 1.0
    %v1544 = vrcp.pop %v1542
    %v1545 = vmul.f32 %v1542, %v1544
    %v1546 = vsub.f32 1.0, %v1545
    %v1547 = vmul.f32 %v1544, %v1546
    %v1548 = vadd.f32 %v1544, %v1547
    %vm1549 = vweird.f32 %v1542
    %vm1550 = vweird.f32 %v1544
    %vm1551 = vmor %vm1549, %vm1550
    %v1552 = vsel %vm1551, %v1544, %v1548
    %v1553 = vand.u32 2147483647, %v1542
    %vm1554 = vcmp.eq.f32.partialorder %v1553, 8.507059e+37
    %v1555 = vand.u32 %v1542, 2147483648
    %v1556 = vor.u32 1.1754944e-38, %v1555
    %v1557 = vsel %vm1554, %v1556, %v1552
    %v1558 = vmul.f32 1.0, %v1557
    %v1559 = vrcp.pop %v1543
    %v1560 = vmul.f32 %v1543, %v1559
    %v1561 = vsub.f32 1.0, %v1560
    %v1562 = vmul.f32 %v1559, %v1561
    %v1563 = vadd.f32 %v1559, %v1562
    %vm1564 = vweird.f32 %v1543
    %vm1565 = vweird.f32 %v1559
    %vm1566 = vmor %vm1564, %vm1565
    %v1567 = vsel %vm1566, %v1559, %v1563
    %v1568 = vand.u32 2147483647, %v1543
    %vm1569 = vcmp.eq.f32.partialorder %v1568, 8.507059e+37
    %v1570 = vand.u32 %v1543, 2147483648
    %v1571 = vor.u32 1.1754944e-38, %v1570
    %v1572 = vsel %vm1569, %v1571, %v1567
    %v1573 = vmul.f32 1.0, %v1572
    %v1574 = vtanh.pop %v1494
    %v1575 = vtanh.pop %v1495
    %v1576 = vxor.u32 %v1496, 2147483648
    %v1577 = vxor.u32 %v1497, 2147483648
    %v1578 = vmul.f32 %v1576, 1.442695
    %v1579 = vpow.pop %v1578
    %v1580 = vmul.f32 %v1577, 1.442695
    %v1581 = vpow.pop %v1580
    %v1582 = vadd.f32 %v1579, 1.0
    %v1583 = vadd.f32 %v1581, 1.0
    %v1584 = vrcp.pop %v1582
    %v1585 = vmul.f32 %v1582, %v1584
    %v1586 = vsub.f32 1.0, %v1585
    %v1587 = vmul.f32 %v1584, %v1586
    %v1588 = vadd.f32 %v1584, %v1587
    %vm1589 = vweird.f32 %v1582
    %vm1590 = vweird.f32 %v1584
    %vm1591 = vmor %vm1589, %vm1590
    %v1592 = vsel %vm1591, %v1584, %v1588
    %v1593 = vand.u32 2147483647, %v1582
    %vm1594 = vcmp.eq.f32.partialorder %v1593, 8.507059e+37
    %v1595 = vand.u32 %v1582, 2147483648
    %v1596 = vor.u32 1.1754944e-38, %v1595
    %v1597 = vsel %vm1594, %v1596, %v1592
    %v1598 = vmul.f32 1.0, %v1597
    %v1599 = vrcp.pop %v1583
    %v1600 = vmul.f32 %v1583, %v1599
    %v1601 = vsub.f32 1.0, %v1600
    %v1602 = vmul.f32 %v1599, %v1601
    %v1603 = vadd.f32 %v1599, %v1602
    %vm1604 = vweird.f32 %v1583
    %vm1605 = vweird.f32 %v1599
    %vm1606 = vmor %vm1604, %vm1605
    %v1607 = vsel %vm1606, %v1599, %v1603
    %v1608 = vand.u32 2147483647, %v1583
    %vm1609 = vcmp.eq.f32.partialorder %v1608, 8.507059e+37
    %v1610 = vand.u32 %v1583, 2147483648
    %v1611 = vor.u32 1.1754944e-38, %v1610
    %v1612 = vsel %vm1609, %v1611, %v1607
    %v1613 = vmul.f32 1.0, %v1612
    %v1614 = vmul.f32 %v1558, %v1164
    %v1615 = vmul.f32 %v1573, %v1165
    %v1616 = vmul.f32 %v1520, %v1574
    %v1617 = vmul.f32 %v1535, %v1575
    %v1618 = vadd.f32 %v1614, %v1616
    %v1619 = vadd.f32 %v1615, %v1617
    %v1620 = vtanh.pop %v1618
    %v1621 = vtanh.pop %v1619
    %v1622 = vmul.f32 %v1598, %v1620
    %v1623 = vmul.f32 %v1613, %v1621
    %1624 = vmatpush.msra.mxu0 %v177
    %1625 = vmatpush.msra.mxu0 %v169
    %1626 = vmatpush.msra.mxu0 %v161
    %1627 = vmatpush.msra.mxu0 %v153
    %1628 = vmatpush.msra.mxu0 %v145
    %1629 = vmatpush.msra.mxu0 %v137
    %1630 = vmatpush.msra.mxu0 %v129
    %1631 = vmatpush.msra.mxu0 %v121
    %1632 = vmatpush.msra.mxu0 %v113
    %1633 = vmatpush.msra.mxu0 %v105
    %1634 = vmatpush.msra.mxu0 %v97
    %1635 = vmatpush.msra.mxu0 %v89
    %1636 = vmatpush.msra.mxu0 %v81
    %1637 = vmatpush.msra.mxu0 %v73
    %1638 = vmatpush.msra.mxu0 %v65
    %1639 = vmatpush.msra.mxu0 %v57
    %1640 = vmatmul.f32.gmra.mxu0 %v1622
    %v1641 = vpop.f32.mrf.mxu0
    %v1642 = vadd.f32 0.0, %v1641
    %1643 = vdwg.mxu0
    %1644 = vmatpush.msra.mxu0 %v305
    %1645 = vmatpush.msra.mxu0 %v297
    %1646 = vmatpush.msra.mxu0 %v289
    %1647 = vmatpush.msra.mxu0 %v281
    %1648 = vmatpush.msra.mxu0 %v273
    %1649 = vmatpush.msra.mxu0 %v265
    %1650 = vmatpush.msra.mxu0 %v257
    %1651 = vmatpush.msra.mxu0 %v249
    %1652 = vmatpush.msra.mxu0 %v241
    %1653 = vmatpush.msra.mxu0 %v233
    %1654 = vmatpush.msra.mxu0 %v225
    %1655 = vmatpush.msra.mxu0 %v217
    %1656 = vmatpush.msra.mxu0 %v209
    %1657 = vmatpush.msra.mxu0 %v201
    %1658 = vmatpush.msra.mxu0 %v193
    %1659 = vmatpush.msra.mxu0 %v185
    %1660 = vmatmul.f32.gmra.mxu0 %v1623
    %v1661 = vpop.f32.mrf.mxu0
    %v1662 = vadd.f32 %v1642, %v1661
    %1663 = vdwg.mxu0
    %1664 = vmatpush.msra.mxu0 %v178
    %1665 = vmatpush.msra.mxu0 %v170
    %1666 = vmatpush.msra.mxu0 %v162
    %1667 = vmatpush.msra.mxu0 %v154
    %1668 = vmatpush.msra.mxu0 %v146
    %1669 = vmatpush.msra.mxu0 %v138
    %1670 = vmatpush.msra.mxu0 %v130
    %1671 = vmatpush.msra.mxu0 %v122
    %1672 = vmatpush.msra.mxu0 %v114
    %1673 = vmatpush.msra.mxu0 %v106
    %1674 = vmatpush.msra.mxu0 %v98
    %1675 = vmatpush.msra.mxu0 %v90
    %1676 = vmatpush.msra.mxu0 %v82
    %1677 = vmatpush.msra.mxu0 %v74
    %1678 = vmatpush.msra.mxu0 %v66
    %1679 = vmatpush.msra.mxu0 %v58
    %1680 = vmatmul.f32.gmra.mxu0 %v1622
    %v1681 = vpop.f32.mrf.mxu0
    %v1682 = vadd.f32 0.0, %v1681
    %1683 = vdwg.mxu0
    %1684 = vmatpush.msra.mxu0 %v306
    %1685 = vmatpush.msra.mxu0 %v298
    %1686 = vmatpush.msra.mxu0 %v290
    %1687 = vmatpush.msra.mxu0 %v282
    %1688 = vmatpush.msra.mxu0 %v274
    %1689 = vmatpush.msra.mxu0 %v266
    %1690 = vmatpush.msra.mxu0 %v258
    %1691 = vmatpush.msra.mxu0 %v250
    %1692 = vmatpush.msra.mxu0 %v242
    %1693 = vmatpush.msra.mxu0 %v234
    %1694 = vmatpush.msra.mxu0 %v226
    %1695 = vmatpush.msra.mxu0 %v218
    %1696 = vmatpush.msra.mxu0 %v210
    %1697 = vmatpush.msra.mxu0 %v202
    %1698 = vmatpush.msra.mxu0 %v194
    %1699 = vmatpush.msra.mxu0 %v186
    %1700 = vmatmul.f32.gmra.mxu0 %v1623
    %v1701 = vpop.f32.mrf.mxu0
    %v1702 = vadd.f32 %v1682, %v1701
    %1703 = vdwg.mxu0
    %1704 = vmatpush.msra.mxu0 %v179
    %1705 = vmatpush.msra.mxu0 %v171
    %1706 = vmatpush.msra.mxu0 %v163
    %1707 = vmatpush.msra.mxu0 %v155
    %1708 = vmatpush.msra.mxu0 %v147
    %1709 = vmatpush.msra.mxu0 %v139
    %1710 = vmatpush.msra.mxu0 %v131
    %1711 = vmatpush.msra.mxu0 %v123
    %1712 = vmatpush.msra.mxu0 %v115
    %1713 = vmatpush.msra.mxu0 %v107
    %1714 = vmatpush.msra.mxu0 %v99
    %1715 = vmatpush.msra.mxu0 %v91
    %1716 = vmatpush.msra.mxu0 %v83
    %1717 = vmatpush.msra.mxu0 %v75
    %1718 = vmatpush.msra.mxu0 %v67
    %1719 = vmatpush.msra.mxu0 %v59
    %1720 = vmatmul.f32.gmra.mxu0 %v1622
    %v1721 = vpop.f32.mrf.mxu0
    %v1722 = vadd.f32 0.0, %v1721
    %1723 = vdwg.mxu0
    %1724 = vmatpush.msra.mxu0 %v307
    %1725 = vmatpush.msra.mxu0 %v299
    %1726 = vmatpush.msra.mxu0 %v291
    %1727 = vmatpush.msra.mxu0 %v283
    %1728 = vmatpush.msra.mxu0 %v275
    %1729 = vmatpush.msra.mxu0 %v267
    %1730 = vmatpush.msra.mxu0 %v259
    %1731 = vmatpush.msra.mxu0 %v251
    %1732 = vmatpush.msra.mxu0 %v243
    %1733 = vmatpush.msra.mxu0 %v235
    %1734 = vmatpush.msra.mxu0 %v227
    %1735 = vmatpush.msra.mxu0 %v219
    %1736 = vmatpush.msra.mxu0 %v211
    %1737 = vmatpush.msra.mxu0 %v203
    %1738 = vmatpush.msra.mxu0 %v195
    %1739 = vmatpush.msra.mxu0 %v187
    %1740 = vmatmul.f32.gmra.mxu0 %v1623
    %v1741 = vpop.f32.mrf.mxu0
    %v1742 = vadd.f32 %v1722, %v1741
    %1743 = vdwg.mxu0
    %1744 = vmatpush.msra.mxu0 %v180
    %1745 = vmatpush.msra.mxu0 %v172
    %1746 = vmatpush.msra.mxu0 %v164
    %1747 = vmatpush.msra.mxu0 %v156
    %1748 = vmatpush.msra.mxu0 %v148
    %1749 = vmatpush.msra.mxu0 %v140
    %1750 = vmatpush.msra.mxu0 %v132
    %1751 = vmatpush.msra.mxu0 %v124
    %1752 = vmatpush.msra.mxu0 %v116
    %1753 = vmatpush.msra.mxu0 %v108
    %1754 = vmatpush.msra.mxu0 %v100
    %1755 = vmatpush.msra.mxu0 %v92
    %1756 = vmatpush.msra.mxu0 %v84
    %1757 = vmatpush.msra.mxu0 %v76
    %1758 = vmatpush.msra.mxu0 %v68
    %1759 = vmatpush.msra.mxu0 %v60
    %1760 = vmatmul.f32.gmra.mxu0 %v1622
    %v1761 = vpop.f32.mrf.mxu0
    %v1762 = vadd.f32 0.0, %v1761
    %1763 = vdwg.mxu0
    %1764 = vmatpush.msra.mxu0 %v308
    %1765 = vmatpush.msra.mxu0 %v300
    %1766 = vmatpush.msra.mxu0 %v292
    %1767 = vmatpush.msra.mxu0 %v284
    %1768 = vmatpush.msra.mxu0 %v276
    %1769 = vmatpush.msra.mxu0 %v268
    %1770 = vmatpush.msra.mxu0 %v260
    %1771 = vmatpush.msra.mxu0 %v252
    %1772 = vmatpush.msra.mxu0 %v244
    %1773 = vmatpush.msra.mxu0 %v236
    %1774 = vmatpush.msra.mxu0 %v228
    %1775 = vmatpush.msra.mxu0 %v220
    %1776 = vmatpush.msra.mxu0 %v212
    %1777 = vmatpush.msra.mxu0 %v204
    %1778 = vmatpush.msra.mxu0 %v196
    %1779 = vmatpush.msra.mxu0 %v188
    %1780 = vmatmul.f32.gmra.mxu0 %v1623
    %v1781 = vpop.f32.mrf.mxu0
    %v1782 = vadd.f32 %v1762, %v1781
    %1783 = vdwg.mxu0
    %1784 = vmatpush.msra.mxu0 %v181
    %1785 = vmatpush.msra.mxu0 %v173
    %1786 = vmatpush.msra.mxu0 %v165
    %1787 = vmatpush.msra.mxu0 %v157
    %1788 = vmatpush.msra.mxu0 %v149
    %1789 = vmatpush.msra.mxu0 %v141
    %1790 = vmatpush.msra.mxu0 %v133
    %1791 = vmatpush.msra.mxu0 %v125
    %1792 = vmatpush.msra.mxu0 %v117
    %1793 = vmatpush.msra.mxu0 %v109
    %1794 = vmatpush.msra.mxu0 %v101
    %1795 = vmatpush.msra.mxu0 %v93
    %1796 = vmatpush.msra.mxu0 %v85
    %1797 = vmatpush.msra.mxu0 %v77
    %1798 = vmatpush.msra.mxu0 %v69
    %1799 = vmatpush.msra.mxu0 %v61
    %1800 = vmatmul.f32.gmra.mxu0 %v1622
    %v1801 = vpop.f32.mrf.mxu0
    %v1802 = vadd.f32 0.0, %v1801
    %1803 = vdwg.mxu0
    %1804 = vmatpush.msra.mxu0 %v309
    %1805 = vmatpush.msra.mxu0 %v301
    %1806 = vmatpush.msra.mxu0 %v293
    %1807 = vmatpush.msra.mxu0 %v285
    %1808 = vmatpush.msra.mxu0 %v277
    %1809 = vmatpush.msra.mxu0 %v269
    %1810 = vmatpush.msra.mxu0 %v261
    %1811 = vmatpush.msra.mxu0 %v253
    %1812 = vmatpush.msra.mxu0 %v245
    %1813 = vmatpush.msra.mxu0 %v237
    %1814 = vmatpush.msra.mxu0 %v229
    %1815 = vmatpush.msra.mxu0 %v221
    %1816 = vmatpush.msra.mxu0 %v213
    %1817 = vmatpush.msra.mxu0 %v205
    %1818 = vmatpush.msra.mxu0 %v197
    %1819 = vmatpush.msra.mxu0 %v189
    %1820 = vmatmul.f32.gmra.mxu0 %v1623
    %v1821 = vpop.f32.mrf.mxu0
    %v1822 = vadd.f32 %v1802, %v1821
    %1823 = vdwg.mxu0
    %1824 = vmatpush.msra.mxu0 %v182
    %1825 = vmatpush.msra.mxu0 %v174
    %1826 = vmatpush.msra.mxu0 %v166
    %1827 = vmatpush.msra.mxu0 %v158
    %1828 = vmatpush.msra.mxu0 %v150
    %1829 = vmatpush.msra.mxu0 %v142
    %1830 = vmatpush.msra.mxu0 %v134
    %1831 = vmatpush.msra.mxu0 %v126
    %1832 = vmatpush.msra.mxu0 %v118
    %1833 = vmatpush.msra.mxu0 %v110
    %1834 = vmatpush.msra.mxu0 %v102
    %1835 = vmatpush.msra.mxu0 %v94
    %1836 = vmatpush.msra.mxu0 %v86
    %1837 = vmatpush.msra.mxu0 %v78
    %1838 = vmatpush.msra.mxu0 %v70
    %1839 = vmatpush.msra.mxu0 %v62
    %1840 = vmatmul.f32.gmra.mxu0 %v1622
    %v1841 = vpop.f32.mrf.mxu0
    %v1842 = vadd.f32 0.0, %v1841
    %1843 = vdwg.mxu0
    %1844 = vmatpush.msra.mxu0 %v310
    %1845 = vmatpush.msra.mxu0 %v302
    %1846 = vmatpush.msra.mxu0 %v294
    %1847 = vmatpush.msra.mxu0 %v286
    %1848 = vmatpush.msra.mxu0 %v278
    %1849 = vmatpush.msra.mxu0 %v270
    %1850 = vmatpush.msra.mxu0 %v262
    %1851 = vmatpush.msra.mxu0 %v254
    %1852 = vmatpush.msra.mxu0 %v246
    %1853 = vmatpush.msra.mxu0 %v238
    %1854 = vmatpush.msra.mxu0 %v230
    %1855 = vmatpush.msra.mxu0 %v222
    %1856 = vmatpush.msra.mxu0 %v214
    %1857 = vmatpush.msra.mxu0 %v206
    %1858 = vmatpush.msra.mxu0 %v198
    %1859 = vmatpush.msra.mxu0 %v190
    %1860 = vmatmul.f32.gmra.mxu0 %v1623
    %v1861 = vpop.f32.mrf.mxu0
    %v1862 = vadd.f32 %v1842, %v1861
    %1863 = vdwg.mxu0
    %1864 = vmatpush.msra.mxu0 %v183
    %1865 = vmatpush.msra.mxu0 %v175
    %1866 = vmatpush.msra.mxu0 %v167
    %1867 = vmatpush.msra.mxu0 %v159
    %1868 = vmatpush.msra.mxu0 %v151
    %1869 = vmatpush.msra.mxu0 %v143
    %1870 = vmatpush.msra.mxu0 %v135
    %1871 = vmatpush.msra.mxu0 %v127
    %1872 = vmatpush.msra.mxu0 %v119
    %1873 = vmatpush.msra.mxu0 %v111
    %1874 = vmatpush.msra.mxu0 %v103
    %1875 = vmatpush.msra.mxu0 %v95
    %1876 = vmatpush.msra.mxu0 %v87
    %1877 = vmatpush.msra.mxu0 %v79
    %1878 = vmatpush.msra.mxu0 %v71
    %1879 = vmatpush.msra.mxu0 %v63
    %1880 = vmatmul.f32.gmra.mxu0 %v1622
    %v1881 = vpop.f32.mrf.mxu0
    %v1882 = vadd.f32 0.0, %v1881
    %1883 = vdwg.mxu0
    %1884 = vmatpush.msra.mxu0 %v311
    %1885 = vmatpush.msra.mxu0 %v303
    %1886 = vmatpush.msra.mxu0 %v295
    %1887 = vmatpush.msra.mxu0 %v287
    %1888 = vmatpush.msra.mxu0 %v279
    %1889 = vmatpush.msra.mxu0 %v271
    %1890 = vmatpush.msra.mxu0 %v263
    %1891 = vmatpush.msra.mxu0 %v255
    %1892 = vmatpush.msra.mxu0 %v247
    %1893 = vmatpush.msra.mxu0 %v239
    %1894 = vmatpush.msra.mxu0 %v231
    %1895 = vmatpush.msra.mxu0 %v223
    %1896 = vmatpush.msra.mxu0 %v215
    %1897 = vmatpush.msra.mxu0 %v207
    %1898 = vmatpush.msra.mxu0 %v199
    %1899 = vmatpush.msra.mxu0 %v191
    %1900 = vmatmul.f32.gmra.mxu0 %v1623
    %v1901 = vpop.f32.mrf.mxu0
    %v1902 = vadd.f32 %v1882, %v1901
    %1903 = vdwg.mxu0
    %1904 = vmatpush.msra.mxu0 %v184
    %1905 = vmatpush.msra.mxu0 %v176
    %1906 = vmatpush.msra.mxu0 %v168
    %1907 = vmatpush.msra.mxu0 %v160
    %1908 = vmatpush.msra.mxu0 %v152
    %1909 = vmatpush.msra.mxu0 %v144
    %1910 = vmatpush.msra.mxu0 %v136
    %1911 = vmatpush.msra.mxu0 %v128
    %1912 = vmatpush.msra.mxu0 %v120
    %1913 = vmatpush.msra.mxu0 %v112
    %1914 = vmatpush.msra.mxu0 %v104
    %1915 = vmatpush.msra.mxu0 %v96
    %1916 = vmatpush.msra.mxu0 %v88
    %1917 = vmatpush.msra.mxu0 %v80
    %1918 = vmatpush.msra.mxu0 %v72
    %1919 = vmatpush.msra.mxu0 %v64
    %1920 = vmatmul.f32.gmra.mxu0 %v1622
    %v1921 = vpop.f32.mrf.mxu0
    %v1922 = vadd.f32 0.0, %v1921
    %1923 = vdwg.mxu0
    %1924 = vmatpush.msra.mxu0 %v312
    %1925 = vmatpush.msra.mxu0 %v304
    %1926 = vmatpush.msra.mxu0 %v296
    %1927 = vmatpush.msra.mxu0 %v288
    %1928 = vmatpush.msra.mxu0 %v280
    %1929 = vmatpush.msra.mxu0 %v272
    %1930 = vmatpush.msra.mxu0 %v264
    %1931 = vmatpush.msra.mxu0 %v256
    %1932 = vmatpush.msra.mxu0 %v248
    %1933 = vmatpush.msra.mxu0 %v240
    %1934 = vmatpush.msra.mxu0 %v232
    %1935 = vmatpush.msra.mxu0 %v224
    %1936 = vmatpush.msra.mxu0 %v216
    %1937 = vmatpush.msra.mxu0 %v208
    %1938 = vmatpush.msra.mxu0 %v200
    %1939 = vmatpush.msra.mxu0 %v192
    %1940 = vmatmul.f32.gmra.mxu0 %v1623
    %v1941 = vpop.f32.mrf.mxu0
    %v1942 = vadd.f32 %v1922, %v1941
    %1943 = vdwg.mxu0
    %v1944 = vadd.f32 %v412, %v1662
    %v1945 = vadd.f32 %v453, %v1702
    %v1946 = vadd.f32 %v494, %v1742
    %v1947 = vadd.f32 %v535, %v1782
    %v1948 = vadd.f32 %v576, %v1822
    %v1949 = vadd.f32 %v617, %v1862
    %v1950 = vadd.f32 %v658, %v1902
    %v1951 = vadd.f32 %v699, %v1942
    %v1952 = vxor.u32 %v1944, 2147483648
    %v1953 = vxor.u32 %v1945, 2147483648
    %v1954 = vmul.f32 %v1952, 1.442695
    %v1955 = vpow.pop %v1954
    %v1956 = vmul.f32 %v1953, 1.442695
    %v1957 = vpow.pop %v1956
    %v1958 = vadd.f32 %v1955, 1.0
    %v1959 = vadd.f32 %v1957, 1.0
    %v1960 = vrcp.pop %v1958
    %v1961 = vmul.f32 %v1958, %v1960
    %v1962 = vsub.f32 1.0, %v1961
    %v1963 = vmul.f32 %v1960, %v1962
    %v1964 = vadd.f32 %v1960, %v1963
    %vm1965 = vweird.f32 %v1958
    %vm1966 = vweird.f32 %v1960
    %vm1967 = vmor %vm1965, %vm1966
    %v1968 = vsel %vm1967, %v1960, %v1964
    %v1969 = vand.u32 2147483647, %v1958
    %vm1970 = vcmp.eq.f32.partialorder %v1969, 8.507059e+37
    %v1971 = vand.u32 %v1958, 2147483648
    %v1972 = vor.u32 1.1754944e-38, %v1971
    %v1973 = vsel %vm1970, %v1972, %v1968
    %v1974 = vmul.f32 1.0, %v1973
    %v1975 = vrcp.pop %v1959
    %v1976 = vmul.f32 %v1959, %v1975
    %v1977 = vsub.f32 1.0, %v1976
    %v1978 = vmul.f32 %v1975, %v1977
    %v1979 = vadd.f32 %v1975, %v1978
    %vm1980 = vweird.f32 %v1959
    %vm1981 = vweird.f32 %v1975
    %vm1982 = vmor %vm1980, %vm1981
    %v1983 = vsel %vm1982, %v1975, %v1979
    %v1984 = vand.u32 2147483647, %v1959
    %vm1985 = vcmp.eq.f32.partialorder %v1984, 8.507059e+37
    %v1986 = vand.u32 %v1959, 2147483648
    %v1987 = vor.u32 1.1754944e-38, %v1986
    %v1988 = vsel %vm1985, %v1987, %v1983
    %v1989 = vmul.f32 1.0, %v1988
    %v1990 = vxor.u32 %v1946, 2147483648
    %v1991 = vxor.u32 %v1947, 2147483648
    %v1992 = vmul.f32 %v1990, 1.442695
    %v1993 = vpow.pop %v1992
    %v1994 = vmul.f32 %v1991, 1.442695
    %v1995 = vpow.pop %v1994
    %v1996 = vadd.f32 %v1993, 1.0
    %v1997 = vadd.f32 %v1995, 1.0
    %v1998 = vrcp.pop %v1996
    %v1999 = vmul.f32 %v1996, %v1998
    %v2000 = vsub.f32 1.0, %v1999
    %v2001 = vmul.f32 %v1998, %v2000
    %v2002 = vadd.f32 %v1998, %v2001
    %vm2003 = vweird.f32 %v1996
    %vm2004 = vweird.f32 %v1998
    %vm2005 = vmor %vm2003, %vm2004
    %v2006 = vsel %vm2005, %v1998, %v2002
    %v2007 = vand.u32 2147483647, %v1996
    %vm2008 = vcmp.eq.f32.partialorder %v2007, 8.507059e+37
    %v2009 = vand.u32 %v1996, 2147483648
    %v2010 = vor.u32 1.1754944e-38, %v2009
    %v2011 = vsel %vm2008, %v2010, %v2006
    %v2012 = vmul.f32 1.0, %v2011
    %v2013 = vrcp.pop %v1997
    %v2014 = vmul.f32 %v1997, %v2013
    %v2015 = vsub.f32 1.0, %v2014
    %v2016 = vmul.f32 %v2013, %v2015
    %v2017 = vadd.f32 %v2013, %v2016
    %vm2018 = vweird.f32 %v1997
    %vm2019 = vweird.f32 %v2013
    %vm2020 = vmor %vm2018, %vm2019
    %v2021 = vsel %vm2020, %v2013, %v2017
    %v2022 = vand.u32 2147483647, %v1997
    %vm2023 = vcmp.eq.f32.partialorder %v2022, 8.507059e+37
    %v2024 = vand.u32 %v1997, 2147483648
    %v2025 = vor.u32 1.1754944e-38, %v2024
    %v2026 = vsel %vm2023, %v2025, %v2021
    %v2027 = vmul.f32 1.0, %v2026
    %v2028 = vtanh.pop %v1948
    %v2029 = vtanh.pop %v1949
    %v2030 = vxor.u32 %v1950, 2147483648
    %v2031 = vxor.u32 %v1951, 2147483648
    %v2032 = vmul.f32 %v2030, 1.442695
    %v2033 = vpow.pop %v2032
    %v2034 = vmul.f32 %v2031, 1.442695
    %v2035 = vpow.pop %v2034
    %v2036 = vadd.f32 %v2033, 1.0
    %v2037 = vadd.f32 %v2035, 1.0
    %v2038 = vrcp.pop %v2036
    %v2039 = vmul.f32 %v2036, %v2038
    %v2040 = vsub.f32 1.0, %v2039
    %v2041 = vmul.f32 %v2038, %v2040
    %v2042 = vadd.f32 %v2038, %v2041
    %vm2043 = vweird.f32 %v2036
    %vm2044 = vweird.f32 %v2038
    %vm2045 = vmor %vm2043, %vm2044
    %v2046 = vsel %vm2045, %v2038, %v2042
    %v2047 = vand.u32 2147483647, %v2036
    %vm2048 = vcmp.eq.f32.partialorder %v2047, 8.507059e+37
    %v2049 = vand.u32 %v2036, 2147483648
    %v2050 = vor.u32 1.1754944e-38, %v2049
    %v2051 = vsel %vm2048, %v2050, %v2046
    %v2052 = vmul.f32 1.0, %v2051
    %v2053 = vrcp.pop %v2037
    %v2054 = vmul.f32 %v2037, %v2053
    %v2055 = vsub.f32 1.0, %v2054
    %v2056 = vmul.f32 %v2053, %v2055
    %v2057 = vadd.f32 %v2053, %v2056
    %vm2058 = vweird.f32 %v2037
    %vm2059 = vweird.f32 %v2053
    %vm2060 = vmor %vm2058, %vm2059
    %v2061 = vsel %vm2060, %v2053, %v2057
    %v2062 = vand.u32 2147483647, %v2037
    %vm2063 = vcmp.eq.f32.partialorder %v2062, 8.507059e+37
    %v2064 = vand.u32 %v2037, 2147483648
    %v2065 = vor.u32 1.1754944e-38, %v2064
    %v2066 = vsel %vm2063, %v2065, %v2061
    %v2067 = vmul.f32 1.0, %v2066
    %v2068 = vmul.f32 %v2012, %v1618
    %v2069 = vmul.f32 %v2027, %v1619
    %v2070 = vmul.f32 %v1974, %v2028
    %v2071 = vmul.f32 %v1989, %v2029
    %v2072 = vadd.f32 %v2068, %v2070
    %v2073 = vadd.f32 %v2069, %v2071
    %v2074 = vtanh.pop %v2072
    %v2075 = vtanh.pop %v2073
    %v2076 = vmul.f32 %v2052, %v2074
    %v2077 = vmul.f32 %v2067, %v2075
    %2078 = vmatpush.msra.mxu0 %v177
    %2079 = vmatpush.msra.mxu0 %v169
    %2080 = vmatpush.msra.mxu0 %v161
    %2081 = vmatpush.msra.mxu0 %v153
    %2082 = vmatpush.msra.mxu0 %v145
    %2083 = vmatpush.msra.mxu0 %v137
    %2084 = vmatpush.msra.mxu0 %v129
    %2085 = vmatpush.msra.mxu0 %v121
    %2086 = vmatpush.msra.mxu0 %v113
    %2087 = vmatpush.msra.mxu0 %v105
    %2088 = vmatpush.msra.mxu0 %v97
    %2089 = vmatpush.msra.mxu0 %v89
    %2090 = vmatpush.msra.mxu0 %v81
    %2091 = vmatpush.msra.mxu0 %v73
    %2092 = vmatpush.msra.mxu0 %v65
    %2093 = vmatpush.msra.mxu0 %v57
    %2094 = vmatmul.f32.gmra.mxu0 %v2076
    %v2095 = vpop.f32.mrf.mxu0
    %v2096 = vadd.f32 0.0, %v2095
    %2097 = vdwg.mxu0
    %2098 = vmatpush.msra.mxu0 %v305
    %2099 = vmatpush.msra.mxu0 %v297
    %2100 = vmatpush.msra.mxu0 %v289
    %2101 = vmatpush.msra.mxu0 %v281
    %2102 = vmatpush.msra.mxu0 %v273
    %2103 = vmatpush.msra.mxu0 %v265
    %2104 = vmatpush.msra.mxu0 %v257
    %2105 = vmatpush.msra.mxu0 %v249
    %2106 = vmatpush.msra.mxu0 %v241
    %2107 = vmatpush.msra.mxu0 %v233
    %2108 = vmatpush.msra.mxu0 %v225
    %2109 = vmatpush.msra.mxu0 %v217
    %2110 = vmatpush.msra.mxu0 %v209
    %2111 = vmatpush.msra.mxu0 %v201
    %2112 = vmatpush.msra.mxu0 %v193
    %2113 = vmatpush.msra.mxu0 %v185
    %2114 = vmatmul.f32.gmra.mxu0 %v2077
    %v2115 = vpop.f32.mrf.mxu0
    %v2116 = vadd.f32 %v2096, %v2115
    %2117 = vdwg.mxu0
    %2118 = vmatpush.msra.mxu0 %v178
    %2119 = vmatpush.msra.mxu0 %v170
    %2120 = vmatpush.msra.mxu0 %v162
    %2121 = vmatpush.msra.mxu0 %v154
    %2122 = vmatpush.msra.mxu0 %v146
    %2123 = vmatpush.msra.mxu0 %v138
    %2124 = vmatpush.msra.mxu0 %v130
    %2125 = vmatpush.msra.mxu0 %v122
    %2126 = vmatpush.msra.mxu0 %v114
    %2127 = vmatpush.msra.mxu0 %v106
    %2128 = vmatpush.msra.mxu0 %v98
    %2129 = vmatpush.msra.mxu0 %v90
    %2130 = vmatpush.msra.mxu0 %v82
    %2131 = vmatpush.msra.mxu0 %v74
    %2132 = vmatpush.msra.mxu0 %v66
    %2133 = vmatpush.msra.mxu0 %v58
    %2134 = vmatmul.f32.gmra.mxu0 %v2076
    %v2135 = vpop.f32.mrf.mxu0
    %v2136 = vadd.f32 0.0, %v2135
    %2137 = vdwg.mxu0
    %2138 = vmatpush.msra.mxu0 %v306
    %2139 = vmatpush.msra.mxu0 %v298
    %2140 = vmatpush.msra.mxu0 %v290
    %2141 = vmatpush.msra.mxu0 %v282
    %2142 = vmatpush.msra.mxu0 %v274
    %2143 = vmatpush.msra.mxu0 %v266
    %2144 = vmatpush.msra.mxu0 %v258
    %2145 = vmatpush.msra.mxu0 %v250
    %2146 = vmatpush.msra.mxu0 %v242
    %2147 = vmatpush.msra.mxu0 %v234
    %2148 = vmatpush.msra.mxu0 %v226
    %2149 = vmatpush.msra.mxu0 %v218
    %2150 = vmatpush.msra.mxu0 %v210
    %2151 = vmatpush.msra.mxu0 %v202
    %2152 = vmatpush.msra.mxu0 %v194
    %2153 = vmatpush.msra.mxu0 %v186
    %2154 = vmatmul.f32.gmra.mxu0 %v2077
    %v2155 = vpop.f32.mrf.mxu0
    %v2156 = vadd.f32 %v2136, %v2155
    %2157 = vdwg.mxu0
    %2158 = vmatpush.msra.mxu0 %v179
    %2159 = vmatpush.msra.mxu0 %v171
    %2160 = vmatpush.msra.mxu0 %v163
    %2161 = vmatpush.msra.mxu0 %v155
    %2162 = vmatpush.msra.mxu0 %v147
    %2163 = vmatpush.msra.mxu0 %v139
    %2164 = vmatpush.msra.mxu0 %v131
    %2165 = vmatpush.msra.mxu0 %v123
    %2166 = vmatpush.msra.mxu0 %v115
    %2167 = vmatpush.msra.mxu0 %v107
    %2168 = vmatpush.msra.mxu0 %v99
    %2169 = vmatpush.msra.mxu0 %v91
    %2170 = vmatpush.msra.mxu0 %v83
    %2171 = vmatpush.msra.mxu0 %v75
    %2172 = vmatpush.msra.mxu0 %v67
    %2173 = vmatpush.msra.mxu0 %v59
    %2174 = vmatmul.f32.gmra.mxu0 %v2076
    %v2175 = vpop.f32.mrf.mxu0
    %v2176 = vadd.f32 0.0, %v2175
    %2177 = vdwg.mxu0
    %2178 = vmatpush.msra.mxu0 %v307
    %2179 = vmatpush.msra.mxu0 %v299
    %2180 = vmatpush.msra.mxu0 %v291
    %2181 = vmatpush.msra.mxu0 %v283
    %2182 = vmatpush.msra.mxu0 %v275
    %2183 = vmatpush.msra.mxu0 %v267
    %2184 = vmatpush.msra.mxu0 %v259
    %2185 = vmatpush.msra.mxu0 %v251
    %2186 = vmatpush.msra.mxu0 %v243
    %2187 = vmatpush.msra.mxu0 %v235
    %2188 = vmatpush.msra.mxu0 %v227
    %2189 = vmatpush.msra.mxu0 %v219
    %2190 = vmatpush.msra.mxu0 %v211
    %2191 = vmatpush.msra.mxu0 %v203
    %2192 = vmatpush.msra.mxu0 %v195
    %2193 = vmatpush.msra.mxu0 %v187
    %2194 = vmatmul.f32.gmra.mxu0 %v2077
    %v2195 = vpop.f32.mrf.mxu0
    %v2196 = vadd.f32 %v2176, %v2195
    %2197 = vdwg.mxu0
    %2198 = vmatpush.msra.mxu0 %v180
    %2199 = vmatpush.msra.mxu0 %v172
    %2200 = vmatpush.msra.mxu0 %v164
    %2201 = vmatpush.msra.mxu0 %v156
    %2202 = vmatpush.msra.mxu0 %v148
    %2203 = vmatpush.msra.mxu0 %v140
    %2204 = vmatpush.msra.mxu0 %v132
    %2205 = vmatpush.msra.mxu0 %v124
    %2206 = vmatpush.msra.mxu0 %v116
    %2207 = vmatpush.msra.mxu0 %v108
    %2208 = vmatpush.msra.mxu0 %v100
    %2209 = vmatpush.msra.mxu0 %v92
    %2210 = vmatpush.msra.mxu0 %v84
    %2211 = vmatpush.msra.mxu0 %v76
    %2212 = vmatpush.msra.mxu0 %v68
    %2213 = vmatpush.msra.mxu0 %v60
    %2214 = vmatmul.f32.gmra.mxu0 %v2076
    %v2215 = vpop.f32.mrf.mxu0
    %v2216 = vadd.f32 0.0, %v2215
    %2217 = vdwg.mxu0
    %2218 = vmatpush.msra.mxu0 %v308
    %2219 = vmatpush.msra.mxu0 %v300
    %2220 = vmatpush.msra.mxu0 %v292
    %2221 = vmatpush.msra.mxu0 %v284
    %2222 = vmatpush.msra.mxu0 %v276
    %2223 = vmatpush.msra.mxu0 %v268
    %2224 = vmatpush.msra.mxu0 %v260
    %2225 = vmatpush.msra.mxu0 %v252
    %2226 = vmatpush.msra.mxu0 %v244
    %2227 = vmatpush.msra.mxu0 %v236
    %2228 = vmatpush.msra.mxu0 %v228
    %2229 = vmatpush.msra.mxu0 %v220
    %2230 = vmatpush.msra.mxu0 %v212
    %2231 = vmatpush.msra.mxu0 %v204
    %2232 = vmatpush.msra.mxu0 %v196
    %2233 = vmatpush.msra.mxu0 %v188
    %2234 = vmatmul.f32.gmra.mxu0 %v2077
    %v2235 = vpop.f32.mrf.mxu0
    %v2236 = vadd.f32 %v2216, %v2235
    %2237 = vdwg.mxu0
    %2238 = vmatpush.msra.mxu0 %v181
    %2239 = vmatpush.msra.mxu0 %v173
    %2240 = vmatpush.msra.mxu0 %v165
    %2241 = vmatpush.msra.mxu0 %v157
    %2242 = vmatpush.msra.mxu0 %v149
    %2243 = vmatpush.msra.mxu0 %v141
    %2244 = vmatpush.msra.mxu0 %v133
    %2245 = vmatpush.msra.mxu0 %v125
    %2246 = vmatpush.msra.mxu0 %v117
    %2247 = vmatpush.msra.mxu0 %v109
    %2248 = vmatpush.msra.mxu0 %v101
    %2249 = vmatpush.msra.mxu0 %v93
    %2250 = vmatpush.msra.mxu0 %v85
    %2251 = vmatpush.msra.mxu0 %v77
    %2252 = vmatpush.msra.mxu0 %v69
    %2253 = vmatpush.msra.mxu0 %v61
    %2254 = vmatmul.f32.gmra.mxu0 %v2076
    %v2255 = vpop.f32.mrf.mxu0
    %v2256 = vadd.f32 0.0, %v2255
    %2257 = vdwg.mxu0
    %2258 = vmatpush.msra.mxu0 %v309
    %2259 = vmatpush.msra.mxu0 %v301
    %2260 = vmatpush.msra.mxu0 %v293
    %2261 = vmatpush.msra.mxu0 %v285
    %2262 = vmatpush.msra.mxu0 %v277
    %2263 = vmatpush.msra.mxu0 %v269
    %2264 = vmatpush.msra.mxu0 %v261
    %2265 = vmatpush.msra.mxu0 %v253
    %2266 = vmatpush.msra.mxu0 %v245
    %2267 = vmatpush.msra.mxu0 %v237
    %2268 = vmatpush.msra.mxu0 %v229
    %2269 = vmatpush.msra.mxu0 %v221
    %2270 = vmatpush.msra.mxu0 %v213
    %2271 = vmatpush.msra.mxu0 %v205
    %2272 = vmatpush.msra.mxu0 %v197
    %2273 = vmatpush.msra.mxu0 %v189
    %2274 = vmatmul.f32.gmra.mxu0 %v2077
    %v2275 = vpop.f32.mrf.mxu0
    %v2276 = vadd.f32 %v2256, %v2275
    %2277 = vdwg.mxu0
    %2278 = vmatpush.msra.mxu0 %v182
    %2279 = vmatpush.msra.mxu0 %v174
    %2280 = vmatpush.msra.mxu0 %v166
    %2281 = vmatpush.msra.mxu0 %v158
    %2282 = vmatpush.msra.mxu0 %v150
    %2283 = vmatpush.msra.mxu0 %v142
    %2284 = vmatpush.msra.mxu0 %v134
    %2285 = vmatpush.msra.mxu0 %v126
    %2286 = vmatpush.msra.mxu0 %v118
    %2287 = vmatpush.msra.mxu0 %v110
    %2288 = vmatpush.msra.mxu0 %v102
    %2289 = vmatpush.msra.mxu0 %v94
    %2290 = vmatpush.msra.mxu0 %v86
    %2291 = vmatpush.msra.mxu0 %v78
    %2292 = vmatpush.msra.mxu0 %v70
    %2293 = vmatpush.msra.mxu0 %v62
    %2294 = vmatmul.f32.gmra.mxu0 %v2076
    %v2295 = vpop.f32.mrf.mxu0
    %v2296 = vadd.f32 0.0, %v2295
    %2297 = vdwg.mxu0
    %2298 = vmatpush.msra.mxu0 %v310
    %2299 = vmatpush.msra.mxu0 %v302
    %2300 = vmatpush.msra.mxu0 %v294
    %2301 = vmatpush.msra.mxu0 %v286
    %2302 = vmatpush.msra.mxu0 %v278
    %2303 = vmatpush.msra.mxu0 %v270
    %2304 = vmatpush.msra.mxu0 %v262
    %2305 = vmatpush.msra.mxu0 %v254
    %2306 = vmatpush.msra.mxu0 %v246
    %2307 = vmatpush.msra.mxu0 %v238
    %2308 = vmatpush.msra.mxu0 %v230
    %2309 = vmatpush.msra.mxu0 %v222
    %2310 = vmatpush.msra.mxu0 %v214
    %2311 = vmatpush.msra.mxu0 %v206
    %2312 = vmatpush.msra.mxu0 %v198
    %2313 = vmatpush.msra.mxu0 %v190
    %2314 = vmatmul.f32.gmra.mxu0 %v2077
    %v2315 = vpop.f32.mrf.mxu0
    %v2316 = vadd.f32 %v2296, %v2315
    %2317 = vdwg.mxu0
    %2318 = vmatpush.msra.mxu0 %v183
    %2319 = vmatpush.msra.mxu0 %v175
    %2320 = vmatpush.msra.mxu0 %v167
    %2321 = vmatpush.msra.mxu0 %v159
    %2322 = vmatpush.msra.mxu0 %v151
    %2323 = vmatpush.msra.mxu0 %v143
    %2324 = vmatpush.msra.mxu0 %v135
    %2325 = vmatpush.msra.mxu0 %v127
    %2326 = vmatpush.msra.mxu0 %v119
    %2327 = vmatpush.msra.mxu0 %v111
    %2328 = vmatpush.msra.mxu0 %v103
    %2329 = vmatpush.msra.mxu0 %v95
    %2330 = vmatpush.msra.mxu0 %v87
    %2331 = vmatpush.msra.mxu0 %v79
    %2332 = vmatpush.msra.mxu0 %v71
    %2333 = vmatpush.msra.mxu0 %v63
    %2334 = vmatmul.f32.gmra.mxu0 %v2076
    %v2335 = vpop.f32.mrf.mxu0
    %v2336 = vadd.f32 0.0, %v2335
    %2337 = vdwg.mxu0
    %2338 = vmatpush.msra.mxu0 %v311
    %2339 = vmatpush.msra.mxu0 %v303
    %2340 = vmatpush.msra.mxu0 %v295
    %2341 = vmatpush.msra.mxu0 %v287
    %2342 = vmatpush.msra.mxu0 %v279
    %2343 = vmatpush.msra.mxu0 %v271
    %2344 = vmatpush.msra.mxu0 %v263
    %2345 = vmatpush.msra.mxu0 %v255
    %2346 = vmatpush.msra.mxu0 %v247
    %2347 = vmatpush.msra.mxu0 %v239
    %2348 = vmatpush.msra.mxu0 %v231
    %2349 = vmatpush.msra.mxu0 %v223
    %2350 = vmatpush.msra.mxu0 %v215
    %2351 = vmatpush.msra.mxu0 %v207
    %2352 = vmatpush.msra.mxu0 %v199
    %2353 = vmatpush.msra.mxu0 %v191
    %2354 = vmatmul.f32.gmra.mxu0 %v2077
    %v2355 = vpop.f32.mrf.mxu0
    %v2356 = vadd.f32 %v2336, %v2355
    %2357 = vdwg.mxu0
    %2358 = vmatpush.msra.mxu0 %v184
    %2359 = vmatpush.msra.mxu0 %v176
    %2360 = vmatpush.msra.mxu0 %v168
    %2361 = vmatpush.msra.mxu0 %v160
    %2362 = vmatpush.msra.mxu0 %v152
    %2363 = vmatpush.msra.mxu0 %v144
    %2364 = vmatpush.msra.mxu0 %v136
    %2365 = vmatpush.msra.mxu0 %v128
    %2366 = vmatpush.msra.mxu0 %v120
    %2367 = vmatpush.msra.mxu0 %v112
    %2368 = vmatpush.msra.mxu0 %v104
    %2369 = vmatpush.msra.mxu0 %v96
    %2370 = vmatpush.msra.mxu0 %v88
    %2371 = vmatpush.msra.mxu0 %v80
    %2372 = vmatpush.msra.mxu0 %v72
    %2373 = vmatpush.msra.mxu0 %v64
    %2374 = vmatmul.f32.gmra.mxu0 %v2076
    %v2375 = vpop.f32.mrf.mxu0
    %v2376 = vadd.f32 0.0, %v2375
    %2377 = vdwg.mxu0
    %2378 = vmatpush.msra.mxu0 %v312
    %2379 = vmatpush.msra.mxu0 %v304
    %2380 = vmatpush.msra.mxu0 %v296
    %2381 = vmatpush.msra.mxu0 %v288
    %2382 = vmatpush.msra.mxu0 %v280
    %2383 = vmatpush.msra.mxu0 %v272
    %2384 = vmatpush.msra.mxu0 %v264
    %2385 = vmatpush.msra.mxu0 %v256
    %2386 = vmatpush.msra.mxu0 %v248
    %2387 = vmatpush.msra.mxu0 %v240
    %2388 = vmatpush.msra.mxu0 %v232
    %2389 = vmatpush.msra.mxu0 %v224
    %2390 = vmatpush.msra.mxu0 %v216
    %2391 = vmatpush.msra.mxu0 %v208
    %2392 = vmatpush.msra.mxu0 %v200
    %2393 = vmatpush.msra.mxu0 %v192
    %2394 = vmatmul.f32.gmra.mxu0 %v2077
    %v2395 = vpop.f32.mrf.mxu0
    %v2396 = vadd.f32 %v2376, %v2395
    %2397 = vdwg.mxu0
    %v2398 = vadd.f32 %v415, %v2116
    %v2399 = vadd.f32 %v456, %v2156
    %v2400 = vadd.f32 %v497, %v2196
    %v2401 = vadd.f32 %v538, %v2236
    %v2402 = vadd.f32 %v579, %v2276
    %v2403 = vadd.f32 %v620, %v2316
    %v2404 = vadd.f32 %v661, %v2356
    %v2405 = vadd.f32 %v702, %v2396
    %v2406 = vxor.u32 %v2398, 2147483648
    %v2407 = vxor.u32 %v2399, 2147483648
    %v2408 = vmul.f32 %v2406, 1.442695
    %v2409 = vpow.pop %v2408
    %v2410 = vmul.f32 %v2407, 1.442695
    %v2411 = vpow.pop %v2410
    %v2412 = vadd.f32 %v2409, 1.0
    %v2413 = vadd.f32 %v2411, 1.0
    %v2414 = vrcp.pop %v2412
    %v2415 = vmul.f32 %v2412, %v2414
    %v2416 = vsub.f32 1.0, %v2415
    %v2417 = vmul.f32 %v2414, %v2416
    %v2418 = vadd.f32 %v2414, %v2417
    %vm2419 = vweird.f32 %v2412
    %vm2420 = vweird.f32 %v2414
    %vm2421 = vmor %vm2419, %vm2420
    %v2422 = vsel %vm2421, %v2414, %v2418
    %v2423 = vand.u32 2147483647, %v2412
    %vm2424 = vcmp.eq.f32.partialorder %v2423, 8.507059e+37
    %v2425 = vand.u32 %v2412, 2147483648
    %v2426 = vor.u32 1.1754944e-38, %v2425
    %v2427 = vsel %vm2424, %v2426, %v2422
    %v2428 = vmul.f32 1.0, %v2427
    %v2429 = vrcp.pop %v2413
    %v2430 = vmul.f32 %v2413, %v2429
    %v2431 = vsub.f32 1.0, %v2430
    %v2432 = vmul.f32 %v2429, %v2431
    %v2433 = vadd.f32 %v2429, %v2432
    %vm2434 = vweird.f32 %v2413
    %vm2435 = vweird.f32 %v2429
    %vm2436 = vmor %vm2434, %vm2435
    %v2437 = vsel %vm2436, %v2429, %v2433
    %v2438 = vand.u32 2147483647, %v2413
    %vm2439 = vcmp.eq.f32.partialorder %v2438, 8.507059e+37
    %v2440 = vand.u32 %v2413, 2147483648
    %v2441 = vor.u32 1.1754944e-38, %v2440
    %v2442 = vsel %vm2439, %v2441, %v2437
    %v2443 = vmul.f32 1.0, %v2442
    %v2444 = vxor.u32 %v2400, 2147483648
    %v2445 = vxor.u32 %v2401, 2147483648
    %v2446 = vmul.f32 %v2444, 1.442695
    %v2447 = vpow.pop %v2446
    %v2448 = vmul.f32 %v2445, 1.442695
    %v2449 = vpow.pop %v2448
    %v2450 = vadd.f32 %v2447, 1.0
    %v2451 = vadd.f32 %v2449, 1.0
    %v2452 = vrcp.pop %v2450
    %v2453 = vmul.f32 %v2450, %v2452
    %v2454 = vsub.f32 1.0, %v2453
    %v2455 = vmul.f32 %v2452, %v2454
    %v2456 = vadd.f32 %v2452, %v2455
    %vm2457 = vweird.f32 %v2450
    %vm2458 = vweird.f32 %v2452
    %vm2459 = vmor %vm2457, %vm2458
    %v2460 = vsel %vm2459, %v2452, %v2456
    %v2461 = vand.u32 2147483647, %v2450
    %vm2462 = vcmp.eq.f32.partialorder %v2461, 8.507059e+37
    %v2463 = vand.u32 %v2450, 2147483648
    %v2464 = vor.u32 1.1754944e-38, %v2463
    %v2465 = vsel %vm2462, %v2464, %v2460
    %v2466 = vmul.f32 1.0, %v2465
    %v2467 = vrcp.pop %v2451
    %v2468 = vmul.f32 %v2451, %v2467
    %v2469 = vsub.f32 1.0, %v2468
    %v2470 = vmul.f32 %v2467, %v2469
    %v2471 = vadd.f32 %v2467, %v2470
    %vm2472 = vweird.f32 %v2451
    %vm2473 = vweird.f32 %v2467
    %vm2474 = vmor %vm2472, %vm2473
    %v2475 = vsel %vm2474, %v2467, %v2471
    %v2476 = vand.u32 2147483647, %v2451
    %vm2477 = vcmp.eq.f32.partialorder %v2476, 8.507059e+37
    %v2478 = vand.u32 %v2451, 2147483648
    %v2479 = vor.u32 1.1754944e-38, %v2478
    %v2480 = vsel %vm2477, %v2479, %v2475
    %v2481 = vmul.f32 1.0, %v2480
    %v2482 = vtanh.pop %v2402
    %v2483 = vtanh.pop %v2403
    %v2484 = vxor.u32 %v2404, 2147483648
    %v2485 = vxor.u32 %v2405, 2147483648
    %v2486 = vmul.f32 %v2484, 1.442695
    %v2487 = vpow.pop %v2486
    %v2488 = vmul.f32 %v2485, 1.442695
    %v2489 = vpow.pop %v2488
    %v2490 = vadd.f32 %v2487, 1.0
    %v2491 = vadd.f32 %v2489, 1.0
    %v2492 = vrcp.pop %v2490
    %v2493 = vmul.f32 %v2490, %v2492
    %v2494 = vsub.f32 1.0, %v2493
    %v2495 = vmul.f32 %v2492, %v2494
    %v2496 = vadd.f32 %v2492, %v2495
    %vm2497 = vweird.f32 %v2490
    %vm2498 = vweird.f32 %v2492
    %vm2499 = vmor %vm2497, %vm2498
    %v2500 = vsel %vm2499, %v2492, %v2496
    %v2501 = vand.u32 2147483647, %v2490
    %vm2502 = vcmp.eq.f32.partialorder %v2501, 8.507059e+37
    %v2503 = vand.u32 %v2490, 2147483648
    %v2504 = vor.u32 1.1754944e-38, %v2503
    %v2505 = vsel %vm2502, %v2504, %v2500
    %v2506 = vmul.f32 1.0, %v2505
    %v2507 = vrcp.pop %v2491
    %v2508 = vmul.f32 %v2491, %v2507
    %v2509 = vsub.f32 1.0, %v2508
    %v2510 = vmul.f32 %v2507, %v2509
    %v2511 = vadd.f32 %v2507, %v2510
    %vm2512 = vweird.f32 %v2491
    %vm2513 = vweird.f32 %v2507
    %vm2514 = vmor %vm2512, %vm2513
    %v2515 = vsel %vm2514, %v2507, %v2511
    %v2516 = vand.u32 2147483647, %v2491
    %vm2517 = vcmp.eq.f32.partialorder %v2516, 8.507059e+37
    %v2518 = vand.u32 %v2491, 2147483648
    %v2519 = vor.u32 1.1754944e-38, %v2518
    %v2520 = vsel %vm2517, %v2519, %v2515
    %v2521 = vmul.f32 1.0, %v2520
    %v2522 = vmul.f32 %v2466, %v2072
    %v2523 = vmul.f32 %v2481, %v2073
    %v2524 = vmul.f32 %v2428, %v2482
    %v2525 = vmul.f32 %v2443, %v2483
    %v2526 = vadd.f32 %v2522, %v2524
    %v2527 = vadd.f32 %v2523, %v2525
    %v2528 = vtanh.pop %v2526
    %v2529 = vtanh.pop %v2527
    %v2530 = vmul.f32 %v2506, %v2528
    %v2531 = vmul.f32 %v2521, %v2529
    %2532 = vmatpush.msra.mxu0 %v177
    %2533 = vmatpush.msra.mxu0 %v169
    %2534 = vmatpush.msra.mxu0 %v161
    %2535 = vmatpush.msra.mxu0 %v153
    %2536 = vmatpush.msra.mxu0 %v145
    %2537 = vmatpush.msra.mxu0 %v137
    %2538 = vmatpush.msra.mxu0 %v129
    %2539 = vmatpush.msra.mxu0 %v121
    %2540 = vmatpush.msra.mxu0 %v113
    %2541 = vmatpush.msra.mxu0 %v105
    %2542 = vmatpush.msra.mxu0 %v97
    %2543 = vmatpush.msra.mxu0 %v89
    %2544 = vmatpush.msra.mxu0 %v81
    %2545 = vmatpush.msra.mxu0 %v73
    %2546 = vmatpush.msra.mxu0 %v65
    %2547 = vmatpush.msra.mxu0 %v57
    %2548 = vmatmul.f32.gmra.mxu0 %v2530
    %v2549 = vpop.f32.mrf.mxu0
    %v2550 = vadd.f32 0.0, %v2549
    %2551 = vdwg.mxu0
    %2552 = vmatpush.msra.mxu0 %v305
    %2553 = vmatpush.msra.mxu0 %v297
    %2554 = vmatpush.msra.mxu0 %v289
    %2555 = vmatpush.msra.mxu0 %v281
    %2556 = vmatpush.msra.mxu0 %v273
    %2557 = vmatpush.msra.mxu0 %v265
    %2558 = vmatpush.msra.mxu0 %v257
    %2559 = vmatpush.msra.mxu0 %v249
    %2560 = vmatpush.msra.mxu0 %v241
    %2561 = vmatpush.msra.mxu0 %v233
    %2562 = vmatpush.msra.mxu0 %v225
    %2563 = vmatpush.msra.mxu0 %v217
    %2564 = vmatpush.msra.mxu0 %v209
    %2565 = vmatpush.msra.mxu0 %v201
    %2566 = vmatpush.msra.mxu0 %v193
    %2567 = vmatpush.msra.mxu0 %v185
    %2568 = vmatmul.f32.gmra.mxu0 %v2531
    %v2569 = vpop.f32.mrf.mxu0
    %v2570 = vadd.f32 %v2550, %v2569
    %2571 = vdwg.mxu0
    %2572 = vmatpush.msra.mxu0 %v178
    %2573 = vmatpush.msra.mxu0 %v170
    %2574 = vmatpush.msra.mxu0 %v162
    %2575 = vmatpush.msra.mxu0 %v154
    %2576 = vmatpush.msra.mxu0 %v146
    %2577 = vmatpush.msra.mxu0 %v138
    %2578 = vmatpush.msra.mxu0 %v130
    %2579 = vmatpush.msra.mxu0 %v122
    %2580 = vmatpush.msra.mxu0 %v114
    %2581 = vmatpush.msra.mxu0 %v106
    %2582 = vmatpush.msra.mxu0 %v98
    %2583 = vmatpush.msra.mxu0 %v90
    %2584 = vmatpush.msra.mxu0 %v82
    %2585 = vmatpush.msra.mxu0 %v74
    %2586 = vmatpush.msra.mxu0 %v66
    %2587 = vmatpush.msra.mxu0 %v58
    %2588 = vmatmul.f32.gmra.mxu0 %v2530
    %v2589 = vpop.f32.mrf.mxu0
    %v2590 = vadd.f32 0.0, %v2589
    %2591 = vdwg.mxu0
    %2592 = vmatpush.msra.mxu0 %v306
    %2593 = vmatpush.msra.mxu0 %v298
    %2594 = vmatpush.msra.mxu0 %v290
    %2595 = vmatpush.msra.mxu0 %v282
    %2596 = vmatpush.msra.mxu0 %v274
    %2597 = vmatpush.msra.mxu0 %v266
    %2598 = vmatpush.msra.mxu0 %v258
    %2599 = vmatpush.msra.mxu0 %v250
    %2600 = vmatpush.msra.mxu0 %v242
    %2601 = vmatpush.msra.mxu0 %v234
    %2602 = vmatpush.msra.mxu0 %v226
    %2603 = vmatpush.msra.mxu0 %v218
    %2604 = vmatpush.msra.mxu0 %v210
    %2605 = vmatpush.msra.mxu0 %v202
    %2606 = vmatpush.msra.mxu0 %v194
    %2607 = vmatpush.msra.mxu0 %v186
    %2608 = vmatmul.f32.gmra.mxu0 %v2531
    %v2609 = vpop.f32.mrf.mxu0
    %v2610 = vadd.f32 %v2590, %v2609
    %2611 = vdwg.mxu0
    %2612 = vmatpush.msra.mxu0 %v179
    %2613 = vmatpush.msra.mxu0 %v171
    %2614 = vmatpush.msra.mxu0 %v163
    %2615 = vmatpush.msra.mxu0 %v155
    %2616 = vmatpush.msra.mxu0 %v147
    %2617 = vmatpush.msra.mxu0 %v139
    %2618 = vmatpush.msra.mxu0 %v131
    %2619 = vmatpush.msra.mxu0 %v123
    %2620 = vmatpush.msra.mxu0 %v115
    %2621 = vmatpush.msra.mxu0 %v107
    %2622 = vmatpush.msra.mxu0 %v99
    %2623 = vmatpush.msra.mxu0 %v91
    %2624 = vmatpush.msra.mxu0 %v83
    %2625 = vmatpush.msra.mxu0 %v75
    %2626 = vmatpush.msra.mxu0 %v67
    %2627 = vmatpush.msra.mxu0 %v59
    %2628 = vmatmul.f32.gmra.mxu0 %v2530
    %v2629 = vpop.f32.mrf.mxu0
    %v2630 = vadd.f32 0.0, %v2629
    %2631 = vdwg.mxu0
    %2632 = vmatpush.msra.mxu0 %v307
    %2633 = vmatpush.msra.mxu0 %v299
    %2634 = vmatpush.msra.mxu0 %v291
    %2635 = vmatpush.msra.mxu0 %v283
    %2636 = vmatpush.msra.mxu0 %v275
    %2637 = vmatpush.msra.mxu0 %v267
    %2638 = vmatpush.msra.mxu0 %v259
    %2639 = vmatpush.msra.mxu0 %v251
    %2640 = vmatpush.msra.mxu0 %v243
    %2641 = vmatpush.msra.mxu0 %v235
    %2642 = vmatpush.msra.mxu0 %v227
    %2643 = vmatpush.msra.mxu0 %v219
    %2644 = vmatpush.msra.mxu0 %v211
    %2645 = vmatpush.msra.mxu0 %v203
    %2646 = vmatpush.msra.mxu0 %v195
    %2647 = vmatpush.msra.mxu0 %v187
    %2648 = vmatmul.f32.gmra.mxu0 %v2531
    %v2649 = vpop.f32.mrf.mxu0
    %v2650 = vadd.f32 %v2630, %v2649
    %2651 = vdwg.mxu0
    %2652 = vmatpush.msra.mxu0 %v180
    %2653 = vmatpush.msra.mxu0 %v172
    %2654 = vmatpush.msra.mxu0 %v164
    %2655 = vmatpush.msra.mxu0 %v156
    %2656 = vmatpush.msra.mxu0 %v148
    %2657 = vmatpush.msra.mxu0 %v140
    %2658 = vmatpush.msra.mxu0 %v132
    %2659 = vmatpush.msra.mxu0 %v124
    %2660 = vmatpush.msra.mxu0 %v116
    %2661 = vmatpush.msra.mxu0 %v108
    %2662 = vmatpush.msra.mxu0 %v100
    %2663 = vmatpush.msra.mxu0 %v92
    %2664 = vmatpush.msra.mxu0 %v84
    %2665 = vmatpush.msra.mxu0 %v76
    %2666 = vmatpush.msra.mxu0 %v68
    %2667 = vmatpush.msra.mxu0 %v60
    %2668 = vmatmul.f32.gmra.mxu0 %v2530
    %v2669 = vpop.f32.mrf.mxu0
    %v2670 = vadd.f32 0.0, %v2669
    %2671 = vdwg.mxu0
    %2672 = vmatpush.msra.mxu0 %v308
    %2673 = vmatpush.msra.mxu0 %v300
    %2674 = vmatpush.msra.mxu0 %v292
    %2675 = vmatpush.msra.mxu0 %v284
    %2676 = vmatpush.msra.mxu0 %v276
    %2677 = vmatpush.msra.mxu0 %v268
    %2678 = vmatpush.msra.mxu0 %v260
    %2679 = vmatpush.msra.mxu0 %v252
    %2680 = vmatpush.msra.mxu0 %v244
    %2681 = vmatpush.msra.mxu0 %v236
    %2682 = vmatpush.msra.mxu0 %v228
    %2683 = vmatpush.msra.mxu0 %v220
    %2684 = vmatpush.msra.mxu0 %v212
    %2685 = vmatpush.msra.mxu0 %v204
    %2686 = vmatpush.msra.mxu0 %v196
    %2687 = vmatpush.msra.mxu0 %v188
    %2688 = vmatmul.f32.gmra.mxu0 %v2531
    %v2689 = vpop.f32.mrf.mxu0
    %v2690 = vadd.f32 %v2670, %v2689
    %2691 = vdwg.mxu0
    %2692 = vmatpush.msra.mxu0 %v181
    %2693 = vmatpush.msra.mxu0 %v173
    %2694 = vmatpush.msra.mxu0 %v165
    %2695 = vmatpush.msra.mxu0 %v157
    %2696 = vmatpush.msra.mxu0 %v149
    %2697 = vmatpush.msra.mxu0 %v141
    %2698 = vmatpush.msra.mxu0 %v133
    %2699 = vmatpush.msra.mxu0 %v125
    %2700 = vmatpush.msra.mxu0 %v117
    %2701 = vmatpush.msra.mxu0 %v109
    %2702 = vmatpush.msra.mxu0 %v101
    %2703 = vmatpush.msra.mxu0 %v93
    %2704 = vmatpush.msra.mxu0 %v85
    %2705 = vmatpush.msra.mxu0 %v77
    %2706 = vmatpush.msra.mxu0 %v69
    %2707 = vmatpush.msra.mxu0 %v61
    %2708 = vmatmul.f32.gmra.mxu0 %v2530
    %v2709 = vpop.f32.mrf.mxu0
    %v2710 = vadd.f32 0.0, %v2709
    %2711 = vdwg.mxu0
    %2712 = vmatpush.msra.mxu0 %v309
    %2713 = vmatpush.msra.mxu0 %v301
    %2714 = vmatpush.msra.mxu0 %v293
    %2715 = vmatpush.msra.mxu0 %v285
    %2716 = vmatpush.msra.mxu0 %v277
    %2717 = vmatpush.msra.mxu0 %v269
    %2718 = vmatpush.msra.mxu0 %v261
    %2719 = vmatpush.msra.mxu0 %v253
    %2720 = vmatpush.msra.mxu0 %v245
    %2721 = vmatpush.msra.mxu0 %v237
    %2722 = vmatpush.msra.mxu0 %v229
    %2723 = vmatpush.msra.mxu0 %v221
    %2724 = vmatpush.msra.mxu0 %v213
    %2725 = vmatpush.msra.mxu0 %v205
    %2726 = vmatpush.msra.mxu0 %v197
    %2727 = vmatpush.msra.mxu0 %v189
    %2728 = vmatmul.f32.gmra.mxu0 %v2531
    %v2729 = vpop.f32.mrf.mxu0
    %v2730 = vadd.f32 %v2710, %v2729
    %2731 = vdwg.mxu0
    %2732 = vmatpush.msra.mxu0 %v182
    %2733 = vmatpush.msra.mxu0 %v174
    %2734 = vmatpush.msra.mxu0 %v166
    %2735 = vmatpush.msra.mxu0 %v158
    %2736 = vmatpush.msra.mxu0 %v150
    %2737 = vmatpush.msra.mxu0 %v142
    %2738 = vmatpush.msra.mxu0 %v134
    %2739 = vmatpush.msra.mxu0 %v126
    %2740 = vmatpush.msra.mxu0 %v118
    %2741 = vmatpush.msra.mxu0 %v110
    %2742 = vmatpush.msra.mxu0 %v102
    %2743 = vmatpush.msra.mxu0 %v94
    %2744 = vmatpush.msra.mxu0 %v86
    %2745 = vmatpush.msra.mxu0 %v78
    %2746 = vmatpush.msra.mxu0 %v70
    %2747 = vmatpush.msra.mxu0 %v62
    %2748 = vmatmul.f32.gmra.mxu0 %v2530
    %v2749 = vpop.f32.mrf.mxu0
    %v2750 = vadd.f32 0.0, %v2749
    %2751 = vdwg.mxu0
    %2752 = vmatpush.msra.mxu0 %v310
    %2753 = vmatpush.msra.mxu0 %v302
    %2754 = vmatpush.msra.mxu0 %v294
    %2755 = vmatpush.msra.mxu0 %v286
    %2756 = vmatpush.msra.mxu0 %v278
    %2757 = vmatpush.msra.mxu0 %v270
    %2758 = vmatpush.msra.mxu0 %v262
    %2759 = vmatpush.msra.mxu0 %v254
    %2760 = vmatpush.msra.mxu0 %v246
    %2761 = vmatpush.msra.mxu0 %v238
    %2762 = vmatpush.msra.mxu0 %v230
    %2763 = vmatpush.msra.mxu0 %v222
    %2764 = vmatpush.msra.mxu0 %v214
    %2765 = vmatpush.msra.mxu0 %v206
    %2766 = vmatpush.msra.mxu0 %v198
    %2767 = vmatpush.msra.mxu0 %v190
    %2768 = vmatmul.f32.gmra.mxu0 %v2531
    %v2769 = vpop.f32.mrf.mxu0
    %v2770 = vadd.f32 %v2750, %v2769
    %2771 = vdwg.mxu0
    %2772 = vmatpush.msra.mxu0 %v183
    %2773 = vmatpush.msra.mxu0 %v175
    %2774 = vmatpush.msra.mxu0 %v167
    %2775 = vmatpush.msra.mxu0 %v159
    %2776 = vmatpush.msra.mxu0 %v151
    %2777 = vmatpush.msra.mxu0 %v143
    %2778 = vmatpush.msra.mxu0 %v135
    %2779 = vmatpush.msra.mxu0 %v127
    %2780 = vmatpush.msra.mxu0 %v119
    %2781 = vmatpush.msra.mxu0 %v111
    %2782 = vmatpush.msra.mxu0 %v103
    %2783 = vmatpush.msra.mxu0 %v95
    %2784 = vmatpush.msra.mxu0 %v87
    %2785 = vmatpush.msra.mxu0 %v79
    %2786 = vmatpush.msra.mxu0 %v71
    %2787 = vmatpush.msra.mxu0 %v63
    %2788 = vmatmul.f32.gmra.mxu0 %v2530
    %v2789 = vpop.f32.mrf.mxu0
    %v2790 = vadd.f32 0.0, %v2789
    %2791 = vdwg.mxu0
    %2792 = vmatpush.msra.mxu0 %v311
    %2793 = vmatpush.msra.mxu0 %v303
    %2794 = vmatpush.msra.mxu0 %v295
    %2795 = vmatpush.msra.mxu0 %v287
    %2796 = vmatpush.msra.mxu0 %v279
    %2797 = vmatpush.msra.mxu0 %v271
    %2798 = vmatpush.msra.mxu0 %v263
    %2799 = vmatpush.msra.mxu0 %v255
    %2800 = vmatpush.msra.mxu0 %v247
    %2801 = vmatpush.msra.mxu0 %v239
    %2802 = vmatpush.msra.mxu0 %v231
    %2803 = vmatpush.msra.mxu0 %v223
    %2804 = vmatpush.msra.mxu0 %v215
    %2805 = vmatpush.msra.mxu0 %v207
    %2806 = vmatpush.msra.mxu0 %v199
    %2807 = vmatpush.msra.mxu0 %v191
    %2808 = vmatmul.f32.gmra.mxu0 %v2531
    %v2809 = vpop.f32.mrf.mxu0
    %v2810 = vadd.f32 %v2790, %v2809
    %2811 = vdwg.mxu0
    %2812 = vmatpush.msra.mxu0 %v184
    %2813 = vmatpush.msra.mxu0 %v176
    %2814 = vmatpush.msra.mxu0 %v168
    %2815 = vmatpush.msra.mxu0 %v160
    %2816 = vmatpush.msra.mxu0 %v152
    %2817 = vmatpush.msra.mxu0 %v144
    %2818 = vmatpush.msra.mxu0 %v136
    %2819 = vmatpush.msra.mxu0 %v128
    %2820 = vmatpush.msra.mxu0 %v120
    %2821 = vmatpush.msra.mxu0 %v112
    %2822 = vmatpush.msra.mxu0 %v104
    %2823 = vmatpush.msra.mxu0 %v96
    %2824 = vmatpush.msra.mxu0 %v88
    %2825 = vmatpush.msra.mxu0 %v80
    %2826 = vmatpush.msra.mxu0 %v72
    %2827 = vmatpush.msra.mxu0 %v64
    %2828 = vmatmul.f32.gmra.mxu0 %v2530
    %v2829 = vpop.f32.mrf.mxu0
    %v2830 = vadd.f32 0.0, %v2829
    %2831 = vdwg.mxu0
    %2832 = vmatpush.msra.mxu0 %v312
    %2833 = vmatpush.msra.mxu0 %v304
    %2834 = vmatpush.msra.mxu0 %v296
    %2835 = vmatpush.msra.mxu0 %v288
    %2836 = vmatpush.msra.mxu0 %v280
    %2837 = vmatpush.msra.mxu0 %v272
    %2838 = vmatpush.msra.mxu0 %v264
    %2839 = vmatpush.msra.mxu0 %v256
    %2840 = vmatpush.msra.mxu0 %v248
    %2841 = vmatpush.msra.mxu0 %v240
    %2842 = vmatpush.msra.mxu0 %v232
    %2843 = vmatpush.msra.mxu0 %v224
    %2844 = vmatpush.msra.mxu0 %v216
    %2845 = vmatpush.msra.mxu0 %v208
    %2846 = vmatpush.msra.mxu0 %v200
    %2847 = vmatpush.msra.mxu0 %v192
    %2848 = vmatmul.f32.gmra.mxu0 %v2531
    %v2849 = vpop.f32.mrf.mxu0
    %v2850 = vadd.f32 %v2830, %v2849
    %2851 = vdwg.mxu0
    %v2852 = vadd.f32 %v418, %v2570
    %v2853 = vadd.f32 %v459, %v2610
    %v2854 = vadd.f32 %v500, %v2650
    %v2855 = vadd.f32 %v541, %v2690
    %v2856 = vadd.f32 %v582, %v2730
    %v2857 = vadd.f32 %v623, %v2770
    %v2858 = vadd.f32 %v664, %v2810
    %v2859 = vadd.f32 %v705, %v2850
    %v2860 = vxor.u32 %v2852, 2147483648
    %v2861 = vxor.u32 %v2853, 2147483648
    %v2862 = vmul.f32 %v2860, 1.442695
    %v2863 = vpow.pop %v2862
    %v2864 = vmul.f32 %v2861, 1.442695
    %v2865 = vpow.pop %v2864
    %v2866 = vadd.f32 %v2863, 1.0
    %v2867 = vadd.f32 %v2865, 1.0
    %v2868 = vrcp.pop %v2866
    %v2869 = vmul.f32 %v2866, %v2868
    %v2870 = vsub.f32 1.0, %v2869
    %v2871 = vmul.f32 %v2868, %v2870
    %v2872 = vadd.f32 %v2868, %v2871
    %vm2873 = vweird.f32 %v2866
    %vm2874 = vweird.f32 %v2868
    %vm2875 = vmor %vm2873, %vm2874
    %v2876 = vsel %vm2875, %v2868, %v2872
    %v2877 = vand.u32 2147483647, %v2866
    %vm2878 = vcmp.eq.f32.partialorder %v2877, 8.507059e+37
    %v2879 = vand.u32 %v2866, 2147483648
    %v2880 = vor.u32 1.1754944e-38, %v2879
    %v2881 = vsel %vm2878, %v2880, %v2876
    %v2882 = vmul.f32 1.0, %v2881
    %v2883 = vrcp.pop %v2867
    %v2884 = vmul.f32 %v2867, %v2883
    %v2885 = vsub.f32 1.0, %v2884
    %v2886 = vmul.f32 %v2883, %v2885
    %v2887 = vadd.f32 %v2883, %v2886
    %vm2888 = vweird.f32 %v2867
    %vm2889 = vweird.f32 %v2883
    %vm2890 = vmor %vm2888, %vm2889
    %v2891 = vsel %vm2890, %v2883, %v2887
    %v2892 = vand.u32 2147483647, %v2867
    %vm2893 = vcmp.eq.f32.partialorder %v2892, 8.507059e+37
    %v2894 = vand.u32 %v2867, 2147483648
    %v2895 = vor.u32 1.1754944e-38, %v2894
    %v2896 = vsel %vm2893, %v2895, %v2891
    %v2897 = vmul.f32 1.0, %v2896
    %v2898 = vxor.u32 %v2854, 2147483648
    %v2899 = vxor.u32 %v2855, 2147483648
    %v2900 = vmul.f32 %v2898, 1.442695
    %v2901 = vpow.pop %v2900
    %v2902 = vmul.f32 %v2899, 1.442695
    %v2903 = vpow.pop %v2902
    %v2904 = vadd.f32 %v2901, 1.0
    %v2905 = vadd.f32 %v2903, 1.0
    %v2906 = vrcp.pop %v2904
    %v2907 = vmul.f32 %v2904, %v2906
    %v2908 = vsub.f32 1.0, %v2907
    %v2909 = vmul.f32 %v2906, %v2908
    %v2910 = vadd.f32 %v2906, %v2909
    %vm2911 = vweird.f32 %v2904
    %vm2912 = vweird.f32 %v2906
    %vm2913 = vmor %vm2911, %vm2912
    %v2914 = vsel %vm2913, %v2906, %v2910
    %v2915 = vand.u32 2147483647, %v2904
    %vm2916 = vcmp.eq.f32.partialorder %v2915, 8.507059e+37
    %v2917 = vand.u32 %v2904, 2147483648
    %v2918 = vor.u32 1.1754944e-38, %v2917
    %v2919 = vsel %vm2916, %v2918, %v2914
    %v2920 = vmul.f32 1.0, %v2919
    %v2921 = vrcp.pop %v2905
    %v2922 = vmul.f32 %v2905, %v2921
    %v2923 = vsub.f32 1.0, %v2922
    %v2924 = vmul.f32 %v2921, %v2923
    %v2925 = vadd.f32 %v2921, %v2924
    %vm2926 = vweird.f32 %v2905
    %vm2927 = vweird.f32 %v2921
    %vm2928 = vmor %vm2926, %vm2927
    %v2929 = vsel %vm2928, %v2921, %v2925
    %v2930 = vand.u32 2147483647, %v2905
    %vm2931 = vcmp.eq.f32.partialorder %v2930, 8.507059e+37
    %v2932 = vand.u32 %v2905, 2147483648
    %v2933 = vor.u32 1.1754944e-38, %v2932
    %v2934 = vsel %vm2931, %v2933, %v2929
    %v2935 = vmul.f32 1.0, %v2934
    %v2936 = vtanh.pop %v2856
    %v2937 = vtanh.pop %v2857
    %v2938 = vxor.u32 %v2858, 2147483648
    %v2939 = vxor.u32 %v2859, 2147483648
    %v2940 = vmul.f32 %v2938, 1.442695
    %v2941 = vpow.pop %v2940
    %v2942 = vmul.f32 %v2939, 1.442695
    %v2943 = vpow.pop %v2942
    %v2944 = vadd.f32 %v2941, 1.0
    %v2945 = vadd.f32 %v2943, 1.0
    %v2946 = vrcp.pop %v2944
    %v2947 = vmul.f32 %v2944, %v2946
    %v2948 = vsub.f32 1.0, %v2947
    %v2949 = vmul.f32 %v2946, %v2948
    %v2950 = vadd.f32 %v2946, %v2949
    %vm2951 = vweird.f32 %v2944
    %vm2952 = vweird.f32 %v2946
    %vm2953 = vmor %vm2951, %vm2952
    %v2954 = vsel %vm2953, %v2946, %v2950
    %v2955 = vand.u32 2147483647, %v2944
    %vm2956 = vcmp.eq.f32.partialorder %v2955, 8.507059e+37
    %v2957 = vand.u32 %v2944, 2147483648
    %v2958 = vor.u32 1.1754944e-38, %v2957
    %v2959 = vsel %vm2956, %v2958, %v2954
    %v2960 = vmul.f32 1.0, %v2959
    %v2961 = vrcp.pop %v2945
    %v2962 = vmul.f32 %v2945, %v2961
    %v2963 = vsub.f32 1.0, %v2962
    %v2964 = vmul.f32 %v2961, %v2963
    %v2965 = vadd.f32 %v2961, %v2964
    %vm2966 = vweird.f32 %v2945
    %vm2967 = vweird.f32 %v2961
    %vm2968 = vmor %vm2966, %vm2967
    %v2969 = vsel %vm2968, %v2961, %v2965
    %v2970 = vand.u32 2147483647, %v2945
    %vm2971 = vcmp.eq.f32.partialorder %v2970, 8.507059e+37
    %v2972 = vand.u32 %v2945, 2147483648
    %v2973 = vor.u32 1.1754944e-38, %v2972
    %v2974 = vsel %vm2971, %v2973, %v2969
    %v2975 = vmul.f32 1.0, %v2974
    %v2976 = vmul.f32 %v2920, %v2526
    %v2977 = vmul.f32 %v2935, %v2527
    %v2978 = vmul.f32 %v2882, %v2936
    %v2979 = vmul.f32 %v2897, %v2937
    %v2980 = vadd.f32 %v2976, %v2978
    %v2981 = vadd.f32 %v2977, %v2979
    %v2982 = vtanh.pop %v2980
    %v2983 = vtanh.pop %v2981
    %v2984 = vmul.f32 %v2960, %v2982
    %v2985 = vmul.f32 %v2975, %v2983
    %2986 = vmatpush.msra.mxu0 %v177
    %2987 = vmatpush.msra.mxu0 %v169
    %2988 = vmatpush.msra.mxu0 %v161
    %2989 = vmatpush.msra.mxu0 %v153
    %2990 = vmatpush.msra.mxu0 %v145
    %2991 = vmatpush.msra.mxu0 %v137
    %2992 = vmatpush.msra.mxu0 %v129
    %2993 = vmatpush.msra.mxu0 %v121
    %2994 = vmatpush.msra.mxu0 %v113
    %2995 = vmatpush.msra.mxu0 %v105
    %2996 = vmatpush.msra.mxu0 %v97
    %2997 = vmatpush.msra.mxu0 %v89
    %2998 = vmatpush.msra.mxu0 %v81
    %2999 = vmatpush.msra.mxu0 %v73
    %3000 = vmatpush.msra.mxu0 %v65
    %3001 = vmatpush.msra.mxu0 %v57
    %3002 = vmatmul.f32.gmra.mxu0 %v2984
    %v3003 = vpop.f32.mrf.mxu0
    %v3004 = vadd.f32 0.0, %v3003
    %3005 = vdwg.mxu0
    %3006 = vmatpush.msra.mxu0 %v305
    %3007 = vmatpush.msra.mxu0 %v297
    %3008 = vmatpush.msra.mxu0 %v289
    %3009 = vmatpush.msra.mxu0 %v281
    %3010 = vmatpush.msra.mxu0 %v273
    %3011 = vmatpush.msra.mxu0 %v265
    %3012 = vmatpush.msra.mxu0 %v257
    %3013 = vmatpush.msra.mxu0 %v249
    %3014 = vmatpush.msra.mxu0 %v241
    %3015 = vmatpush.msra.mxu0 %v233
    %3016 = vmatpush.msra.mxu0 %v225
    %3017 = vmatpush.msra.mxu0 %v217
    %3018 = vmatpush.msra.mxu0 %v209
    %3019 = vmatpush.msra.mxu0 %v201
    %3020 = vmatpush.msra.mxu0 %v193
    %3021 = vmatpush.msra.mxu0 %v185
    %3022 = vmatmul.f32.gmra.mxu0 %v2985
    %v3023 = vpop.f32.mrf.mxu0
    %v3024 = vadd.f32 %v3004, %v3023
    %3025 = vdwg.mxu0
    %3026 = vmatpush.msra.mxu0 %v178
    %3027 = vmatpush.msra.mxu0 %v170
    %3028 = vmatpush.msra.mxu0 %v162
    %3029 = vmatpush.msra.mxu0 %v154
    %3030 = vmatpush.msra.mxu0 %v146
    %3031 = vmatpush.msra.mxu0 %v138
    %3032 = vmatpush.msra.mxu0 %v130
    %3033 = vmatpush.msra.mxu0 %v122
    %3034 = vmatpush.msra.mxu0 %v114
    %3035 = vmatpush.msra.mxu0 %v106
    %3036 = vmatpush.msra.mxu0 %v98
    %3037 = vmatpush.msra.mxu0 %v90
    %3038 = vmatpush.msra.mxu0 %v82
    %3039 = vmatpush.msra.mxu0 %v74
    %3040 = vmatpush.msra.mxu0 %v66
    %3041 = vmatpush.msra.mxu0 %v58
    %3042 = vmatmul.f32.gmra.mxu0 %v2984
    %v3043 = vpop.f32.mrf.mxu0
    %v3044 = vadd.f32 0.0, %v3043
    %3045 = vdwg.mxu0
    %3046 = vmatpush.msra.mxu0 %v306
    %3047 = vmatpush.msra.mxu0 %v298
    %3048 = vmatpush.msra.mxu0 %v290
    %3049 = vmatpush.msra.mxu0 %v282
    %3050 = vmatpush.msra.mxu0 %v274
    %3051 = vmatpush.msra.mxu0 %v266
    %3052 = vmatpush.msra.mxu0 %v258
    %3053 = vmatpush.msra.mxu0 %v250
    %3054 = vmatpush.msra.mxu0 %v242
    %3055 = vmatpush.msra.mxu0 %v234
    %3056 = vmatpush.msra.mxu0 %v226
    %3057 = vmatpush.msra.mxu0 %v218
    %3058 = vmatpush.msra.mxu0 %v210
    %3059 = vmatpush.msra.mxu0 %v202
    %3060 = vmatpush.msra.mxu0 %v194
    %3061 = vmatpush.msra.mxu0 %v186
    %3062 = vmatmul.f32.gmra.mxu0 %v2985
    %v3063 = vpop.f32.mrf.mxu0
    %v3064 = vadd.f32 %v3044, %v3063
    %3065 = vdwg.mxu0
    %3066 = vmatpush.msra.mxu0 %v179
    %3067 = vmatpush.msra.mxu0 %v171
    %3068 = vmatpush.msra.mxu0 %v163
    %3069 = vmatpush.msra.mxu0 %v155
    %3070 = vmatpush.msra.mxu0 %v147
    %3071 = vmatpush.msra.mxu0 %v139
    %3072 = vmatpush.msra.mxu0 %v131
    %3073 = vmatpush.msra.mxu0 %v123
    %3074 = vmatpush.msra.mxu0 %v115
    %3075 = vmatpush.msra.mxu0 %v107
    %3076 = vmatpush.msra.mxu0 %v99
    %3077 = vmatpush.msra.mxu0 %v91
    %3078 = vmatpush.msra.mxu0 %v83
    %3079 = vmatpush.msra.mxu0 %v75
    %3080 = vmatpush.msra.mxu0 %v67
    %3081 = vmatpush.msra.mxu0 %v59
    %3082 = vmatmul.f32.gmra.mxu0 %v2984
    %v3083 = vpop.f32.mrf.mxu0
    %v3084 = vadd.f32 0.0, %v3083
    %3085 = vdwg.mxu0
    %3086 = vmatpush.msra.mxu0 %v307
    %3087 = vmatpush.msra.mxu0 %v299
    %3088 = vmatpush.msra.mxu0 %v291
    %3089 = vmatpush.msra.mxu0 %v283
    %3090 = vmatpush.msra.mxu0 %v275
    %3091 = vmatpush.msra.mxu0 %v267
    %3092 = vmatpush.msra.mxu0 %v259
    %3093 = vmatpush.msra.mxu0 %v251
    %3094 = vmatpush.msra.mxu0 %v243
    %3095 = vmatpush.msra.mxu0 %v235
    %3096 = vmatpush.msra.mxu0 %v227
    %3097 = vmatpush.msra.mxu0 %v219
    %3098 = vmatpush.msra.mxu0 %v211
    %3099 = vmatpush.msra.mxu0 %v203
    %3100 = vmatpush.msra.mxu0 %v195
    %3101 = vmatpush.msra.mxu0 %v187
    %3102 = vmatmul.f32.gmra.mxu0 %v2985
    %v3103 = vpop.f32.mrf.mxu0
    %v3104 = vadd.f32 %v3084, %v3103
    %3105 = vdwg.mxu0
    %3106 = vmatpush.msra.mxu0 %v180
    %3107 = vmatpush.msra.mxu0 %v172
    %3108 = vmatpush.msra.mxu0 %v164
    %3109 = vmatpush.msra.mxu0 %v156
    %3110 = vmatpush.msra.mxu0 %v148
    %3111 = vmatpush.msra.mxu0 %v140
    %3112 = vmatpush.msra.mxu0 %v132
    %3113 = vmatpush.msra.mxu0 %v124
    %3114 = vmatpush.msra.mxu0 %v116
    %3115 = vmatpush.msra.mxu0 %v108
    %3116 = vmatpush.msra.mxu0 %v100
    %3117 = vmatpush.msra.mxu0 %v92
    %3118 = vmatpush.msra.mxu0 %v84
    %3119 = vmatpush.msra.mxu0 %v76
    %3120 = vmatpush.msra.mxu0 %v68
    %3121 = vmatpush.msra.mxu0 %v60
    %3122 = vmatmul.f32.gmra.mxu0 %v2984
    %v3123 = vpop.f32.mrf.mxu0
    %v3124 = vadd.f32 0.0, %v3123
    %3125 = vdwg.mxu0
    %3126 = vmatpush.msra.mxu0 %v308
    %3127 = vmatpush.msra.mxu0 %v300
    %3128 = vmatpush.msra.mxu0 %v292
    %3129 = vmatpush.msra.mxu0 %v284
    %3130 = vmatpush.msra.mxu0 %v276
    %3131 = vmatpush.msra.mxu0 %v268
    %3132 = vmatpush.msra.mxu0 %v260
    %3133 = vmatpush.msra.mxu0 %v252
    %3134 = vmatpush.msra.mxu0 %v244
    %3135 = vmatpush.msra.mxu0 %v236
    %3136 = vmatpush.msra.mxu0 %v228
    %3137 = vmatpush.msra.mxu0 %v220
    %3138 = vmatpush.msra.mxu0 %v212
    %3139 = vmatpush.msra.mxu0 %v204
    %3140 = vmatpush.msra.mxu0 %v196
    %3141 = vmatpush.msra.mxu0 %v188
    %3142 = vmatmul.f32.gmra.mxu0 %v2985
    %v3143 = vpop.f32.mrf.mxu0
    %v3144 = vadd.f32 %v3124, %v3143
    %3145 = vdwg.mxu0
    %3146 = vmatpush.msra.mxu0 %v181
    %3147 = vmatpush.msra.mxu0 %v173
    %3148 = vmatpush.msra.mxu0 %v165
    %3149 = vmatpush.msra.mxu0 %v157
    %3150 = vmatpush.msra.mxu0 %v149
    %3151 = vmatpush.msra.mxu0 %v141
    %3152 = vmatpush.msra.mxu0 %v133
    %3153 = vmatpush.msra.mxu0 %v125
    %3154 = vmatpush.msra.mxu0 %v117
    %3155 = vmatpush.msra.mxu0 %v109
    %3156 = vmatpush.msra.mxu0 %v101
    %3157 = vmatpush.msra.mxu0 %v93
    %3158 = vmatpush.msra.mxu0 %v85
    %3159 = vmatpush.msra.mxu0 %v77
    %3160 = vmatpush.msra.mxu0 %v69
    %3161 = vmatpush.msra.mxu0 %v61
    %3162 = vmatmul.f32.gmra.mxu0 %v2984
    %v3163 = vpop.f32.mrf.mxu0
    %v3164 = vadd.f32 0.0, %v3163
    %3165 = vdwg.mxu0
    %3166 = vmatpush.msra.mxu0 %v309
    %3167 = vmatpush.msra.mxu0 %v301
    %3168 = vmatpush.msra.mxu0 %v293
    %3169 = vmatpush.msra.mxu0 %v285
    %3170 = vmatpush.msra.mxu0 %v277
    %3171 = vmatpush.msra.mxu0 %v269
    %3172 = vmatpush.msra.mxu0 %v261
    %3173 = vmatpush.msra.mxu0 %v253
    %3174 = vmatpush.msra.mxu0 %v245
    %3175 = vmatpush.msra.mxu0 %v237
    %3176 = vmatpush.msra.mxu0 %v229
    %3177 = vmatpush.msra.mxu0 %v221
    %3178 = vmatpush.msra.mxu0 %v213
    %3179 = vmatpush.msra.mxu0 %v205
    %3180 = vmatpush.msra.mxu0 %v197
    %3181 = vmatpush.msra.mxu0 %v189
    %3182 = vmatmul.f32.gmra.mxu0 %v2985
    %v3183 = vpop.f32.mrf.mxu0
    %v3184 = vadd.f32 %v3164, %v3183
    %3185 = vdwg.mxu0
    %3186 = vmatpush.msra.mxu0 %v182
    %3187 = vmatpush.msra.mxu0 %v174
    %3188 = vmatpush.msra.mxu0 %v166
    %3189 = vmatpush.msra.mxu0 %v158
    %3190 = vmatpush.msra.mxu0 %v150
    %3191 = vmatpush.msra.mxu0 %v142
    %3192 = vmatpush.msra.mxu0 %v134
    %3193 = vmatpush.msra.mxu0 %v126
    %3194 = vmatpush.msra.mxu0 %v118
    %3195 = vmatpush.msra.mxu0 %v110
    %3196 = vmatpush.msra.mxu0 %v102
    %3197 = vmatpush.msra.mxu0 %v94
    %3198 = vmatpush.msra.mxu0 %v86
    %3199 = vmatpush.msra.mxu0 %v78
    %3200 = vmatpush.msra.mxu0 %v70
    %3201 = vmatpush.msra.mxu0 %v62
    %3202 = vmatmul.f32.gmra.mxu0 %v2984
    %v3203 = vpop.f32.mrf.mxu0
    %v3204 = vadd.f32 0.0, %v3203
    %3205 = vdwg.mxu0
    %3206 = vmatpush.msra.mxu0 %v310
    %3207 = vmatpush.msra.mxu0 %v302
    %3208 = vmatpush.msra.mxu0 %v294
    %3209 = vmatpush.msra.mxu0 %v286
    %3210 = vmatpush.msra.mxu0 %v278
    %3211 = vmatpush.msra.mxu0 %v270
    %3212 = vmatpush.msra.mxu0 %v262
    %3213 = vmatpush.msra.mxu0 %v254
    %3214 = vmatpush.msra.mxu0 %v246
    %3215 = vmatpush.msra.mxu0 %v238
    %3216 = vmatpush.msra.mxu0 %v230
    %3217 = vmatpush.msra.mxu0 %v222
    %3218 = vmatpush.msra.mxu0 %v214
    %3219 = vmatpush.msra.mxu0 %v206
    %3220 = vmatpush.msra.mxu0 %v198
    %3221 = vmatpush.msra.mxu0 %v190
    %3222 = vmatmul.f32.gmra.mxu0 %v2985
    %v3223 = vpop.f32.mrf.mxu0
    %v3224 = vadd.f32 %v3204, %v3223
    %3225 = vdwg.mxu0
    %3226 = vmatpush.msra.mxu0 %v183
    %3227 = vmatpush.msra.mxu0 %v175
    %3228 = vmatpush.msra.mxu0 %v167
    %3229 = vmatpush.msra.mxu0 %v159
    %3230 = vmatpush.msra.mxu0 %v151
    %3231 = vmatpush.msra.mxu0 %v143
    %3232 = vmatpush.msra.mxu0 %v135
    %3233 = vmatpush.msra.mxu0 %v127
    %3234 = vmatpush.msra.mxu0 %v119
    %3235 = vmatpush.msra.mxu0 %v111
    %3236 = vmatpush.msra.mxu0 %v103
    %3237 = vmatpush.msra.mxu0 %v95
    %3238 = vmatpush.msra.mxu0 %v87
    %3239 = vmatpush.msra.mxu0 %v79
    %3240 = vmatpush.msra.mxu0 %v71
    %3241 = vmatpush.msra.mxu0 %v63
    %3242 = vmatmul.f32.gmra.mxu0 %v2984
    %v3243 = vpop.f32.mrf.mxu0
    %v3244 = vadd.f32 0.0, %v3243
    %3245 = vdwg.mxu0
    %3246 = vmatpush.msra.mxu0 %v311
    %3247 = vmatpush.msra.mxu0 %v303
    %3248 = vmatpush.msra.mxu0 %v295
    %3249 = vmatpush.msra.mxu0 %v287
    %3250 = vmatpush.msra.mxu0 %v279
    %3251 = vmatpush.msra.mxu0 %v271
    %3252 = vmatpush.msra.mxu0 %v263
    %3253 = vmatpush.msra.mxu0 %v255
    %3254 = vmatpush.msra.mxu0 %v247
    %3255 = vmatpush.msra.mxu0 %v239
    %3256 = vmatpush.msra.mxu0 %v231
    %3257 = vmatpush.msra.mxu0 %v223
    %3258 = vmatpush.msra.mxu0 %v215
    %3259 = vmatpush.msra.mxu0 %v207
    %3260 = vmatpush.msra.mxu0 %v199
    %3261 = vmatpush.msra.mxu0 %v191
    %3262 = vmatmul.f32.gmra.mxu0 %v2985
    %v3263 = vpop.f32.mrf.mxu0
    %v3264 = vadd.f32 %v3244, %v3263
    %3265 = vdwg.mxu0
    %3266 = vmatpush.msra.mxu0 %v184
    %3267 = vmatpush.msra.mxu0 %v176
    %3268 = vmatpush.msra.mxu0 %v168
    %3269 = vmatpush.msra.mxu0 %v160
    %3270 = vmatpush.msra.mxu0 %v152
    %3271 = vmatpush.msra.mxu0 %v144
    %3272 = vmatpush.msra.mxu0 %v136
    %3273 = vmatpush.msra.mxu0 %v128
    %3274 = vmatpush.msra.mxu0 %v120
    %3275 = vmatpush.msra.mxu0 %v112
    %3276 = vmatpush.msra.mxu0 %v104
    %3277 = vmatpush.msra.mxu0 %v96
    %3278 = vmatpush.msra.mxu0 %v88
    %3279 = vmatpush.msra.mxu0 %v80
    %3280 = vmatpush.msra.mxu0 %v72
    %3281 = vmatpush.msra.mxu0 %v64
    %3282 = vmatmul.f32.gmra.mxu0 %v2984
    %v3283 = vpop.f32.mrf.mxu0
    %v3284 = vadd.f32 0.0, %v3283
    %3285 = vdwg.mxu0
    %3286 = vmatpush.msra.mxu0 %v312
    %3287 = vmatpush.msra.mxu0 %v304
    %3288 = vmatpush.msra.mxu0 %v296
    %3289 = vmatpush.msra.mxu0 %v288
    %3290 = vmatpush.msra.mxu0 %v280
    %3291 = vmatpush.msra.mxu0 %v272
    %3292 = vmatpush.msra.mxu0 %v264
    %3293 = vmatpush.msra.mxu0 %v256
    %3294 = vmatpush.msra.mxu0 %v248
    %3295 = vmatpush.msra.mxu0 %v240
    %3296 = vmatpush.msra.mxu0 %v232
    %3297 = vmatpush.msra.mxu0 %v224
    %3298 = vmatpush.msra.mxu0 %v216
    %3299 = vmatpush.msra.mxu0 %v208
    %3300 = vmatpush.msra.mxu0 %v200
    %3301 = vmatpush.msra.mxu0 %v192
    %3302 = vmatmul.f32.gmra.mxu0 %v2985
    %v3303 = vpop.f32.mrf.mxu0
    %v3304 = vadd.f32 %v3284, %v3303
    %3305 = vdwg.mxu0
    %v3306 = vadd.f32 %v421, %v3024
    %v3307 = vadd.f32 %v462, %v3064
    %v3308 = vadd.f32 %v503, %v3104
    %v3309 = vadd.f32 %v544, %v3144
    %v3310 = vadd.f32 %v585, %v3184
    %v3311 = vadd.f32 %v626, %v3224
    %v3312 = vadd.f32 %v667, %v3264
    %v3313 = vadd.f32 %v708, %v3304
    %v3314 = vxor.u32 %v3306, 2147483648
    %v3315 = vxor.u32 %v3307, 2147483648
    %v3316 = vmul.f32 %v3314, 1.442695
    %v3317 = vpow.pop %v3316
    %v3318 = vmul.f32 %v3315, 1.442695
    %v3319 = vpow.pop %v3318
    %v3320 = vadd.f32 %v3317, 1.0
    %v3321 = vadd.f32 %v3319, 1.0
    %v3322 = vrcp.pop %v3320
    %v3323 = vmul.f32 %v3320, %v3322
    %v3324 = vsub.f32 1.0, %v3323
    %v3325 = vmul.f32 %v3322, %v3324
    %v3326 = vadd.f32 %v3322, %v3325
    %vm3327 = vweird.f32 %v3320
    %vm3328 = vweird.f32 %v3322
    %vm3329 = vmor %vm3327, %vm3328
    %v3330 = vsel %vm3329, %v3322, %v3326
    %v3331 = vand.u32 2147483647, %v3320
    %vm3332 = vcmp.eq.f32.partialorder %v3331, 8.507059e+37
    %v3333 = vand.u32 %v3320, 2147483648
    %v3334 = vor.u32 1.1754944e-38, %v3333
    %v3335 = vsel %vm3332, %v3334, %v3330
    %v3336 = vmul.f32 1.0, %v3335
    %v3337 = vrcp.pop %v3321
    %v3338 = vmul.f32 %v3321, %v3337
    %v3339 = vsub.f32 1.0, %v3338
    %v3340 = vmul.f32 %v3337, %v3339
    %v3341 = vadd.f32 %v3337, %v3340
    %vm3342 = vweird.f32 %v3321
    %vm3343 = vweird.f32 %v3337
    %vm3344 = vmor %vm3342, %vm3343
    %v3345 = vsel %vm3344, %v3337, %v3341
    %v3346 = vand.u32 2147483647, %v3321
    %vm3347 = vcmp.eq.f32.partialorder %v3346, 8.507059e+37
    %v3348 = vand.u32 %v3321, 2147483648
    %v3349 = vor.u32 1.1754944e-38, %v3348
    %v3350 = vsel %vm3347, %v3349, %v3345
    %v3351 = vmul.f32 1.0, %v3350
    %v3352 = vxor.u32 %v3308, 2147483648
    %v3353 = vxor.u32 %v3309, 2147483648
    %v3354 = vmul.f32 %v3352, 1.442695
    %v3355 = vpow.pop %v3354
    %v3356 = vmul.f32 %v3353, 1.442695
    %v3357 = vpow.pop %v3356
    %v3358 = vadd.f32 %v3355, 1.0
    %v3359 = vadd.f32 %v3357, 1.0
    %v3360 = vrcp.pop %v3358
    %v3361 = vmul.f32 %v3358, %v3360
    %v3362 = vsub.f32 1.0, %v3361
    %v3363 = vmul.f32 %v3360, %v3362
    %v3364 = vadd.f32 %v3360, %v3363
    %vm3365 = vweird.f32 %v3358
    %vm3366 = vweird.f32 %v3360
    %vm3367 = vmor %vm3365, %vm3366
    %v3368 = vsel %vm3367, %v3360, %v3364
    %v3369 = vand.u32 2147483647, %v3358
    %vm3370 = vcmp.eq.f32.partialorder %v3369, 8.507059e+37
    %v3371 = vand.u32 %v3358, 2147483648
    %v3372 = vor.u32 1.1754944e-38, %v3371
    %v3373 = vsel %vm3370, %v3372, %v3368
    %v3374 = vmul.f32 1.0, %v3373
    %v3375 = vrcp.pop %v3359
    %v3376 = vmul.f32 %v3359, %v3375
    %v3377 = vsub.f32 1.0, %v3376
    %v3378 = vmul.f32 %v3375, %v3377
    %v3379 = vadd.f32 %v3375, %v3378
    %vm3380 = vweird.f32 %v3359
    %vm3381 = vweird.f32 %v3375
    %vm3382 = vmor %vm3380, %vm3381
    %v3383 = vsel %vm3382, %v3375, %v3379
    %v3384 = vand.u32 2147483647, %v3359
    %vm3385 = vcmp.eq.f32.partialorder %v3384, 8.507059e+37
    %v3386 = vand.u32 %v3359, 2147483648
    %v3387 = vor.u32 1.1754944e-38, %v3386
    %v3388 = vsel %vm3385, %v3387, %v3383
    %v3389 = vmul.f32 1.0, %v3388
    %v3390 = vtanh.pop %v3310
    %v3391 = vtanh.pop %v3311
    %v3392 = vxor.u32 %v3312, 2147483648
    %v3393 = vxor.u32 %v3313, 2147483648
    %v3394 = vmul.f32 %v3392, 1.442695
    %v3395 = vpow.pop %v3394
    %v3396 = vmul.f32 %v3393, 1.442695
    %v3397 = vpow.pop %v3396
    %v3398 = vadd.f32 %v3395, 1.0
    %v3399 = vadd.f32 %v3397, 1.0
    %v3400 = vrcp.pop %v3398
    %v3401 = vmul.f32 %v3398, %v3400
    %v3402 = vsub.f32 1.0, %v3401
    %v3403 = vmul.f32 %v3400, %v3402
    %v3404 = vadd.f32 %v3400, %v3403
    %vm3405 = vweird.f32 %v3398
    %vm3406 = vweird.f32 %v3400
    %vm3407 = vmor %vm3405, %vm3406
    %v3408 = vsel %vm3407, %v3400, %v3404
    %v3409 = vand.u32 2147483647, %v3398
    %vm3410 = vcmp.eq.f32.partialorder %v3409, 8.507059e+37
    %v3411 = vand.u32 %v3398, 2147483648
    %v3412 = vor.u32 1.1754944e-38, %v3411
    %v3413 = vsel %vm3410, %v3412, %v3408
    %v3414 = vmul.f32 1.0, %v3413
    %v3415 = vrcp.pop %v3399
    %v3416 = vmul.f32 %v3399, %v3415
    %v3417 = vsub.f32 1.0, %v3416
    %v3418 = vmul.f32 %v3415, %v3417
    %v3419 = vadd.f32 %v3415, %v3418
    %vm3420 = vweird.f32 %v3399
    %vm3421 = vweird.f32 %v3415
    %vm3422 = vmor %vm3420, %vm3421
    %v3423 = vsel %vm3422, %v3415, %v3419
    %v3424 = vand.u32 2147483647, %v3399
    %vm3425 = vcmp.eq.f32.partialorder %v3424, 8.507059e+37
    %v3426 = vand.u32 %v3399, 2147483648
    %v3427 = vor.u32 1.1754944e-38, %v3426
    %v3428 = vsel %vm3425, %v3427, %v3423
    %v3429 = vmul.f32 1.0, %v3428
    %v3430 = vmul.f32 %v3374, %v2980
    %v3431 = vmul.f32 %v3389, %v2981
    %v3432 = vmul.f32 %v3336, %v3390
    %v3433 = vmul.f32 %v3351, %v3391
    %v3434 = vadd.f32 %v3430, %v3432
    %v3435 = vadd.f32 %v3431, %v3433
    %v3436 = vtanh.pop %v3434
    %v3437 = vtanh.pop %v3435
    %v3438 = vmul.f32 %v3414, %v3436
    %v3439 = vmul.f32 %v3429, %v3437
    %3440 = vmatpush.msra.mxu0 %v177
    %3441 = vmatpush.msra.mxu0 %v169
    %3442 = vmatpush.msra.mxu0 %v161
    %3443 = vmatpush.msra.mxu0 %v153
    %3444 = vmatpush.msra.mxu0 %v145
    %3445 = vmatpush.msra.mxu0 %v137
    %3446 = vmatpush.msra.mxu0 %v129
    %3447 = vmatpush.msra.mxu0 %v121
    %3448 = vmatpush.msra.mxu0 %v113
    %3449 = vmatpush.msra.mxu0 %v105
    %3450 = vmatpush.msra.mxu0 %v97
    %3451 = vmatpush.msra.mxu0 %v89
    %3452 = vmatpush.msra.mxu0 %v81
    %3453 = vmatpush.msra.mxu0 %v73
    %3454 = vmatpush.msra.mxu0 %v65
    %3455 = vmatpush.msra.mxu0 %v57
    %3456 = vmatmul.f32.gmra.mxu0 %v3438
    %v3457 = vpop.f32.mrf.mxu0
    %v3458 = vadd.f32 0.0, %v3457
    %3459 = vdwg.mxu0
    %3460 = vmatpush.msra.mxu0 %v305
    %3461 = vmatpush.msra.mxu0 %v297
    %3462 = vmatpush.msra.mxu0 %v289
    %3463 = vmatpush.msra.mxu0 %v281
    %3464 = vmatpush.msra.mxu0 %v273
    %3465 = vmatpush.msra.mxu0 %v265
    %3466 = vmatpush.msra.mxu0 %v257
    %3467 = vmatpush.msra.mxu0 %v249
    %3468 = vmatpush.msra.mxu0 %v241
    %3469 = vmatpush.msra.mxu0 %v233
    %3470 = vmatpush.msra.mxu0 %v225
    %3471 = vmatpush.msra.mxu0 %v217
    %3472 = vmatpush.msra.mxu0 %v209
    %3473 = vmatpush.msra.mxu0 %v201
    %3474 = vmatpush.msra.mxu0 %v193
    %3475 = vmatpush.msra.mxu0 %v185
    %3476 = vmatmul.f32.gmra.mxu0 %v3439
    %v3477 = vpop.f32.mrf.mxu0
    %v3478 = vadd.f32 %v3458, %v3477
    %3479 = vdwg.mxu0
    %3480 = vmatpush.msra.mxu0 %v178
    %3481 = vmatpush.msra.mxu0 %v170
    %3482 = vmatpush.msra.mxu0 %v162
    %3483 = vmatpush.msra.mxu0 %v154
    %3484 = vmatpush.msra.mxu0 %v146
    %3485 = vmatpush.msra.mxu0 %v138
    %3486 = vmatpush.msra.mxu0 %v130
    %3487 = vmatpush.msra.mxu0 %v122
    %3488 = vmatpush.msra.mxu0 %v114
    %3489 = vmatpush.msra.mxu0 %v106
    %3490 = vmatpush.msra.mxu0 %v98
    %3491 = vmatpush.msra.mxu0 %v90
    %3492 = vmatpush.msra.mxu0 %v82
    %3493 = vmatpush.msra.mxu0 %v74
    %3494 = vmatpush.msra.mxu0 %v66
    %3495 = vmatpush.msra.mxu0 %v58
    %3496 = vmatmul.f32.gmra.mxu0 %v3438
    %v3497 = vpop.f32.mrf.mxu0
    %v3498 = vadd.f32 0.0, %v3497
    %3499 = vdwg.mxu0
    %3500 = vmatpush.msra.mxu0 %v306
    %3501 = vmatpush.msra.mxu0 %v298
    %3502 = vmatpush.msra.mxu0 %v290
    %3503 = vmatpush.msra.mxu0 %v282
    %3504 = vmatpush.msra.mxu0 %v274
    %3505 = vmatpush.msra.mxu0 %v266
    %3506 = vmatpush.msra.mxu0 %v258
    %3507 = vmatpush.msra.mxu0 %v250
    %3508 = vmatpush.msra.mxu0 %v242
    %3509 = vmatpush.msra.mxu0 %v234
    %3510 = vmatpush.msra.mxu0 %v226
    %3511 = vmatpush.msra.mxu0 %v218
    %3512 = vmatpush.msra.mxu0 %v210
    %3513 = vmatpush.msra.mxu0 %v202
    %3514 = vmatpush.msra.mxu0 %v194
    %3515 = vmatpush.msra.mxu0 %v186
    %3516 = vmatmul.f32.gmra.mxu0 %v3439
    %v3517 = vpop.f32.mrf.mxu0
    %v3518 = vadd.f32 %v3498, %v3517
    %3519 = vdwg.mxu0
    %3520 = vmatpush.msra.mxu0 %v179
    %3521 = vmatpush.msra.mxu0 %v171
    %3522 = vmatpush.msra.mxu0 %v163
    %3523 = vmatpush.msra.mxu0 %v155
    %3524 = vmatpush.msra.mxu0 %v147
    %3525 = vmatpush.msra.mxu0 %v139
    %3526 = vmatpush.msra.mxu0 %v131
    %3527 = vmatpush.msra.mxu0 %v123
    %3528 = vmatpush.msra.mxu0 %v115
    %3529 = vmatpush.msra.mxu0 %v107
    %3530 = vmatpush.msra.mxu0 %v99
    %3531 = vmatpush.msra.mxu0 %v91
    %3532 = vmatpush.msra.mxu0 %v83
    %3533 = vmatpush.msra.mxu0 %v75
    %3534 = vmatpush.msra.mxu0 %v67
    %3535 = vmatpush.msra.mxu0 %v59
    %3536 = vmatmul.f32.gmra.mxu0 %v3438
    %v3537 = vpop.f32.mrf.mxu0
    %v3538 = vadd.f32 0.0, %v3537
    %3539 = vdwg.mxu0
    %3540 = vmatpush.msra.mxu0 %v307
    %3541 = vmatpush.msra.mxu0 %v299
    %3542 = vmatpush.msra.mxu0 %v291
    %3543 = vmatpush.msra.mxu0 %v283
    %3544 = vmatpush.msra.mxu0 %v275
    %3545 = vmatpush.msra.mxu0 %v267
    %3546 = vmatpush.msra.mxu0 %v259
    %3547 = vmatpush.msra.mxu0 %v251
    %3548 = vmatpush.msra.mxu0 %v243
    %3549 = vmatpush.msra.mxu0 %v235
    %3550 = vmatpush.msra.mxu0 %v227
    %3551 = vmatpush.msra.mxu0 %v219
    %3552 = vmatpush.msra.mxu0 %v211
    %3553 = vmatpush.msra.mxu0 %v203
    %3554 = vmatpush.msra.mxu0 %v195
    %3555 = vmatpush.msra.mxu0 %v187
    %3556 = vmatmul.f32.gmra.mxu0 %v3439
    %v3557 = vpop.f32.mrf.mxu0
    %v3558 = vadd.f32 %v3538, %v3557
    %3559 = vdwg.mxu0
    %3560 = vmatpush.msra.mxu0 %v180
    %3561 = vmatpush.msra.mxu0 %v172
    %3562 = vmatpush.msra.mxu0 %v164
    %3563 = vmatpush.msra.mxu0 %v156
    %3564 = vmatpush.msra.mxu0 %v148
    %3565 = vmatpush.msra.mxu0 %v140
    %3566 = vmatpush.msra.mxu0 %v132
    %3567 = vmatpush.msra.mxu0 %v124
    %3568 = vmatpush.msra.mxu0 %v116
    %3569 = vmatpush.msra.mxu0 %v108
    %3570 = vmatpush.msra.mxu0 %v100
    %3571 = vmatpush.msra.mxu0 %v92
    %3572 = vmatpush.msra.mxu0 %v84
    %3573 = vmatpush.msra.mxu0 %v76
    %3574 = vmatpush.msra.mxu0 %v68
    %3575 = vmatpush.msra.mxu0 %v60
    %3576 = vmatmul.f32.gmra.mxu0 %v3438
    %v3577 = vpop.f32.mrf.mxu0
    %v3578 = vadd.f32 0.0, %v3577
    %3579 = vdwg.mxu0
    %3580 = vmatpush.msra.mxu0 %v308
    %3581 = vmatpush.msra.mxu0 %v300
    %3582 = vmatpush.msra.mxu0 %v292
    %3583 = vmatpush.msra.mxu0 %v284
    %3584 = vmatpush.msra.mxu0 %v276
    %3585 = vmatpush.msra.mxu0 %v268
    %3586 = vmatpush.msra.mxu0 %v260
    %3587 = vmatpush.msra.mxu0 %v252
    %3588 = vmatpush.msra.mxu0 %v244
    %3589 = vmatpush.msra.mxu0 %v236
    %3590 = vmatpush.msra.mxu0 %v228
    %3591 = vmatpush.msra.mxu0 %v220
    %3592 = vmatpush.msra.mxu0 %v212
    %3593 = vmatpush.msra.mxu0 %v204
    %3594 = vmatpush.msra.mxu0 %v196
    %3595 = vmatpush.msra.mxu0 %v188
    %3596 = vmatmul.f32.gmra.mxu0 %v3439
    %v3597 = vpop.f32.mrf.mxu0
    %v3598 = vadd.f32 %v3578, %v3597
    %3599 = vdwg.mxu0
    %3600 = vmatpush.msra.mxu0 %v181
    %3601 = vmatpush.msra.mxu0 %v173
    %3602 = vmatpush.msra.mxu0 %v165
    %3603 = vmatpush.msra.mxu0 %v157
    %3604 = vmatpush.msra.mxu0 %v149
    %3605 = vmatpush.msra.mxu0 %v141
    %3606 = vmatpush.msra.mxu0 %v133
    %3607 = vmatpush.msra.mxu0 %v125
    %3608 = vmatpush.msra.mxu0 %v117
    %3609 = vmatpush.msra.mxu0 %v109
    %3610 = vmatpush.msra.mxu0 %v101
    %3611 = vmatpush.msra.mxu0 %v93
    %3612 = vmatpush.msra.mxu0 %v85
    %3613 = vmatpush.msra.mxu0 %v77
    %3614 = vmatpush.msra.mxu0 %v69
    %3615 = vmatpush.msra.mxu0 %v61
    %3616 = vmatmul.f32.gmra.mxu0 %v3438
    %v3617 = vpop.f32.mrf.mxu0
    %v3618 = vadd.f32 0.0, %v3617
    %3619 = vdwg.mxu0
    %3620 = vmatpush.msra.mxu0 %v309
    %3621 = vmatpush.msra.mxu0 %v301
    %3622 = vmatpush.msra.mxu0 %v293
    %3623 = vmatpush.msra.mxu0 %v285
    %3624 = vmatpush.msra.mxu0 %v277
    %3625 = vmatpush.msra.mxu0 %v269
    %3626 = vmatpush.msra.mxu0 %v261
    %3627 = vmatpush.msra.mxu0 %v253
    %3628 = vmatpush.msra.mxu0 %v245
    %3629 = vmatpush.msra.mxu0 %v237
    %3630 = vmatpush.msra.mxu0 %v229
    %3631 = vmatpush.msra.mxu0 %v221
    %3632 = vmatpush.msra.mxu0 %v213
    %3633 = vmatpush.msra.mxu0 %v205
    %3634 = vmatpush.msra.mxu0 %v197
    %3635 = vmatpush.msra.mxu0 %v189
    %3636 = vmatmul.f32.gmra.mxu0 %v3439
    %v3637 = vpop.f32.mrf.mxu0
    %v3638 = vadd.f32 %v3618, %v3637
    %3639 = vdwg.mxu0
    %3640 = vmatpush.msra.mxu0 %v182
    %3641 = vmatpush.msra.mxu0 %v174
    %3642 = vmatpush.msra.mxu0 %v166
    %3643 = vmatpush.msra.mxu0 %v158
    %3644 = vmatpush.msra.mxu0 %v150
    %3645 = vmatpush.msra.mxu0 %v142
    %3646 = vmatpush.msra.mxu0 %v134
    %3647 = vmatpush.msra.mxu0 %v126
    %3648 = vmatpush.msra.mxu0 %v118
    %3649 = vmatpush.msra.mxu0 %v110
    %3650 = vmatpush.msra.mxu0 %v102
    %3651 = vmatpush.msra.mxu0 %v94
    %3652 = vmatpush.msra.mxu0 %v86
    %3653 = vmatpush.msra.mxu0 %v78
    %3654 = vmatpush.msra.mxu0 %v70
    %3655 = vmatpush.msra.mxu0 %v62
    %3656 = vmatmul.f32.gmra.mxu0 %v3438
    %v3657 = vpop.f32.mrf.mxu0
    %v3658 = vadd.f32 0.0, %v3657
    %3659 = vdwg.mxu0
    %3660 = vmatpush.msra.mxu0 %v310
    %3661 = vmatpush.msra.mxu0 %v302
    %3662 = vmatpush.msra.mxu0 %v294
    %3663 = vmatpush.msra.mxu0 %v286
    %3664 = vmatpush.msra.mxu0 %v278
    %3665 = vmatpush.msra.mxu0 %v270
    %3666 = vmatpush.msra.mxu0 %v262
    %3667 = vmatpush.msra.mxu0 %v254
    %3668 = vmatpush.msra.mxu0 %v246
    %3669 = vmatpush.msra.mxu0 %v238
    %3670 = vmatpush.msra.mxu0 %v230
    %3671 = vmatpush.msra.mxu0 %v222
    %3672 = vmatpush.msra.mxu0 %v214
    %3673 = vmatpush.msra.mxu0 %v206
    %3674 = vmatpush.msra.mxu0 %v198
    %3675 = vmatpush.msra.mxu0 %v190
    %3676 = vmatmul.f32.gmra.mxu0 %v3439
    %v3677 = vpop.f32.mrf.mxu0
    %v3678 = vadd.f32 %v3658, %v3677
    %3679 = vdwg.mxu0
    %3680 = vmatpush.msra.mxu0 %v183
    %3681 = vmatpush.msra.mxu0 %v175
    %3682 = vmatpush.msra.mxu0 %v167
    %3683 = vmatpush.msra.mxu0 %v159
    %3684 = vmatpush.msra.mxu0 %v151
    %3685 = vmatpush.msra.mxu0 %v143
    %3686 = vmatpush.msra.mxu0 %v135
    %3687 = vmatpush.msra.mxu0 %v127
    %3688 = vmatpush.msra.mxu0 %v119
    %3689 = vmatpush.msra.mxu0 %v111
    %3690 = vmatpush.msra.mxu0 %v103
    %3691 = vmatpush.msra.mxu0 %v95
    %3692 = vmatpush.msra.mxu0 %v87
    %3693 = vmatpush.msra.mxu0 %v79
    %3694 = vmatpush.msra.mxu0 %v71
    %3695 = vmatpush.msra.mxu0 %v63
    %3696 = vmatmul.f32.gmra.mxu0 %v3438
    %v3697 = vpop.f32.mrf.mxu0
    %v3698 = vadd.f32 0.0, %v3697
    %3699 = vdwg.mxu0
    %3700 = vmatpush.msra.mxu0 %v311
    %3701 = vmatpush.msra.mxu0 %v303
    %3702 = vmatpush.msra.mxu0 %v295
    %3703 = vmatpush.msra.mxu0 %v287
    %3704 = vmatpush.msra.mxu0 %v279
    %3705 = vmatpush.msra.mxu0 %v271
    %3706 = vmatpush.msra.mxu0 %v263
    %3707 = vmatpush.msra.mxu0 %v255
    %3708 = vmatpush.msra.mxu0 %v247
    %3709 = vmatpush.msra.mxu0 %v239
    %3710 = vmatpush.msra.mxu0 %v231
    %3711 = vmatpush.msra.mxu0 %v223
    %3712 = vmatpush.msra.mxu0 %v215
    %3713 = vmatpush.msra.mxu0 %v207
    %3714 = vmatpush.msra.mxu0 %v199
    %3715 = vmatpush.msra.mxu0 %v191
    %3716 = vmatmul.f32.gmra.mxu0 %v3439
    %v3717 = vpop.f32.mrf.mxu0
    %v3718 = vadd.f32 %v3698, %v3717
    %3719 = vdwg.mxu0
    %3720 = vmatpush.msra.mxu0 %v184
    %3721 = vmatpush.msra.mxu0 %v176
    %3722 = vmatpush.msra.mxu0 %v168
    %3723 = vmatpush.msra.mxu0 %v160
    %3724 = vmatpush.msra.mxu0 %v152
    %3725 = vmatpush.msra.mxu0 %v144
    %3726 = vmatpush.msra.mxu0 %v136
    %3727 = vmatpush.msra.mxu0 %v128
    %3728 = vmatpush.msra.mxu0 %v120
    %3729 = vmatpush.msra.mxu0 %v112
    %3730 = vmatpush.msra.mxu0 %v104
    %3731 = vmatpush.msra.mxu0 %v96
    %3732 = vmatpush.msra.mxu0 %v88
    %3733 = vmatpush.msra.mxu0 %v80
    %3734 = vmatpush.msra.mxu0 %v72
    %3735 = vmatpush.msra.mxu0 %v64
    %3736 = vmatmul.f32.gmra.mxu0 %v3438
    %v3737 = vpop.f32.mrf.mxu0
    %v3738 = vadd.f32 0.0, %v3737
    %3739 = vdwg.mxu0
    %3740 = vmatpush.msra.mxu0 %v312
    %3741 = vmatpush.msra.mxu0 %v304
    %3742 = vmatpush.msra.mxu0 %v296
    %3743 = vmatpush.msra.mxu0 %v288
    %3744 = vmatpush.msra.mxu0 %v280
    %3745 = vmatpush.msra.mxu0 %v272
    %3746 = vmatpush.msra.mxu0 %v264
    %3747 = vmatpush.msra.mxu0 %v256
    %3748 = vmatpush.msra.mxu0 %v248
    %3749 = vmatpush.msra.mxu0 %v240
    %3750 = vmatpush.msra.mxu0 %v232
    %3751 = vmatpush.msra.mxu0 %v224
    %3752 = vmatpush.msra.mxu0 %v216
    %3753 = vmatpush.msra.mxu0 %v208
    %3754 = vmatpush.msra.mxu0 %v200
    %3755 = vmatpush.msra.mxu0 %v192
    %3756 = vmatmul.f32.gmra.mxu0 %v3439
    %v3757 = vpop.f32.mrf.mxu0
    %v3758 = vadd.f32 %v3738, %v3757
    %3759 = vdwg.mxu0
    %v3760 = vadd.f32 %v424, %v3478
    %v3761 = vadd.f32 %v465, %v3518
    %v3762 = vadd.f32 %v506, %v3558
    %v3763 = vadd.f32 %v547, %v3598
    %v3764 = vadd.f32 %v588, %v3638
    %v3765 = vadd.f32 %v629, %v3678
    %v3766 = vadd.f32 %v670, %v3718
    %v3767 = vadd.f32 %v711, %v3758
    %v3768 = vxor.u32 %v3760, 2147483648
    %v3769 = vxor.u32 %v3761, 2147483648
    %v3770 = vmul.f32 %v3768, 1.442695
    %v3771 = vpow.pop %v3770
    %v3772 = vmul.f32 %v3769, 1.442695
    %v3773 = vpow.pop %v3772
    %v3774 = vadd.f32 %v3771, 1.0
    %v3775 = vadd.f32 %v3773, 1.0
    %v3776 = vrcp.pop %v3774
    %v3777 = vmul.f32 %v3774, %v3776
    %v3778 = vsub.f32 1.0, %v3777
    %v3779 = vmul.f32 %v3776, %v3778
    %v3780 = vadd.f32 %v3776, %v3779
    %vm3781 = vweird.f32 %v3774
    %vm3782 = vweird.f32 %v3776
    %vm3783 = vmor %vm3781, %vm3782
    %v3784 = vsel %vm3783, %v3776, %v3780
    %v3785 = vand.u32 2147483647, %v3774
    %vm3786 = vcmp.eq.f32.partialorder %v3785, 8.507059e+37
    %v3787 = vand.u32 %v3774, 2147483648
    %v3788 = vor.u32 1.1754944e-38, %v3787
    %v3789 = vsel %vm3786, %v3788, %v3784
    %v3790 = vmul.f32 1.0, %v3789
    %v3791 = vrcp.pop %v3775
    %v3792 = vmul.f32 %v3775, %v3791
    %v3793 = vsub.f32 1.0, %v3792
    %v3794 = vmul.f32 %v3791, %v3793
    %v3795 = vadd.f32 %v3791, %v3794
    %vm3796 = vweird.f32 %v3775
    %vm3797 = vweird.f32 %v3791
    %vm3798 = vmor %vm3796, %vm3797
    %v3799 = vsel %vm3798, %v3791, %v3795
    %v3800 = vand.u32 2147483647, %v3775
    %vm3801 = vcmp.eq.f32.partialorder %v3800, 8.507059e+37
    %v3802 = vand.u32 %v3775, 2147483648
    %v3803 = vor.u32 1.1754944e-38, %v3802
    %v3804 = vsel %vm3801, %v3803, %v3799
    %v3805 = vmul.f32 1.0, %v3804
    %v3806 = vxor.u32 %v3762, 2147483648
    %v3807 = vxor.u32 %v3763, 2147483648
    %v3808 = vmul.f32 %v3806, 1.442695
    %v3809 = vpow.pop %v3808
    %v3810 = vmul.f32 %v3807, 1.442695
    %v3811 = vpow.pop %v3810
    %v3812 = vadd.f32 %v3809, 1.0
    %v3813 = vadd.f32 %v3811, 1.0
    %v3814 = vrcp.pop %v3812
    %v3815 = vmul.f32 %v3812, %v3814
    %v3816 = vsub.f32 1.0, %v3815
    %v3817 = vmul.f32 %v3814, %v3816
    %v3818 = vadd.f32 %v3814, %v3817
    %vm3819 = vweird.f32 %v3812
    %vm3820 = vweird.f32 %v3814
    %vm3821 = vmor %vm3819, %vm3820
    %v3822 = vsel %vm3821, %v3814, %v3818
    %v3823 = vand.u32 2147483647, %v3812
    %vm3824 = vcmp.eq.f32.partialorder %v3823, 8.507059e+37
    %v3825 = vand.u32 %v3812, 2147483648
    %v3826 = vor.u32 1.1754944e-38, %v3825
    %v3827 = vsel %vm3824, %v3826, %v3822
    %v3828 = vmul.f32 1.0, %v3827
    %v3829 = vrcp.pop %v3813
    %v3830 = vmul.f32 %v3813, %v3829
    %v3831 = vsub.f32 1.0, %v3830
    %v3832 = vmul.f32 %v3829, %v3831
    %v3833 = vadd.f32 %v3829, %v3832
    %vm3834 = vweird.f32 %v3813
    %vm3835 = vweird.f32 %v3829
    %vm3836 = vmor %vm3834, %vm3835
    %v3837 = vsel %vm3836, %v3829, %v3833
    %v3838 = vand.u32 2147483647, %v3813
    %vm3839 = vcmp.eq.f32.partialorder %v3838, 8.507059e+37
    %v3840 = vand.u32 %v3813, 2147483648
    %v3841 = vor.u32 1.1754944e-38, %v3840
    %v3842 = vsel %vm3839, %v3841, %v3837
    %v3843 = vmul.f32 1.0, %v3842
    %v3844 = vtanh.pop %v3764
    %v3845 = vtanh.pop %v3765
    %v3846 = vxor.u32 %v3766, 2147483648
    %v3847 = vxor.u32 %v3767, 2147483648
    %v3848 = vmul.f32 %v3846, 1.442695
    %v3849 = vpow.pop %v3848
    %v3850 = vmul.f32 %v3847, 1.442695
    %v3851 = vpow.pop %v3850
    %v3852 = vadd.f32 %v3849, 1.0
    %v3853 = vadd.f32 %v3851, 1.0
    %v3854 = vrcp.pop %v3852
    %v3855 = vmul.f32 %v3852, %v3854
    %v3856 = vsub.f32 1.0, %v3855
    %v3857 = vmul.f32 %v3854, %v3856
    %v3858 = vadd.f32 %v3854, %v3857
    %vm3859 = vweird.f32 %v3852
    %vm3860 = vweird.f32 %v3854
    %vm3861 = vmor %vm3859, %vm3860
    %v3862 = vsel %vm3861, %v3854, %v3858
    %v3863 = vand.u32 2147483647, %v3852
    %vm3864 = vcmp.eq.f32.partialorder %v3863, 8.507059e+37
    %v3865 = vand.u32 %v3852, 2147483648
    %v3866 = vor.u32 1.1754944e-38, %v3865
    %v3867 = vsel %vm3864, %v3866, %v3862
    %v3868 = vmul.f32 1.0, %v3867
    %v3869 = vrcp.pop %v3853
    %v3870 = vmul.f32 %v3853, %v3869
    %v3871 = vsub.f32 1.0, %v3870
    %v3872 = vmul.f32 %v3869, %v3871
    %v3873 = vadd.f32 %v3869, %v3872
    %vm3874 = vweird.f32 %v3853
    %vm3875 = vweird.f32 %v3869
    %vm3876 = vmor %vm3874, %vm3875
    %v3877 = vsel %vm3876, %v3869, %v3873
    %v3878 = vand.u32 2147483647, %v3853
    %vm3879 = vcmp.eq.f32.partialorder %v3878, 8.507059e+37
    %v3880 = vand.u32 %v3853, 2147483648
    %v3881 = vor.u32 1.1754944e-38, %v3880
    %v3882 = vsel %vm3879, %v3881, %v3877
    %v3883 = vmul.f32 1.0, %v3882
    %v3884 = vmul.f32 %v3828, %v3434
    %v3885 = vmul.f32 %v3843, %v3435
    %v3886 = vmul.f32 %v3790, %v3844
    %v3887 = vmul.f32 %v3805, %v3845
    %v3888 = vadd.f32 %v3884, %v3886
    %v3889 = vadd.f32 %v3885, %v3887
    %v3890 = vtanh.pop %v3888
    %v3891 = vtanh.pop %v3889
    %v3892 = vmul.f32 %v3868, %v3890
    %v3893 = vmul.f32 %v3883, %v3891
    %3894 = vmatpush.msra.mxu0 %v177
    %3895 = vmatpush.msra.mxu0 %v169
    %3896 = vmatpush.msra.mxu0 %v161
    %3897 = vmatpush.msra.mxu0 %v153
    %3898 = vmatpush.msra.mxu0 %v145
    %3899 = vmatpush.msra.mxu0 %v137
    %3900 = vmatpush.msra.mxu0 %v129
    %3901 = vmatpush.msra.mxu0 %v121
    %3902 = vmatpush.msra.mxu0 %v113
    %3903 = vmatpush.msra.mxu0 %v105
    %3904 = vmatpush.msra.mxu0 %v97
    %3905 = vmatpush.msra.mxu0 %v89
    %3906 = vmatpush.msra.mxu0 %v81
    %3907 = vmatpush.msra.mxu0 %v73
    %3908 = vmatpush.msra.mxu0 %v65
    %3909 = vmatpush.msra.mxu0 %v57
    %3910 = vmatmul.f32.gmra.mxu0 %v3892
    %v3911 = vpop.f32.mrf.mxu0
    %v3912 = vadd.f32 0.0, %v3911
    %3913 = vdwg.mxu0
    %3914 = vmatpush.msra.mxu0 %v305
    %3915 = vmatpush.msra.mxu0 %v297
    %3916 = vmatpush.msra.mxu0 %v289
    %3917 = vmatpush.msra.mxu0 %v281
    %3918 = vmatpush.msra.mxu0 %v273
    %3919 = vmatpush.msra.mxu0 %v265
    %3920 = vmatpush.msra.mxu0 %v257
    %3921 = vmatpush.msra.mxu0 %v249
    %3922 = vmatpush.msra.mxu0 %v241
    %3923 = vmatpush.msra.mxu0 %v233
    %3924 = vmatpush.msra.mxu0 %v225
    %3925 = vmatpush.msra.mxu0 %v217
    %3926 = vmatpush.msra.mxu0 %v209
    %3927 = vmatpush.msra.mxu0 %v201
    %3928 = vmatpush.msra.mxu0 %v193
    %3929 = vmatpush.msra.mxu0 %v185
    %3930 = vmatmul.f32.gmra.mxu0 %v3893
    %v3931 = vpop.f32.mrf.mxu0
    %v3932 = vadd.f32 %v3912, %v3931
    %3933 = vdwg.mxu0
    %3934 = vmatpush.msra.mxu0 %v178
    %3935 = vmatpush.msra.mxu0 %v170
    %3936 = vmatpush.msra.mxu0 %v162
    %3937 = vmatpush.msra.mxu0 %v154
    %3938 = vmatpush.msra.mxu0 %v146
    %3939 = vmatpush.msra.mxu0 %v138
    %3940 = vmatpush.msra.mxu0 %v130
    %3941 = vmatpush.msra.mxu0 %v122
    %3942 = vmatpush.msra.mxu0 %v114
    %3943 = vmatpush.msra.mxu0 %v106
    %3944 = vmatpush.msra.mxu0 %v98
    %3945 = vmatpush.msra.mxu0 %v90
    %3946 = vmatpush.msra.mxu0 %v82
    %3947 = vmatpush.msra.mxu0 %v74
    %3948 = vmatpush.msra.mxu0 %v66
    %3949 = vmatpush.msra.mxu0 %v58
    %3950 = vmatmul.f32.gmra.mxu0 %v3892
    %v3951 = vpop.f32.mrf.mxu0
    %v3952 = vadd.f32 0.0, %v3951
    %3953 = vdwg.mxu0
    %3954 = vmatpush.msra.mxu0 %v306
    %3955 = vmatpush.msra.mxu0 %v298
    %3956 = vmatpush.msra.mxu0 %v290
    %3957 = vmatpush.msra.mxu0 %v282
    %3958 = vmatpush.msra.mxu0 %v274
    %3959 = vmatpush.msra.mxu0 %v266
    %3960 = vmatpush.msra.mxu0 %v258
    %3961 = vmatpush.msra.mxu0 %v250
    %3962 = vmatpush.msra.mxu0 %v242
    %3963 = vmatpush.msra.mxu0 %v234
    %3964 = vmatpush.msra.mxu0 %v226
    %3965 = vmatpush.msra.mxu0 %v218
    %3966 = vmatpush.msra.mxu0 %v210
    %3967 = vmatpush.msra.mxu0 %v202
    %3968 = vmatpush.msra.mxu0 %v194
    %3969 = vmatpush.msra.mxu0 %v186
    %3970 = vmatmul.f32.gmra.mxu0 %v3893
    %v3971 = vpop.f32.mrf.mxu0
    %v3972 = vadd.f32 %v3952, %v3971
    %3973 = vdwg.mxu0
    %3974 = vmatpush.msra.mxu0 %v179
    %3975 = vmatpush.msra.mxu0 %v171
    %3976 = vmatpush.msra.mxu0 %v163
    %3977 = vmatpush.msra.mxu0 %v155
    %3978 = vmatpush.msra.mxu0 %v147
    %3979 = vmatpush.msra.mxu0 %v139
    %3980 = vmatpush.msra.mxu0 %v131
    %3981 = vmatpush.msra.mxu0 %v123
    %3982 = vmatpush.msra.mxu0 %v115
    %3983 = vmatpush.msra.mxu0 %v107
    %3984 = vmatpush.msra.mxu0 %v99
    %3985 = vmatpush.msra.mxu0 %v91
    %3986 = vmatpush.msra.mxu0 %v83
    %3987 = vmatpush.msra.mxu0 %v75
    %3988 = vmatpush.msra.mxu0 %v67
    %3989 = vmatpush.msra.mxu0 %v59
    %3990 = vmatmul.f32.gmra.mxu0 %v3892
    %v3991 = vpop.f32.mrf.mxu0
    %v3992 = vadd.f32 0.0, %v3991
    %3993 = vdwg.mxu0
    %3994 = vmatpush.msra.mxu0 %v307
    %3995 = vmatpush.msra.mxu0 %v299
    %3996 = vmatpush.msra.mxu0 %v291
    %3997 = vmatpush.msra.mxu0 %v283
    %3998 = vmatpush.msra.mxu0 %v275
    %3999 = vmatpush.msra.mxu0 %v267
    %4000 = vmatpush.msra.mxu0 %v259
    %4001 = vmatpush.msra.mxu0 %v251
    %4002 = vmatpush.msra.mxu0 %v243
    %4003 = vmatpush.msra.mxu0 %v235
    %4004 = vmatpush.msra.mxu0 %v227
    %4005 = vmatpush.msra.mxu0 %v219
    %4006 = vmatpush.msra.mxu0 %v211
    %4007 = vmatpush.msra.mxu0 %v203
    %4008 = vmatpush.msra.mxu0 %v195
    %4009 = vmatpush.msra.mxu0 %v187
    %4010 = vmatmul.f32.gmra.mxu0 %v3893
    %v4011 = vpop.f32.mrf.mxu0
    %v4012 = vadd.f32 %v3992, %v4011
    %4013 = vdwg.mxu0
    %4014 = vmatpush.msra.mxu0 %v180
    %4015 = vmatpush.msra.mxu0 %v172
    %4016 = vmatpush.msra.mxu0 %v164
    %4017 = vmatpush.msra.mxu0 %v156
    %4018 = vmatpush.msra.mxu0 %v148
    %4019 = vmatpush.msra.mxu0 %v140
    %4020 = vmatpush.msra.mxu0 %v132
    %4021 = vmatpush.msra.mxu0 %v124
    %4022 = vmatpush.msra.mxu0 %v116
    %4023 = vmatpush.msra.mxu0 %v108
    %4024 = vmatpush.msra.mxu0 %v100
    %4025 = vmatpush.msra.mxu0 %v92
    %4026 = vmatpush.msra.mxu0 %v84
    %4027 = vmatpush.msra.mxu0 %v76
    %4028 = vmatpush.msra.mxu0 %v68
    %4029 = vmatpush.msra.mxu0 %v60
    %4030 = vmatmul.f32.gmra.mxu0 %v3892
    %v4031 = vpop.f32.mrf.mxu0
    %v4032 = vadd.f32 0.0, %v4031
    %4033 = vdwg.mxu0
    %4034 = vmatpush.msra.mxu0 %v308
    %4035 = vmatpush.msra.mxu0 %v300
    %4036 = vmatpush.msra.mxu0 %v292
    %4037 = vmatpush.msra.mxu0 %v284
    %4038 = vmatpush.msra.mxu0 %v276
    %4039 = vmatpush.msra.mxu0 %v268
    %4040 = vmatpush.msra.mxu0 %v260
    %4041 = vmatpush.msra.mxu0 %v252
    %4042 = vmatpush.msra.mxu0 %v244
    %4043 = vmatpush.msra.mxu0 %v236
    %4044 = vmatpush.msra.mxu0 %v228
    %4045 = vmatpush.msra.mxu0 %v220
    %4046 = vmatpush.msra.mxu0 %v212
    %4047 = vmatpush.msra.mxu0 %v204
    %4048 = vmatpush.msra.mxu0 %v196
    %4049 = vmatpush.msra.mxu0 %v188
    %4050 = vmatmul.f32.gmra.mxu0 %v3893
    %v4051 = vpop.f32.mrf.mxu0
    %v4052 = vadd.f32 %v4032, %v4051
    %4053 = vdwg.mxu0
    %4054 = vmatpush.msra.mxu0 %v181
    %4055 = vmatpush.msra.mxu0 %v173
    %4056 = vmatpush.msra.mxu0 %v165
    %4057 = vmatpush.msra.mxu0 %v157
    %4058 = vmatpush.msra.mxu0 %v149
    %4059 = vmatpush.msra.mxu0 %v141
    %4060 = vmatpush.msra.mxu0 %v133
    %4061 = vmatpush.msra.mxu0 %v125
    %4062 = vmatpush.msra.mxu0 %v117
    %4063 = vmatpush.msra.mxu0 %v109
    %4064 = vmatpush.msra.mxu0 %v101
    %4065 = vmatpush.msra.mxu0 %v93
    %4066 = vmatpush.msra.mxu0 %v85
    %4067 = vmatpush.msra.mxu0 %v77
    %4068 = vmatpush.msra.mxu0 %v69
    %4069 = vmatpush.msra.mxu0 %v61
    %4070 = vmatmul.f32.gmra.mxu0 %v3892
    %v4071 = vpop.f32.mrf.mxu0
    %v4072 = vadd.f32 0.0, %v4071
    %4073 = vdwg.mxu0
    %4074 = vmatpush.msra.mxu0 %v309
    %4075 = vmatpush.msra.mxu0 %v301
    %4076 = vmatpush.msra.mxu0 %v293
    %4077 = vmatpush.msra.mxu0 %v285
    %4078 = vmatpush.msra.mxu0 %v277
    %4079 = vmatpush.msra.mxu0 %v269
    %4080 = vmatpush.msra.mxu0 %v261
    %4081 = vmatpush.msra.mxu0 %v253
    %4082 = vmatpush.msra.mxu0 %v245
    %4083 = vmatpush.msra.mxu0 %v237
    %4084 = vmatpush.msra.mxu0 %v229
    %4085 = vmatpush.msra.mxu0 %v221
    %4086 = vmatpush.msra.mxu0 %v213
    %4087 = vmatpush.msra.mxu0 %v205
    %4088 = vmatpush.msra.mxu0 %v197
    %4089 = vmatpush.msra.mxu0 %v189
    %4090 = vmatmul.f32.gmra.mxu0 %v3893
    %v4091 = vpop.f32.mrf.mxu0
    %v4092 = vadd.f32 %v4072, %v4091
    %4093 = vdwg.mxu0
    %4094 = vmatpush.msra.mxu0 %v182
    %4095 = vmatpush.msra.mxu0 %v174
    %4096 = vmatpush.msra.mxu0 %v166
    %4097 = vmatpush.msra.mxu0 %v158
    %4098 = vmatpush.msra.mxu0 %v150
    %4099 = vmatpush.msra.mxu0 %v142
    %4100 = vmatpush.msra.mxu0 %v134
    %4101 = vmatpush.msra.mxu0 %v126
    %4102 = vmatpush.msra.mxu0 %v118
    %4103 = vmatpush.msra.mxu0 %v110
    %4104 = vmatpush.msra.mxu0 %v102
    %4105 = vmatpush.msra.mxu0 %v94
    %4106 = vmatpush.msra.mxu0 %v86
    %4107 = vmatpush.msra.mxu0 %v78
    %4108 = vmatpush.msra.mxu0 %v70
    %4109 = vmatpush.msra.mxu0 %v62
    %4110 = vmatmul.f32.gmra.mxu0 %v3892
    %v4111 = vpop.f32.mrf.mxu0
    %v4112 = vadd.f32 0.0, %v4111
    %4113 = vdwg.mxu0
    %4114 = vmatpush.msra.mxu0 %v310
    %4115 = vmatpush.msra.mxu0 %v302
    %4116 = vmatpush.msra.mxu0 %v294
    %4117 = vmatpush.msra.mxu0 %v286
    %4118 = vmatpush.msra.mxu0 %v278
    %4119 = vmatpush.msra.mxu0 %v270
    %4120 = vmatpush.msra.mxu0 %v262
    %4121 = vmatpush.msra.mxu0 %v254
    %4122 = vmatpush.msra.mxu0 %v246
    %4123 = vmatpush.msra.mxu0 %v238
    %4124 = vmatpush.msra.mxu0 %v230
    %4125 = vmatpush.msra.mxu0 %v222
    %4126 = vmatpush.msra.mxu0 %v214
    %4127 = vmatpush.msra.mxu0 %v206
    %4128 = vmatpush.msra.mxu0 %v198
    %4129 = vmatpush.msra.mxu0 %v190
    %4130 = vmatmul.f32.gmra.mxu0 %v3893
    %v4131 = vpop.f32.mrf.mxu0
    %v4132 = vadd.f32 %v4112, %v4131
    %4133 = vdwg.mxu0
    %4134 = vmatpush.msra.mxu0 %v183
    %4135 = vmatpush.msra.mxu0 %v175
    %4136 = vmatpush.msra.mxu0 %v167
    %4137 = vmatpush.msra.mxu0 %v159
    %4138 = vmatpush.msra.mxu0 %v151
    %4139 = vmatpush.msra.mxu0 %v143
    %4140 = vmatpush.msra.mxu0 %v135
    %4141 = vmatpush.msra.mxu0 %v127
    %4142 = vmatpush.msra.mxu0 %v119
    %4143 = vmatpush.msra.mxu0 %v111
    %4144 = vmatpush.msra.mxu0 %v103
    %4145 = vmatpush.msra.mxu0 %v95
    %4146 = vmatpush.msra.mxu0 %v87
    %4147 = vmatpush.msra.mxu0 %v79
    %4148 = vmatpush.msra.mxu0 %v71
    %4149 = vmatpush.msra.mxu0 %v63
    %4150 = vmatmul.f32.gmra.mxu0 %v3892
    %v4151 = vpop.f32.mrf.mxu0
    %v4152 = vadd.f32 0.0, %v4151
    %4153 = vdwg.mxu0
    %4154 = vmatpush.msra.mxu0 %v311
    %4155 = vmatpush.msra.mxu0 %v303
    %4156 = vmatpush.msra.mxu0 %v295
    %4157 = vmatpush.msra.mxu0 %v287
    %4158 = vmatpush.msra.mxu0 %v279
    %4159 = vmatpush.msra.mxu0 %v271
    %4160 = vmatpush.msra.mxu0 %v263
    %4161 = vmatpush.msra.mxu0 %v255
    %4162 = vmatpush.msra.mxu0 %v247
    %4163 = vmatpush.msra.mxu0 %v239
    %4164 = vmatpush.msra.mxu0 %v231
    %4165 = vmatpush.msra.mxu0 %v223
    %4166 = vmatpush.msra.mxu0 %v215
    %4167 = vmatpush.msra.mxu0 %v207
    %4168 = vmatpush.msra.mxu0 %v199
    %4169 = vmatpush.msra.mxu0 %v191
    %4170 = vmatmul.f32.gmra.mxu0 %v3893
    %v4171 = vpop.f32.mrf.mxu0
    %v4172 = vadd.f32 %v4152, %v4171
    %4173 = vdwg.mxu0
    %4174 = vmatpush.msra.mxu0 %v184
    %4175 = vmatpush.msra.mxu0 %v176
    %4176 = vmatpush.msra.mxu0 %v168
    %4177 = vmatpush.msra.mxu0 %v160
    %4178 = vmatpush.msra.mxu0 %v152
    %4179 = vmatpush.msra.mxu0 %v144
    %4180 = vmatpush.msra.mxu0 %v136
    %4181 = vmatpush.msra.mxu0 %v128
    %4182 = vmatpush.msra.mxu0 %v120
    %4183 = vmatpush.msra.mxu0 %v112
    %4184 = vmatpush.msra.mxu0 %v104
    %4185 = vmatpush.msra.mxu0 %v96
    %4186 = vmatpush.msra.mxu0 %v88
    %4187 = vmatpush.msra.mxu0 %v80
    %4188 = vmatpush.msra.mxu0 %v72
    %4189 = vmatpush.msra.mxu0 %v64
    %4190 = vmatmul.f32.gmra.mxu0 %v3892
    %v4191 = vpop.f32.mrf.mxu0
    %v4192 = vadd.f32 0.0, %v4191
    %4193 = vdwg.mxu0
    %4194 = vmatpush.msra.mxu0 %v312
    %4195 = vmatpush.msra.mxu0 %v304
    %4196 = vmatpush.msra.mxu0 %v296
    %4197 = vmatpush.msra.mxu0 %v288
    %4198 = vmatpush.msra.mxu0 %v280
    %4199 = vmatpush.msra.mxu0 %v272
    %4200 = vmatpush.msra.mxu0 %v264
    %4201 = vmatpush.msra.mxu0 %v256
    %4202 = vmatpush.msra.mxu0 %v248
    %4203 = vmatpush.msra.mxu0 %v240
    %4204 = vmatpush.msra.mxu0 %v232
    %4205 = vmatpush.msra.mxu0 %v224
    %4206 = vmatpush.msra.mxu0 %v216
    %4207 = vmatpush.msra.mxu0 %v208
    %4208 = vmatpush.msra.mxu0 %v200
    %4209 = vmatpush.msra.mxu0 %v192
    %4210 = vmatmul.f32.gmra.mxu0 %v3893
    %v4211 = vpop.f32.mrf.mxu0
    %v4212 = vadd.f32 %v4192, %v4211
    %4213 = vdwg.mxu0
    %v4214 = vadd.f32 %v427, %v3932
    %v4215 = vadd.f32 %v468, %v3972
    %v4216 = vadd.f32 %v509, %v4012
    %v4217 = vadd.f32 %v550, %v4052
    %v4218 = vadd.f32 %v591, %v4092
    %v4219 = vadd.f32 %v632, %v4132
    %v4220 = vadd.f32 %v673, %v4172
    %v4221 = vadd.f32 %v714, %v4212
    %v4222 = vxor.u32 %v4214, 2147483648
    %v4223 = vxor.u32 %v4215, 2147483648
    %v4224 = vmul.f32 %v4222, 1.442695
    %v4225 = vpow.pop %v4224
    %v4226 = vmul.f32 %v4223, 1.442695
    %v4227 = vpow.pop %v4226
    %v4228 = vadd.f32 %v4225, 1.0
    %v4229 = vadd.f32 %v4227, 1.0
    %v4230 = vrcp.pop %v4228
    %v4231 = vmul.f32 %v4228, %v4230
    %v4232 = vsub.f32 1.0, %v4231
    %v4233 = vmul.f32 %v4230, %v4232
    %v4234 = vadd.f32 %v4230, %v4233
    %vm4235 = vweird.f32 %v4228
    %vm4236 = vweird.f32 %v4230
    %vm4237 = vmor %vm4235, %vm4236
    %v4238 = vsel %vm4237, %v4230, %v4234
    %v4239 = vand.u32 2147483647, %v4228
    %vm4240 = vcmp.eq.f32.partialorder %v4239, 8.507059e+37
    %v4241 = vand.u32 %v4228, 2147483648
    %v4242 = vor.u32 1.1754944e-38, %v4241
    %v4243 = vsel %vm4240, %v4242, %v4238
    %v4244 = vmul.f32 1.0, %v4243
    %v4245 = vrcp.pop %v4229
    %v4246 = vmul.f32 %v4229, %v4245
    %v4247 = vsub.f32 1.0, %v4246
    %v4248 = vmul.f32 %v4245, %v4247
    %v4249 = vadd.f32 %v4245, %v4248
    %vm4250 = vweird.f32 %v4229
    %vm4251 = vweird.f32 %v4245
    %vm4252 = vmor %vm4250, %vm4251
    %v4253 = vsel %vm4252, %v4245, %v4249
    %v4254 = vand.u32 2147483647, %v4229
    %vm4255 = vcmp.eq.f32.partialorder %v4254, 8.507059e+37
    %v4256 = vand.u32 %v4229, 2147483648
    %v4257 = vor.u32 1.1754944e-38, %v4256
    %v4258 = vsel %vm4255, %v4257, %v4253
    %v4259 = vmul.f32 1.0, %v4258
    %v4260 = vxor.u32 %v4216, 2147483648
    %v4261 = vxor.u32 %v4217, 2147483648
    %v4262 = vmul.f32 %v4260, 1.442695
    %v4263 = vpow.pop %v4262
    %v4264 = vmul.f32 %v4261, 1.442695
    %v4265 = vpow.pop %v4264
    %v4266 = vadd.f32 %v4263, 1.0
    %v4267 = vadd.f32 %v4265, 1.0
    %v4268 = vrcp.pop %v4266
    %v4269 = vmul.f32 %v4266, %v4268
    %v4270 = vsub.f32 1.0, %v4269
    %v4271 = vmul.f32 %v4268, %v4270
    %v4272 = vadd.f32 %v4268, %v4271
    %vm4273 = vweird.f32 %v4266
    %vm4274 = vweird.f32 %v4268
    %vm4275 = vmor %vm4273, %vm4274
    %v4276 = vsel %vm4275, %v4268, %v4272
    %v4277 = vand.u32 2147483647, %v4266
    %vm4278 = vcmp.eq.f32.partialorder %v4277, 8.507059e+37
    %v4279 = vand.u32 %v4266, 2147483648
    %v4280 = vor.u32 1.1754944e-38, %v4279
    %v4281 = vsel %vm4278, %v4280, %v4276
    %v4282 = vmul.f32 1.0, %v4281
    %v4283 = vrcp.pop %v4267
    %v4284 = vmul.f32 %v4267, %v4283
    %v4285 = vsub.f32 1.0, %v4284
    %v4286 = vmul.f32 %v4283, %v4285
    %v4287 = vadd.f32 %v4283, %v4286
    %vm4288 = vweird.f32 %v4267
    %vm4289 = vweird.f32 %v4283
    %vm4290 = vmor %vm4288, %vm4289
    %v4291 = vsel %vm4290, %v4283, %v4287
    %v4292 = vand.u32 2147483647, %v4267
    %vm4293 = vcmp.eq.f32.partialorder %v4292, 8.507059e+37
    %v4294 = vand.u32 %v4267, 2147483648
    %v4295 = vor.u32 1.1754944e-38, %v4294
    %v4296 = vsel %vm4293, %v4295, %v4291
    %v4297 = vmul.f32 1.0, %v4296
    %v4298 = vtanh.pop %v4218
    %v4299 = vtanh.pop %v4219
    %v4300 = vxor.u32 %v4220, 2147483648
    %v4301 = vxor.u32 %v4221, 2147483648
    %v4302 = vmul.f32 %v4300, 1.442695
    %v4303 = vpow.pop %v4302
    %v4304 = vmul.f32 %v4301, 1.442695
    %v4305 = vpow.pop %v4304
    %v4306 = vadd.f32 %v4303, 1.0
    %v4307 = vadd.f32 %v4305, 1.0
    %v4308 = vrcp.pop %v4306
    %v4309 = vmul.f32 %v4306, %v4308
    %v4310 = vsub.f32 1.0, %v4309
    %v4311 = vmul.f32 %v4308, %v4310
    %v4312 = vadd.f32 %v4308, %v4311
    %vm4313 = vweird.f32 %v4306
    %vm4314 = vweird.f32 %v4308
    %vm4315 = vmor %vm4313, %vm4314
    %v4316 = vsel %vm4315, %v4308, %v4312
    %v4317 = vand.u32 2147483647, %v4306
    %vm4318 = vcmp.eq.f32.partialorder %v4317, 8.507059e+37
    %v4319 = vand.u32 %v4306, 2147483648
    %v4320 = vor.u32 1.1754944e-38, %v4319
    %v4321 = vsel %vm4318, %v4320, %v4316
    %v4322 = vmul.f32 1.0, %v4321
    %v4323 = vrcp.pop %v4307
    %v4324 = vmul.f32 %v4307, %v4323
    %v4325 = vsub.f32 1.0, %v4324
    %v4326 = vmul.f32 %v4323, %v4325
    %v4327 = vadd.f32 %v4323, %v4326
    %vm4328 = vweird.f32 %v4307
    %vm4329 = vweird.f32 %v4323
    %vm4330 = vmor %vm4328, %vm4329
    %v4331 = vsel %vm4330, %v4323, %v4327
    %v4332 = vand.u32 2147483647, %v4307
    %vm4333 = vcmp.eq.f32.partialorder %v4332, 8.507059e+37
    %v4334 = vand.u32 %v4307, 2147483648
    %v4335 = vor.u32 1.1754944e-38, %v4334
    %v4336 = vsel %vm4333, %v4335, %v4331
    %v4337 = vmul.f32 1.0, %v4336
    %v4338 = vmul.f32 %v4282, %v3888
    %v4339 = vmul.f32 %v4297, %v3889
    %v4340 = vmul.f32 %v4244, %v4298
    %v4341 = vmul.f32 %v4259, %v4299
    %v4342 = vadd.f32 %v4338, %v4340
    %v4343 = vadd.f32 %v4339, %v4341
    %v4344 = vtanh.pop %v4342
    %v4345 = vtanh.pop %v4343
    %v4346 = vmul.f32 %v4322, %v4344
    %v4347 = vmul.f32 %v4337, %v4345
    %v4348 = vld [vmem:[%s1] sm:$0xff]
    %vm4349 = vcmp.gt.f32.partialorder %v4348, 0.0
    %v4350 = vmul.f32 %v4348, 0.01
    %v4351 = vsel %vm4349, %v4348, %v4350
    %v4352 = vld [vmem:[%s5] sm:$0xff]
    %v4353 = vld [vmem:[%s5 + $0x8] sm:$0xff]
    %v4354 = vld [vmem:[%s5 + $0x10] sm:$0xff]
    %v4355 = vld [vmem:[%s5 + $0x18] sm:$0xff]
    %v4356 = vld [vmem:[%s5 + $0x20] sm:$0xff]
    %v4357 = vld [vmem:[%s5 + $0x28] sm:$0xff]
    %v4358 = vld [vmem:[%s5 + $0x30] sm:$0xff]
    %v4359 = vld [vmem:[%s5 + $0x38] sm:$0xff]
    %v4360 = vld [vmem:[%s5 + $0x40] sm:$0xff]
    %v4361 = vld [vmem:[%s5 + $0x48] sm:$0xff]
    %v4362 = vld [vmem:[%s5 + $0x50] sm:$0xff]
    %v4363 = vld [vmem:[%s5 + $0x58] sm:$0xff]
    %v4364 = vld [vmem:[%s5 + $0x60] sm:$0xff]
    %v4365 = vld [vmem:[%s5 + $0x68] sm:$0xff]
    %v4366 = vld [vmem:[%s5 + $0x70] sm:$0xff]
    %v4367 = vld [vmem:[%s5 + $0x78] sm:$0xff]
    %v4368 = vld [vmem:[%s5 + $0x80] sm:$0xff]
    %v4369 = vld [vmem:[%s5 + $0x88] sm:$0xff]
    %v4370 = vld [vmem:[%s5 + $0x90] sm:$0xff]
    %v4371 = vld [vmem:[%s5 + $0x98] sm:$0xff]
    %v4372 = vld [vmem:[%s5 + $0xa0] sm:$0xff]
    %v4373 = vld [vmem:[%s5 + $0xa8] sm:$0xff]
    %v4374 = vld [vmem:[%s5 + $0xb0] sm:$0xff]
    %v4375 = vld [vmem:[%s5 + $0xb8] sm:$0xff]
    %v4376 = vld [vmem:[%s5 + $0xc0] sm:$0xff]
    %v4377 = vld [vmem:[%s5 + $0xc8] sm:$0xff]
    %v4378 = vld [vmem:[%s5 + $0xd0] sm:$0xff]
    %v4379 = vld [vmem:[%s5 + $0xd8] sm:$0xff]
    %v4380 = vld [vmem:[%s5 + $0xe0] sm:$0xff]
    %v4381 = vld [vmem:[%s5 + $0xe8] sm:$0xff]
    %v4382 = vld [vmem:[%s5 + $0xf0] sm:$0xff]
    %v4383 = vld [vmem:[%s5 + $0xf8] sm:$0xff]
    %v4384 = vld [vmem:[%s6] sm:$0xff]
    %v4385 = vld [vmem:[%s6 + $0x8] sm:$0xff]
    %v4386 = vld [vmem:[%s6 + $0x10] sm:$0xff]
    %v4388 = vsel %vm363, %v4351, 0
    %4390 = vmatpush.msra.mxu0 0.0
    %4391 = vmatpush.msra.mxu0 0.0
    %4392 = vmatpush.msra.mxu0 0.0
    %4393 = vmatpush.msra.mxu0 0.0
    %4394 = vmatpush.msra.mxu0 0.0
    %4395 = vmatpush.msra.mxu0 0.0
    %4396 = vmatpush.msra.mxu0 0.0
    %4397 = vmatpush.msra.mxu0 0.0
    %4398 = vmatpush.msra.mxu0 0.0
    %4399 = vmatpush.msra.mxu0 0.0
    %4400 = vmatpush.msra.mxu0 0.0
    %4401 = vmatpush.msra.mxu0 0.0
    %4402 = vmatpush.msra.mxu0 0.0
    %4403 = vmatpush.msra.mxu0 %v4386
    %4404 = vmatpush.msra.mxu0 %v4385
    %4405 = vmatpush.msra.mxu0 %v4384
    %4406 = vmatmul.f32.gmra.mxu0 %v4388
    %v4407 = vpop.f32.mrf.mxu0
    %v4408 = vadd.f32 0.0, %v4407
    %4409 = vdwg.mxu0
    %4410 = vmatpush.msra.mxu0 %v4367
    %4411 = vmatpush.msra.mxu0 %v4366
    %4412 = vmatpush.msra.mxu0 %v4365
    %4413 = vmatpush.msra.mxu0 %v4364
    %4414 = vmatpush.msra.mxu0 %v4363
    %4415 = vmatpush.msra.mxu0 %v4362
    %4416 = vmatpush.msra.mxu0 %v4361
    %4417 = vmatpush.msra.mxu0 %v4360
    %4418 = vmatpush.msra.mxu0 %v4359
    %4419 = vmatpush.msra.mxu0 %v4358
    %4420 = vmatpush.msra.mxu0 %v4357
    %4421 = vmatpush.msra.mxu0 %v4356
    %4422 = vmatpush.msra.mxu0 %v4355
    %4423 = vmatpush.msra.mxu0 %v4354
    %4424 = vmatpush.msra.mxu0 %v4353
    %4425 = vmatpush.msra.mxu0 %v4352
    %4426 = vmatmul.f32.gmra.mxu0 %v4346
    %v4427 = vpop.f32.mrf.mxu0
    %v4428 = vadd.f32 %v4408, %v4427
    %4429 = vdwg.mxu0
    %4430 = vmatpush.msra.mxu0 %v4383
    %4431 = vmatpush.msra.mxu0 %v4382
    %4432 = vmatpush.msra.mxu0 %v4381
    %4433 = vmatpush.msra.mxu0 %v4380
    %4434 = vmatpush.msra.mxu0 %v4379
    %4435 = vmatpush.msra.mxu0 %v4378
    %4436 = vmatpush.msra.mxu0 %v4377
    %4437 = vmatpush.msra.mxu0 %v4376
    %4438 = vmatpush.msra.mxu0 %v4375
    %4439 = vmatpush.msra.mxu0 %v4374
    %4440 = vmatpush.msra.mxu0 %v4373
    %4441 = vmatpush.msra.mxu0 %v4372
    %4442 = vmatpush.msra.mxu0 %v4371
    %4443 = vmatpush.msra.mxu0 %v4370
    %4444 = vmatpush.msra.mxu0 %v4369
    %4445 = vmatpush.msra.mxu0 %v4368
    %4446 = vmatmul.f32.gmra.mxu0 %v4347
    %v4447 = vpop.f32.mrf.mxu0
    %v4448 = vadd.f32 %v4428, %v4447
    %4449 = vdwg.mxu0
    %v4450 = vld [vmem:[%s7] sm:$0x1]
    %v4452 = vperm.slane %v4450, 0
    %v4454 = vadd.f32 %v4448, %v4452
    %vm4455 = vcmp.gt.f32.partialorder %v4454, 0.0
    %v4456 = vmul.f32 %v4454, 0.01
    %v4457 = vsel %vm4455, %v4454, %v4456
    %v4458 = vld [vmem:[%s8] sm:$0xff]
    %v4459 = vld [vmem:[%s8 + $0x8] sm:$0xff]
    %v4460 = vld [vmem:[%s8 + $0x10] sm:$0xff]
    %v4461 = vld [vmem:[%s8 + $0x18] sm:$0xff]
    %v4462 = vld [vmem:[%s9] sm:$0x1]
    %v4464 = vperm.slane %v4462, 0
    %vm4466 = vcmask 261120
    %v4468 = vsel %vm4466, %v4457, 0
    %4470 = vmatpush.msra.mxu0 0.0
    %4471 = vmatpush.msra.mxu0 0.0
    %4472 = vmatpush.msra.mxu0 0.0
    %4473 = vmatpush.msra.mxu0 0.0
    %4474 = vmatpush.msra.mxu0 0.0
    %4475 = vmatpush.msra.mxu0 0.0
    %4476 = vmatpush.msra.mxu0 0.0
    %4477 = vmatpush.msra.mxu0 0.0
    %4478 = vmatpush.msra.mxu0 0.0
    %4479 = vmatpush.msra.mxu0 0.0
    %4480 = vmatpush.msra.mxu0 0.0
    %4481 = vmatpush.msra.mxu0 0.0
    %4482 = vmatpush.msra.mxu0 %v4461
    %4483 = vmatpush.msra.mxu0 %v4460
    %4484 = vmatpush.msra.mxu0 %v4459
    %4485 = vmatpush.msra.mxu0 %v4458
    %4486 = vmatmul.f32.gmra.mxu0 %v4468
    %v4487 = vpop.f32.mrf.mxu0
    %v4488 = vadd.f32 %v4464, %v4487
    %4489 = vdwg.mxu0
    %vm4490 = vcmp.gt.f32.partialorder %v4488, 0.0
    %v4491 = vmul.f32 %v4488, 0.01
    %v4492 = vsel %vm4490, %v4488, %v4491
    %v4493 = vld [vmem:[%s10] sm:$0xff]
    %v4494 = vld [vmem:[%s10 + $0x8] sm:$0xff]
    %v4495 = vld [vmem:[%s11] sm:$0x1]
    %v4497 = vperm.slane %v4495, 0
    %vm4499 = vcmask 130048
    %v4501 = vsel %vm4499, %v4492, 0
    %4503 = vmatpush.msra.mxu0 0.0
    %4504 = vmatpush.msra.mxu0 0.0
    %4505 = vmatpush.msra.mxu0 0.0
    %4506 = vmatpush.msra.mxu0 0.0
    %4507 = vmatpush.msra.mxu0 0.0
    %4508 = vmatpush.msra.mxu0 0.0
    %4509 = vmatpush.msra.mxu0 0.0
    %4510 = vmatpush.msra.mxu0 0.0
    %4511 = vmatpush.msra.mxu0 0.0
    %4512 = vmatpush.msra.mxu0 0.0
    %4513 = vmatpush.msra.mxu0 0.0
    %4514 = vmatpush.msra.mxu0 0.0
    %4515 = vmatpush.msra.mxu0 0.0
    %4516 = vmatpush.msra.mxu0 0.0
    %4517 = vmatpush.msra.mxu0 %v4494
    %4518 = vmatpush.msra.mxu0 %v4493
    %4519 = vmatmul.f32.gmra.mxu0 %v4501
    %v4520 = vpop.f32.mrf.mxu0
    %v4521 = vadd.f32 %v4497, %v4520
    %4522 = vdwg.mxu0
    %vm4523 = vcmask 15360
    %4524 = vst.msk [vmem:[%s12] sm:$0xff] %vm4523, %v4521
    // Predicated region
    $region54: #{tpu_custom_call.1} parent=1 // pred_check
      _
    $region55: #{tpu_custom_call.1} parent=1 // pred_check_branch
      %4526 = sbr.rel (0) target = $region57
    $region56: #{tpu_custom_call.1} parent=1 // pred_region
      _
    $region57: #{tpu_custom_call.1} parent=1 // pred_fallthru
      _
    // Predicated region
    $region58: #{tpu_custom_call.1} parent=1 // pred_check
      _
    $region59: #{tpu_custom_call.1} parent=1 // pred_check_branch
      %4528 = sbr.rel (0) target = $region61
    $region60: #{tpu_custom_call.1} parent=1 // pred_region
      _
    $region61: #{tpu_custom_call.1} parent=1 // pred_fallthru
      _
    %4529 = vsyncpa [#allocation3], 1

</llo_original>
